<compile_context>
chip_gen: v7x
topology: tpu7x:2x2x1
jax: 0.10.0
libtpu: 0.0.40
codegen_flags: <defaults>
</compile_context>

<pallas_src>
import functools
import math

import jax
import jax.numpy as jnp
import numpy as np
from jax.experimental import pallas as pl
from jax.experimental.pallas import tpu as pltpu  # noqa: F401  (TPU backend)

# ---------------- config (GPTConfig semantics, small test sizes) ----------------
BLOCK_SIZE = 8                       # max sequence length (rope cache length)
VOCAB = 40
N_EMBD = 32
N_LAYER = 2
N_HEAD = 4
HEAD_SIZE = N_EMBD // N_HEAD         # 8
NORM_EPS = 1e-5
LANE = 128


def _round_up(x, m):
    return ((x + m - 1) // m) * m


INTERMEDIATE = _round_up(int(N_EMBD * 8 / 3), 32)   # 96
VOCAB_PAD = _round_up(VOCAB, LANE)                  # 128 (lane-dense output)


# ---------------- in-kernel helpers ----------------
def _rmsnorm(x, w, eps):
    # x: (R, C), w: (1, C)
    var = jnp.mean(x * x, axis=-1, keepdims=True)
    return (x * jax.lax.rsqrt(var + eps)) * w


# ---------------- fused Pallas kernel ----------------
def gpt_fused_kernel(idx_ref, wte_ref, cos_ref, sin_ref, rot_ref, bias_ref,
                     n1_ref, wqkv_ref, wo_ref,
                     n2_ref, w1_ref, w2_ref, wp_ref,
                     lnf_ref, wlm_ref, out_ref,
                     *, n_layer, n_head, head_size, eps):
    """Entire GPT forward for all batch elements at once.

    idx_ref : (B*T, 1) int32 token ids
    wte_ref : (V, C) embedding table
    cos/sin : (B*T, C) RoPE cache tiled over batch and heads
    rot_ref : (C, C) block-diagonal rotate-half matrix (rotate(x) == x @ R)
    bias_ref: (B*T, B*T) additive mask (0 allowed / -1e30 masked, block-causal)
    per-layer weights stacked along a leading layer axis
    wlm_ref : (C, VOCAB_PAD) lm_head padded to 128 lanes
    out_ref : (B*T, VOCAB_PAD)
    """
    ids = idx_ref[...]                                            # (R, 1) int32
    rows = ids.shape[0]
    vocab = wte_ref.shape[0]

    # Embedding gather as a one-hot matmul (keeps the whole forward in-kernel).
    cols = jax.lax.broadcasted_iota(jnp.int32, (rows, vocab), 1)
    onehot = (cols == ids).astype(jnp.float32)                    # (R, V)
    x = jnp.dot(onehot, wte_ref[...], preferred_element_type=jnp.float32)  # (R, C)

    cos = cos_ref[...]
    sin = sin_ref[...]
    rot = rot_ref[...]
    bias = bias_ref[...]
    C = x.shape[-1]

    for l in range(n_layer):                                      # static unroll
        # ---- causal self-attention ----
        h = _rmsnorm(x, n1_ref[l], eps)
        qkv = jnp.dot(h, wqkv_ref[l], preferred_element_type=jnp.float32)  # (R, 3C)
        q = qkv[:, :C]                  # q columns pre-scaled by 1/sqrt(hs)
        k = qkv[:, C:2 * C]
        v = qkv[:, 2 * C:]

        # RoPE on the full (R, C) slabs in one shot: x*cos + (x @ R)*sin.
        q = q * cos + jnp.dot(q, rot, preferred_element_type=jnp.float32) * sin
        k = k * cos + jnp.dot(k, rot, preferred_element_type=jnp.float32) * sin

        wo = wo_ref[l]                                            # (C, C)
        y = jnp.zeros_like(x)
        for hd in range(n_head):                                  # static unroll
            sl = slice(hd * head_size, (hd + 1) * head_size)
            s = jax.lax.dot_general(q[:, sl], k[:, sl],
                                    (((1,), (1,)), ((), ())),
                                    preferred_element_type=jnp.float32)     # (R, R)
            s = s + bias                                          # block-causal
            m = jnp.max(s, axis=-1, keepdims=True)
            p = jnp.exp(s - m)
            att = p / jnp.sum(p, axis=-1, keepdims=True)
            o = jnp.dot(att, v[:, sl], preferred_element_type=jnp.float32)  # (R, hs)
            # accumulate through the matching rows of W_o instead of concat
            y = y + jnp.dot(o, wo[sl, :], preferred_element_type=jnp.float32)
        x = x + y

        # ---- SwiGLU MLP ----
        h2 = _rmsnorm(x, n2_ref[l], eps)
        a = jnp.dot(h2, w1_ref[l], preferred_element_type=jnp.float32)
        b = jnp.dot(h2, w2_ref[l], preferred_element_type=jnp.float32)
        g = jax.nn.silu(a) * b
        x = x + jnp.dot(g, wp_ref[l], preferred_element_type=jnp.float32)

    # ---- final RMSNorm + lm_head (lane-dense padded output) ----
    xf = _rmsnorm(x, lnf_ref[...], eps)
    out_ref[...] = jnp.dot(xf, wlm_ref[...], preferred_element_type=jnp.float32)


# ---------------- host-side precomputation ----------------
def build_rope(T, hs):
    theta = 1.0 / (10000.0 ** (jnp.arange(0, hs, 2, dtype=jnp.float32) / hs))
    pos = jnp.arange(T, dtype=jnp.float32)
    ang = jnp.outer(pos, theta)
    ang = jnp.concatenate([ang, ang], axis=-1)           # repeat(1, 2)
    return jnp.cos(ang), jnp.sin(ang)


def build_rot_matrix(n_head, head_size):
    """R such that x @ R == concat(-x2, x1) per head block."""
    C = n_head * head_size
    half = head_size // 2
    R = np.zeros((C, C), np.float32)
    for h in range(n_head):
        base = h * head_size
        for j in range(half):
            R[base + half + j, base + j] = -1.0
            R[base + j, base + half + j] = 1.0
    return jnp.asarray(R)


def build_attn_bias(B, T):
    """Additive mask over folded (B*T) rows: causal within a batch, no cross-batch."""
    pos = jnp.arange(B * T)
    b = pos // T
    t = pos % T
    allowed = (b[:, None] == b[None, :]) & (t[:, None] >= t[None, :])
    return jnp.where(allowed, 0.0, -1e30).astype(jnp.float32)


def prepare_kernel_params(params, cos, sin, B, T):
    C = N_EMBD
    scale = 1.0 / math.sqrt(HEAD_SIZE)
    layers = params["layers"]

    def fold_scale(wqkv):   # fold 1/sqrt(hs) into the q columns
        return jnp.concatenate([wqkv[:, :C] * scale, wqkv[:, C:]], axis=1)

    return {
        "cos": jnp.tile(cos, (B, N_HEAD)),                   # (B*T, C)
        "sin": jnp.tile(sin, (B, N_HEAD)),
        "rot": build_rot_matrix(N_HEAD, HEAD_SIZE),          # (C, C)
        "bias": build_attn_bias(B, T),                       # (B*T, B*T)
        "n1": jnp.stack([l["norm1_w"] for l in layers]),     # (L, 1, C)
        "wqkv": jnp.stack([fold_scale(l["w_qkv"]) for l in layers]),   # (L, C, 3C)
        "wo": jnp.stack([l["w_attn_proj"] for l in layers]),           # (L, C, C)
        "n2": jnp.stack([l["norm2_w"] for l in layers]),               # (L, 1, C)
        "w1": jnp.stack([l["w_fc1"] for l in layers]),                 # (L, C, I)
        "w2": jnp.stack([l["w_fc2"] for l in layers]),                 # (L, C, I)
        "wp": jnp.stack([l["w_mlp_proj"] for l in layers]),            # (L, I, C)
        "lnf": params["ln_f_w"],                                       # (1, C)
        "wlm": jnp.pad(params["lm_head"],
                       ((0, 0), (0, VOCAB_PAD - VOCAB))),              # (C, 128)
    }


# ---------------- wrapper ----------------
def gpt_forward(idx, params, cos, sin):
    B, T = idx.shape
    kp = prepare_kernel_params(params, cos, sin, B, T)
    kern = functools.partial(gpt_fused_kernel, n_layer=N_LAYER, n_head=N_HEAD,
                             head_size=HEAD_SIZE, eps=NORM_EPS)
    out = pl.pallas_call(
        kern,
        out_shape=jax.ShapeDtypeStruct((B * T, VOCAB_PAD), jnp.float32),
        # Gridless call: every operand (~130 KB total) is resident in VMEM.
    )(idx.reshape(B * T, 1).astype(jnp.int32), params["wte"],
      kp["cos"], kp["sin"], kp["rot"], kp["bias"],
      kp["n1"], kp["wqkv"], kp["wo"], kp["n2"], kp["w1"], kp["w2"], kp["wp"],
      kp["lnf"], kp["wlm"])
    return out[:, :VOCAB].reshape(B, T, VOCAB)


# ---------------- parameter construction ----------------
def init_params(key):
    std = 0.02
    proj_std = 0.02 / math.sqrt(2 * N_LAYER)
    n_keys = 2 + 5 * N_LAYER          # wte + 5 weights per layer + lm_head
    keys = iter(jax.random.split(key, n_keys))

    params = {}
    params["wte"] = jax.random.normal(next(keys), (VOCAB, N_EMBD), jnp.float32) * std
    layers = []
    for _ in range(N_LAYER):
        layers.append({
            "norm1_w": jnp.ones((1, N_EMBD), jnp.float32),
            "w_qkv": jax.random.normal(next(keys), (N_EMBD, 3 * N_HEAD * HEAD_SIZE),
                                       jnp.float32) * std,
            "w_attn_proj": jax.random.normal(next(keys), (N_EMBD, N_EMBD),
                                             jnp.float32) * proj_std,
            "norm2_w": jnp.ones((1, N_EMBD), jnp.float32),
            "w_fc1": jax.random.normal(next(keys), (N_EMBD, INTERMEDIATE),
                                       jnp.float32) * std,
            "w_fc2": jax.random.normal(next(keys), (N_EMBD, INTERMEDIATE),
                                       jnp.float32) * std,
            "w_mlp_proj": jax.random.normal(next(keys), (INTERMEDIATE, N_EMBD),
                                            jnp.float32) * proj_std,
        })
    params["layers"] = layers
    params["ln_f_w"] = jnp.ones((1, N_EMBD), jnp.float32)
    params["lm_head"] = jax.random.normal(next(keys), (N_EMBD, VOCAB),
                                          jnp.float32) * std
    return params


# ---------------- pure-JAX reference (correctness check) ----------------
def ref_forward(idx, params, cos, sin):
    def rms(x, w):
        return x * jax.lax.rsqrt(jnp.mean(x * x, -1, keepdims=True) + NORM_EPS) * w

    x = params["wte"][idx]
    B, T, _ = x.shape
    for l in range(N_LAYER):
        p = params["layers"][l]
        h = rms(x, p["norm1_w"][0])
        qkv = h @ p["w_qkv"]
        qkv = qkv.reshape(B, T, 3 * N_HEAD, HEAD_SIZE).transpose(0, 2, 1, 3)
        q, k, v = (qkv[:, :N_HEAD], qkv[:, N_HEAD:2 * N_HEAD], qkv[:, 2 * N_HEAD:])

        def rope(xx):
            half = HEAD_SIZE // 2
            x1, x2 = xx[..., :half], xx[..., half:]
            rot = jnp.concatenate([-x2, x1], -1)
            return xx * cos + rot * sin

        q, k = rope(q), rope(k)
        s = jnp.einsum("bnth,bnsh->bnts", q, k) / math.sqrt(HEAD_SIZE)
        mask = jnp.tril(jnp.ones((T, T), bool))
        s = jnp.where(mask, s, -jnp.inf)
        att = jax.nn.softmax(s, -1)
        y = jnp.einsum("bnts,bnsh->bnth", att, v)
        y = y.transpose(0, 2, 1, 3).reshape(B, T, -1) @ p["w_attn_proj"]
        x = x + y
        h2 = rms(x, p["norm2_w"][0])
        x = x + (jax.nn.silu(h2 @ p["w_fc1"]) * (h2 @ p["w_fc2"])) @ p["w_mlp_proj"]
    x = rms(x, params["ln_f_w"][0])
    return x @ params["lm_head"]


# ---------------- main ----------------
if __name__ == "__main__":
    key = jax.random.PRNGKey(0)
    k_param, k_idx = jax.random.split(key)

    params = init_params(k_param)
    B, T = 2, BLOCK_SIZE
    idx = jax.random.randint(k_idx, (B, T), 0, VOCAB, dtype=jnp.int32)
    cos, sin = build_rope(T, HEAD_SIZE)

    logits = jax.block_until_ready(jax.jit(gpt_forward)(idx, params, cos, sin))

    ref = jax.block_until_ready(ref_forward(idx, params, cos, sin))
    assert logits.shape == (B, T, VOCAB)
    max_err = float(jnp.max(jnp.abs(logits - ref)))
    assert jnp.allclose(logits, ref, atol=1e-3, rtol=1e-3), max_err

    print("KERNEL_OK")
</pallas_src>

<mosaic_0001>
module attributes {stable_mosaic.version = 11 : i64} {
  func.func @gpt_fused_kernel(%arg0: memref<16x1xi32, #tpu.memory_space<vmem>>, %arg1: memref<40x32xf32, #tpu.memory_space<vmem>>, %arg2: memref<16x32xf32, #tpu.memory_space<vmem>>, %arg3: memref<16x32xf32, #tpu.memory_space<vmem>>, %arg4: memref<32x32xf32, #tpu.memory_space<vmem>>, %arg5: memref<16x16xf32, #tpu.memory_space<vmem>>, %arg6: memref<2x1x32xf32, #tpu.memory_space<vmem>>, %arg7: memref<2x32x96xf32, #tpu.memory_space<vmem>>, %arg8: memref<2x32x32xf32, #tpu.memory_space<vmem>>, %arg9: memref<2x1x32xf32, #tpu.memory_space<vmem>>, %arg10: memref<2x32x96xf32, #tpu.memory_space<vmem>>, %arg11: memref<2x32x96xf32, #tpu.memory_space<vmem>>, %arg12: memref<2x96x32xf32, #tpu.memory_space<vmem>>, %arg13: memref<1x32xf32, #tpu.memory_space<vmem>>, %arg14: memref<32x128xf32, #tpu.memory_space<vmem>>, %arg15: memref<16x128xf32, #tpu.memory_space<vmem>>) attributes {dimension_semantics = [], scalar_prefetch = 0 : i64, scratch_operands = 0 : i64, tpu.core_type = #tpu.core_type<tc>} {
    %c0 = arith.constant 0 : index
    %c0_0 = arith.constant 0 : index
    %0 = vector.load %arg0[%c0, %c0_0] : memref<16x1xi32, #tpu.memory_space<vmem>>, vector<16x1xi32>
    %1 = tpu.iota {dimensions = array<i32: 1>} : vector<16x40xi32>
    %2 = vector.broadcast %0 : vector<16x1xi32> to vector<16x40xi32>
    %3 = arith.cmpi eq, %1, %2 : vector<16x40xi32>
    %4 = arith.extui %3 : vector<16x40xi1> to vector<16x40xi32>
    %5 = arith.sitofp %4 : vector<16x40xi32> to vector<16x40xf32>
    %c0_1 = arith.constant 0 : index
    %c0_2 = arith.constant 0 : index
    %6 = vector.load %arg1[%c0_1, %c0_2] : memref<40x32xf32, #tpu.memory_space<vmem>>, vector<40x32xf32>
    %cst = arith.constant dense<0.000000e+00> : vector<16x32xf32>
    %7 = tpu.matmul %5, %6, %cst {dimension_numbers = #tpu.dot_dimension_numbers<[1], [0], [0], [1], [0, 0, 1, 1], [], []>} : vector<16x40xf32>, vector<40x32xf32>, vector<16x32xf32> -> vector<16x32xf32>
    %c0_3 = arith.constant 0 : index
    %c0_4 = arith.constant 0 : index
    %8 = vector.load %arg2[%c0_3, %c0_4] : memref<16x32xf32, #tpu.memory_space<vmem>>, vector<16x32xf32>
    %c0_5 = arith.constant 0 : index
    %c0_6 = arith.constant 0 : index
    %9 = vector.load %arg3[%c0_5, %c0_6] : memref<16x32xf32, #tpu.memory_space<vmem>>, vector<16x32xf32>
    %c0_7 = arith.constant 0 : index
    %c0_8 = arith.constant 0 : index
    %10 = vector.load %arg4[%c0_7, %c0_8] : memref<32x32xf32, #tpu.memory_space<vmem>>, vector<32x32xf32>
    %c0_9 = arith.constant 0 : index
    %c0_10 = arith.constant 0 : index
    %11 = vector.load %arg5[%c0_9, %c0_10] : memref<16x16xf32, #tpu.memory_space<vmem>>, vector<16x16xf32>
    %c0_11 = arith.constant 0 : index
    %c0_12 = arith.constant 0 : index
    %c0_13 = arith.constant 0 : index
    %12 = vector.load %arg6[%c0_11, %c0_12, %c0_13] : memref<2x1x32xf32, #tpu.memory_space<vmem>>, vector<1x1x32xf32>
    %13 = vector.shape_cast %12 : vector<1x1x32xf32> to vector<1x32xf32>
    %14 = arith.mulf %7, %7 : vector<16x32xf32>
    %cst_14 = arith.constant dense<0.000000e+00> : vector<16xf32>
    %15 = vector.multi_reduction <add>, %14, %cst_14 [1] : vector<16x32xf32> to vector<16xf32>
    %16 = vector.shape_cast %15 : vector<16xf32> to vector<16x1xf32>
    %cst_15 = arith.constant 3.200000e+01 : f32
    %17 = vector.broadcast %cst_15 : f32 to vector<16x1xf32>
    %18 = arith.divf %16, %17 : vector<16x1xf32>
    %cst_16 = arith.constant 9.99999974E-6 : f32
    %19 = vector.broadcast %cst_16 : f32 to vector<16x1xf32>
    %20 = arith.addf %18, %19 : vector<16x1xf32>
    %21 = math.rsqrt %20 : vector<16x1xf32>
    %22 = vector.broadcast %21 : vector<16x1xf32> to vector<16x32xf32>
    %23 = arith.mulf %7, %22 : vector<16x32xf32>
    %24 = vector.broadcast %13 : vector<1x32xf32> to vector<16x32xf32>
    %25 = arith.mulf %23, %24 : vector<16x32xf32>
    %c0_17 = arith.constant 0 : index
    %c0_18 = arith.constant 0 : index
    %c0_19 = arith.constant 0 : index
    %26 = vector.load %arg7[%c0_17, %c0_18, %c0_19] : memref<2x32x96xf32, #tpu.memory_space<vmem>>, vector<1x32x96xf32>
    %27 = vector.shape_cast %26 : vector<1x32x96xf32> to vector<32x96xf32>
    %cst_20 = arith.constant dense<0.000000e+00> : vector<16x96xf32>
    %28 = tpu.matmul %25, %27, %cst_20 {dimension_numbers = #tpu.dot_dimension_numbers<[1], [0], [0], [1], [0, 0, 1, 1], [], []>} : vector<16x32xf32>, vector<32x96xf32>, vector<16x96xf32> -> vector<16x96xf32>
    %29 = vector.extract_strided_slice %28 {offsets = [0, 0], sizes = [16, 32], strides = [1, 1]} : vector<16x96xf32> to vector<16x32xf32>
    %30 = vector.extract_strided_slice %28 {offsets = [0, 32], sizes = [16, 32], strides = [1, 1]} : vector<16x96xf32> to vector<16x32xf32>
    %31 = vector.extract_strided_slice %28 {offsets = [0, 64], sizes = [16, 32], strides = [1, 1]} : vector<16x96xf32> to vector<16x32xf32>
    %32 = arith.mulf %29, %8 : vector<16x32xf32>
    %cst_21 = arith.constant dense<0.000000e+00> : vector<16x32xf32>
    %33 = tpu.matmul %29, %10, %cst_21 {dimension_numbers = #tpu.dot_dimension_numbers<[1], [0], [0], [1], [0, 0, 1, 1], [], []>} : vector<16x32xf32>, vector<32x32xf32>, vector<16x32xf32> -> vector<16x32xf32>
    %34 = arith.mulf %33, %9 : vector<16x32xf32>
    %35 = arith.addf %32, %34 : vector<16x32xf32>
    %36 = arith.mulf %30, %8 : vector<16x32xf32>
    %cst_22 = arith.constant dense<0.000000e+00> : vector<16x32xf32>
    %37 = tpu.matmul %30, %10, %cst_22 {dimension_numbers = #tpu.dot_dimension_numbers<[1], [0], [0], [1], [0, 0, 1, 1], [], []>} : vector<16x32xf32>, vector<32x32xf32>, vector<16x32xf32> -> vector<16x32xf32>
    %38 = arith.mulf %37, %9 : vector<16x32xf32>
    %39 = arith.addf %36, %38 : vector<16x32xf32>
    %c0_23 = arith.constant 0 : index
    %c0_24 = arith.constant 0 : index
    %c0_25 = arith.constant 0 : index
    %40 = vector.load %arg8[%c0_23, %c0_24, %c0_25] : memref<2x32x32xf32, #tpu.memory_space<vmem>>, vector<1x32x32xf32>
    %41 = vector.shape_cast %40 : vector<1x32x32xf32> to vector<32x32xf32>
    %cst_26 = arith.constant 0.000000e+00 : f32
    %42 = vector.broadcast %cst_26 : f32 to vector<16x32xf32>
    %43 = vector.extract_strided_slice %35 {offsets = [0, 0], sizes = [16, 8], strides = [1, 1]} : vector<16x32xf32> to vector<16x8xf32>
    %44 = vector.extract_strided_slice %39 {offsets = [0, 0], sizes = [16, 8], strides = [1, 1]} : vector<16x32xf32> to vector<16x8xf32>
    %cst_27 = arith.constant dense<0.000000e+00> : vector<16x16xf32>
    %45 = tpu.matmul %43, %44, %cst_27 {dimension_numbers = #tpu.dot_dimension_numbers<[1], [1], [0], [0], [0, 0, 1, 0], [], []>} : vector<16x8xf32>, vector<16x8xf32>, vector<16x16xf32> -> vector<16x16xf32>
    %46 = arith.addf %45, %11 : vector<16x16xf32>
    %cst_28 = arith.constant dense<0xFF800000> : vector<16xf32>
    %47 = vector.multi_reduction <maximumf>, %46, %cst_28 [1] : vector<16x16xf32> to vector<16xf32>
    %48 = vector.shape_cast %47 : vector<16xf32> to vector<16x1xf32>
    %49 = vector.broadcast %48 : vector<16x1xf32> to vector<16x16xf32>
    %50 = arith.subf %46, %49 : vector<16x16xf32>
    %51 = math.exp %50 : vector<16x16xf32>
    %cst_29 = arith.constant dense<0.000000e+00> : vector<16xf32>
    %52 = vector.multi_reduction <add>, %51, %cst_29 [1] : vector<16x16xf32> to vector<16xf32>
    %53 = vector.shape_cast %52 : vector<16xf32> to vector<16x1xf32>
    %54 = vector.broadcast %53 : vector<16x1xf32> to vector<16x16xf32>
    %55 = arith.divf %51, %54 : vector<16x16xf32>
    %56 = vector.extract_strided_slice %31 {offsets = [0, 0], sizes = [16, 8], strides = [1, 1]} : vector<16x32xf32> to vector<16x8xf32>
    %cst_30 = arith.constant dense<0.000000e+00> : vector<16x8xf32>
    %57 = tpu.matmul %55, %56, %cst_30 {dimension_numbers = #tpu.dot_dimension_numbers<[1], [0], [0], [1], [0, 0, 1, 1], [], []>} : vector<16x16xf32>, vector<16x8xf32>, vector<16x8xf32> -> vector<16x8xf32>
    %58 = vector.extract_strided_slice %41 {offsets = [0, 0], sizes = [8, 32], strides = [1, 1]} : vector<32x32xf32> to vector<8x32xf32>
    %cst_31 = arith.constant dense<0.000000e+00> : vector<16x32xf32>
    %59 = tpu.matmul %57, %58, %cst_31 {dimension_numbers = #tpu.dot_dimension_numbers<[1], [0], [0], [1], [0, 0, 1, 1], [], []>} : vector<16x8xf32>, vector<8x32xf32>, vector<16x32xf32> -> vector<16x32xf32>
    %60 = arith.addf %42, %59 : vector<16x32xf32>
    %61 = vector.extract_strided_slice %35 {offsets = [0, 8], sizes = [16, 8], strides = [1, 1]} : vector<16x32xf32> to vector<16x8xf32>
    %62 = vector.extract_strided_slice %39 {offsets = [0, 8], sizes = [16, 8], strides = [1, 1]} : vector<16x32xf32> to vector<16x8xf32>
    %cst_32 = arith.constant dense<0.000000e+00> : vector<16x16xf32>
    %63 = tpu.matmul %61, %62, %cst_32 {dimension_numbers = #tpu.dot_dimension_numbers<[1], [1], [0], [0], [0, 0, 1, 0], [], []>} : vector<16x8xf32>, vector<16x8xf32>, vector<16x16xf32> -> vector<16x16xf32>
    %64 = arith.addf %63, %11 : vector<16x16xf32>
    %cst_33 = arith.constant dense<0xFF800000> : vector<16xf32>
    %65 = vector.multi_reduction <maximumf>, %64, %cst_33 [1] : vector<16x16xf32> to vector<16xf32>
    %66 = vector.shape_cast %65 : vector<16xf32> to vector<16x1xf32>
    %67 = vector.broadcast %66 : vector<16x1xf32> to vector<16x16xf32>
    %68 = arith.subf %64, %67 : vector<16x16xf32>
    %69 = math.exp %68 : vector<16x16xf32>
    %cst_34 = arith.constant dense<0.000000e+00> : vector<16xf32>
    %70 = vector.multi_reduction <add>, %69, %cst_34 [1] : vector<16x16xf32> to vector<16xf32>
    %71 = vector.shape_cast %70 : vector<16xf32> to vector<16x1xf32>
    %72 = vector.broadcast %71 : vector<16x1xf32> to vector<16x16xf32>
    %73 = arith.divf %69, %72 : vector<16x16xf32>
    %74 = vector.extract_strided_slice %31 {offsets = [0, 8], sizes = [16, 8], strides = [1, 1]} : vector<16x32xf32> to vector<16x8xf32>
    %cst_35 = arith.constant dense<0.000000e+00> : vector<16x8xf32>
    %75 = tpu.matmul %73, %74, %cst_35 {dimension_numbers = #tpu.dot_dimension_numbers<[1], [0], [0], [1], [0, 0, 1, 1], [], []>} : vector<16x16xf32>, vector<16x8xf32>, vector<16x8xf32> -> vector<16x8xf32>
    %76 = vector.extract_strided_slice %41 {offsets = [8, 0], sizes = [8, 32], strides = [1, 1]} : vector<32x32xf32> to vector<8x32xf32>
    %cst_36 = arith.constant dense<0.000000e+00> : vector<16x32xf32>
    %77 = tpu.matmul %75, %76, %cst_36 {dimension_numbers = #tpu.dot_dimension_numbers<[1], [0], [0], [1], [0, 0, 1, 1], [], []>} : vector<16x8xf32>, vector<8x32xf32>, vector<16x32xf32> -> vector<16x32xf32>
    %78 = arith.addf %60, %77 : vector<16x32xf32>
    %79 = vector.extract_strided_slice %35 {offsets = [0, 16], sizes = [16, 8], strides = [1, 1]} : vector<16x32xf32> to vector<16x8xf32>
    %80 = vector.extract_strided_slice %39 {offsets = [0, 16], sizes = [16, 8], strides = [1, 1]} : vector<16x32xf32> to vector<16x8xf32>
    %cst_37 = arith.constant dense<0.000000e+00> : vector<16x16xf32>
    %81 = tpu.matmul %79, %80, %cst_37 {dimension_numbers = #tpu.dot_dimension_numbers<[1], [1], [0], [0], [0, 0, 1, 0], [], []>} : vector<16x8xf32>, vector<16x8xf32>, vector<16x16xf32> -> vector<16x16xf32>
    %82 = arith.addf %81, %11 : vector<16x16xf32>
    %cst_38 = arith.constant dense<0xFF800000> : vector<16xf32>
    %83 = vector.multi_reduction <maximumf>, %82, %cst_38 [1] : vector<16x16xf32> to vector<16xf32>
    %84 = vector.shape_cast %83 : vector<16xf32> to vector<16x1xf32>
    %85 = vector.broadcast %84 : vector<16x1xf32> to vector<16x16xf32>
    %86 = arith.subf %82, %85 : vector<16x16xf32>
    %87 = math.exp %86 : vector<16x16xf32>
    %cst_39 = arith.constant dense<0.000000e+00> : vector<16xf32>
    %88 = vector.multi_reduction <add>, %87, %cst_39 [1] : vector<16x16xf32> to vector<16xf32>
    %89 = vector.shape_cast %88 : vector<16xf32> to vector<16x1xf32>
    %90 = vector.broadcast %89 : vector<16x1xf32> to vector<16x16xf32>
    %91 = arith.divf %87, %90 : vector<16x16xf32>
    %92 = vector.extract_strided_slice %31 {offsets = [0, 16], sizes = [16, 8], strides = [1, 1]} : vector<16x32xf32> to vector<16x8xf32>
    %cst_40 = arith.constant dense<0.000000e+00> : vector<16x8xf32>
    %93 = tpu.matmul %91, %92, %cst_40 {dimension_numbers = #tpu.dot_dimension_numbers<[1], [0], [0], [1], [0, 0, 1, 1], [], []>} : vector<16x16xf32>, vector<16x8xf32>, vector<16x8xf32> -> vector<16x8xf32>
    %94 = vector.extract_strided_slice %41 {offsets = [16, 0], sizes = [8, 32], strides = [1, 1]} : vector<32x32xf32> to vector<8x32xf32>
    %cst_41 = arith.constant dense<0.000000e+00> : vector<16x32xf32>
    %95 = tpu.matmul %93, %94, %cst_41 {dimension_numbers = #tpu.dot_dimension_numbers<[1], [0], [0], [1], [0, 0, 1, 1], [], []>} : vector<16x8xf32>, vector<8x32xf32>, vector<16x32xf32> -> vector<16x32xf32>
    %96 = arith.addf %78, %95 : vector<16x32xf32>
    %97 = vector.extract_strided_slice %35 {offsets = [0, 24], sizes = [16, 8], strides = [1, 1]} : vector<16x32xf32> to vector<16x8xf32>
    %98 = vector.extract_strided_slice %39 {offsets = [0, 24], sizes = [16, 8], strides = [1, 1]} : vector<16x32xf32> to vector<16x8xf32>
    %cst_42 = arith.constant dense<0.000000e+00> : vector<16x16xf32>
    %99 = tpu.matmul %97, %98, %cst_42 {dimension_numbers = #tpu.dot_dimension_numbers<[1], [1], [0], [0], [0, 0, 1, 0], [], []>} : vector<16x8xf32>, vector<16x8xf32>, vector<16x16xf32> -> vector<16x16xf32>
    %100 = arith.addf %99, %11 : vector<16x16xf32>
    %cst_43 = arith.constant dense<0xFF800000> : vector<16xf32>
    %101 = vector.multi_reduction <maximumf>, %100, %cst_43 [1] : vector<16x16xf32> to vector<16xf32>
    %102 = vector.shape_cast %101 : vector<16xf32> to vector<16x1xf32>
    %103 = vector.broadcast %102 : vector<16x1xf32> to vector<16x16xf32>
    %104 = arith.subf %100, %103 : vector<16x16xf32>
    %105 = math.exp %104 : vector<16x16xf32>
    %cst_44 = arith.constant dense<0.000000e+00> : vector<16xf32>
    %106 = vector.multi_reduction <add>, %105, %cst_44 [1] : vector<16x16xf32> to vector<16xf32>
    %107 = vector.shape_cast %106 : vector<16xf32> to vector<16x1xf32>
    %108 = vector.broadcast %107 : vector<16x1xf32> to vector<16x16xf32>
    %109 = arith.divf %105, %108 : vector<16x16xf32>
    %110 = vector.extract_strided_slice %31 {offsets = [0, 24], sizes = [16, 8], strides = [1, 1]} : vector<16x32xf32> to vector<16x8xf32>
    %cst_45 = arith.constant dense<0.000000e+00> : vector<16x8xf32>
    %111 = tpu.matmul %109, %110, %cst_45 {dimension_numbers = #tpu.dot_dimension_numbers<[1], [0], [0], [1], [0, 0, 1, 1], [], []>} : vector<16x16xf32>, vector<16x8xf32>, vector<16x8xf32> -> vector<16x8xf32>
    %112 = vector.extract_strided_slice %41 {offsets = [24, 0], sizes = [8, 32], strides = [1, 1]} : vector<32x32xf32> to vector<8x32xf32>
    %cst_46 = arith.constant dense<0.000000e+00> : vector<16x32xf32>
    %113 = tpu.matmul %111, %112, %cst_46 {dimension_numbers = #tpu.dot_dimension_numbers<[1], [0], [0], [1], [0, 0, 1, 1], [], []>} : vector<16x8xf32>, vector<8x32xf32>, vector<16x32xf32> -> vector<16x32xf32>
    %114 = arith.addf %96, %113 : vector<16x32xf32>
    %115 = arith.addf %7, %114 : vector<16x32xf32>
    %c0_47 = arith.constant 0 : index
    %c0_48 = arith.constant 0 : index
    %c0_49 = arith.constant 0 : index
    %116 = vector.load %arg9[%c0_47, %c0_48, %c0_49] : memref<2x1x32xf32, #tpu.memory_space<vmem>>, vector<1x1x32xf32>
    %117 = vector.shape_cast %116 : vector<1x1x32xf32> to vector<1x32xf32>
    %118 = arith.mulf %115, %115 : vector<16x32xf32>
    %cst_50 = arith.constant dense<0.000000e+00> : vector<16xf32>
    %119 = vector.multi_reduction <add>, %118, %cst_50 [1] : vector<16x32xf32> to vector<16xf32>
    %120 = vector.shape_cast %119 : vector<16xf32> to vector<16x1xf32>
    %cst_51 = arith.constant 3.200000e+01 : f32
    %121 = vector.broadcast %cst_51 : f32 to vector<16x1xf32>
    %122 = arith.divf %120, %121 : vector<16x1xf32>
    %cst_52 = arith.constant 9.99999974E-6 : f32
    %123 = vector.broadcast %cst_52 : f32 to vector<16x1xf32>
    %124 = arith.addf %122, %123 : vector<16x1xf32>
    %125 = math.rsqrt %124 : vector<16x1xf32>
    %126 = vector.broadcast %125 : vector<16x1xf32> to vector<16x32xf32>
    %127 = arith.mulf %115, %126 : vector<16x32xf32>
    %128 = vector.broadcast %117 : vector<1x32xf32> to vector<16x32xf32>
    %129 = arith.mulf %127, %128 : vector<16x32xf32>
    %c0_53 = arith.constant 0 : index
    %c0_54 = arith.constant 0 : index
    %c0_55 = arith.constant 0 : index
    %130 = vector.load %arg10[%c0_53, %c0_54, %c0_55] : memref<2x32x96xf32, #tpu.memory_space<vmem>>, vector<1x32x96xf32>
    %131 = vector.shape_cast %130 : vector<1x32x96xf32> to vector<32x96xf32>
    %cst_56 = arith.constant dense<0.000000e+00> : vector<16x96xf32>
    %132 = tpu.matmul %129, %131, %cst_56 {dimension_numbers = #tpu.dot_dimension_numbers<[1], [0], [0], [1], [0, 0, 1, 1], [], []>} : vector<16x32xf32>, vector<32x96xf32>, vector<16x96xf32> -> vector<16x96xf32>
    %c0_57 = arith.constant 0 : index
    %c0_58 = arith.constant 0 : index
    %c0_59 = arith.constant 0 : index
    %133 = vector.load %arg11[%c0_57, %c0_58, %c0_59] : memref<2x32x96xf32, #tpu.memory_space<vmem>>, vector<1x32x96xf32>
    %134 = vector.shape_cast %133 : vector<1x32x96xf32> to vector<32x96xf32>
    %cst_60 = arith.constant dense<0.000000e+00> : vector<16x96xf32>
    %135 = tpu.matmul %129, %134, %cst_60 {dimension_numbers = #tpu.dot_dimension_numbers<[1], [0], [0], [1], [0, 0, 1, 1], [], []>} : vector<16x32xf32>, vector<32x96xf32>, vector<16x96xf32> -> vector<16x96xf32>
    %136 = arith.negf %132 : vector<16x96xf32>
    %137 = math.exp %136 : vector<16x96xf32>
    %cst_61 = arith.constant 1.000000e+00 : f32
    %138 = vector.broadcast %cst_61 : f32 to vector<16x96xf32>
    %139 = arith.addf %138, %137 : vector<16x96xf32>
    %140 = arith.divf %138, %139 : vector<16x96xf32>
    %141 = arith.mulf %132, %140 : vector<16x96xf32>
    %142 = arith.mulf %141, %135 : vector<16x96xf32>
    %c0_62 = arith.constant 0 : index
    %c0_63 = arith.constant 0 : index
    %c0_64 = arith.constant 0 : index
    %143 = vector.load %arg12[%c0_62, %c0_63, %c0_64] : memref<2x96x32xf32, #tpu.memory_space<vmem>>, vector<1x96x32xf32>
    %144 = vector.shape_cast %143 : vector<1x96x32xf32> to vector<96x32xf32>
    %cst_65 = arith.constant dense<0.000000e+00> : vector<16x32xf32>
    %145 = tpu.matmul %142, %144, %cst_65 {dimension_numbers = #tpu.dot_dimension_numbers<[1], [0], [0], [1], [0, 0, 1, 1], [], []>} : vector<16x96xf32>, vector<96x32xf32>, vector<16x32xf32> -> vector<16x32xf32>
    %146 = arith.addf %115, %145 : vector<16x32xf32>
    %c1 = arith.constant 1 : index
    %c0_66 = arith.constant 0 : index
    %c0_67 = arith.constant 0 : index
    %147 = vector.load %arg6[%c1, %c0_66, %c0_67] : memref<2x1x32xf32, #tpu.memory_space<vmem>>, vector<1x1x32xf32>
    %148 = vector.shape_cast %147 : vector<1x1x32xf32> to vector<1x32xf32>
    %149 = arith.mulf %146, %146 : vector<16x32xf32>
    %cst_68 = arith.constant dense<0.000000e+00> : vector<16xf32>
    %150 = vector.multi_reduction <add>, %149, %cst_68 [1] : vector<16x32xf32> to vector<16xf32>
    %151 = vector.shape_cast %150 : vector<16xf32> to vector<16x1xf32>
    %cst_69 = arith.constant 3.200000e+01 : f32
    %152 = vector.broadcast %cst_69 : f32 to vector<16x1xf32>
    %153 = arith.divf %151, %152 : vector<16x1xf32>
    %cst_70 = arith.constant 9.99999974E-6 : f32
    %154 = vector.broadcast %cst_70 : f32 to vector<16x1xf32>
    %155 = arith.addf %153, %154 : vector<16x1xf32>
    %156 = math.rsqrt %155 : vector<16x1xf32>
    %157 = vector.broadcast %156 : vector<16x1xf32> to vector<16x32xf32>
    %158 = arith.mulf %146, %157 : vector<16x32xf32>
    %159 = vector.broadcast %148 : vector<1x32xf32> to vector<16x32xf32>
    %160 = arith.mulf %158, %159 : vector<16x32xf32>
    %c1_71 = arith.constant 1 : index
    %c0_72 = arith.constant 0 : index
    %c0_73 = arith.constant 0 : index
    %161 = vector.load %arg7[%c1_71, %c0_72, %c0_73] : memref<2x32x96xf32, #tpu.memory_space<vmem>>, vector<1x32x96xf32>
    %162 = vector.shape_cast %161 : vector<1x32x96xf32> to vector<32x96xf32>
    %cst_74 = arith.constant dense<0.000000e+00> : vector<16x96xf32>
    %163 = tpu.matmul %160, %162, %cst_74 {dimension_numbers = #tpu.dot_dimension_numbers<[1], [0], [0], [1], [0, 0, 1, 1], [], []>} : vector<16x32xf32>, vector<32x96xf32>, vector<16x96xf32> -> vector<16x96xf32>
    %164 = vector.extract_strided_slice %163 {offsets = [0, 0], sizes = [16, 32], strides = [1, 1]} : vector<16x96xf32> to vector<16x32xf32>
    %165 = vector.extract_strided_slice %163 {offsets = [0, 32], sizes = [16, 32], strides = [1, 1]} : vector<16x96xf32> to vector<16x32xf32>
    %166 = vector.extract_strided_slice %163 {offsets = [0, 64], sizes = [16, 32], strides = [1, 1]} : vector<16x96xf32> to vector<16x32xf32>
    %167 = arith.mulf %164, %8 : vector<16x32xf32>
    %cst_75 = arith.constant dense<0.000000e+00> : vector<16x32xf32>
    %168 = tpu.matmul %164, %10, %cst_75 {dimension_numbers = #tpu.dot_dimension_numbers<[1], [0], [0], [1], [0, 0, 1, 1], [], []>} : vector<16x32xf32>, vector<32x32xf32>, vector<16x32xf32> -> vector<16x32xf32>
    %169 = arith.mulf %168, %9 : vector<16x32xf32>
    %170 = arith.addf %167, %169 : vector<16x32xf32>
    %171 = arith.mulf %165, %8 : vector<16x32xf32>
    %cst_76 = arith.constant dense<0.000000e+00> : vector<16x32xf32>
    %172 = tpu.matmul %165, %10, %cst_76 {dimension_numbers = #tpu.dot_dimension_numbers<[1], [0], [0], [1], [0, 0, 1, 1], [], []>} : vector<16x32xf32>, vector<32x32xf32>, vector<16x32xf32> -> vector<16x32xf32>
    %173 = arith.mulf %172, %9 : vector<16x32xf32>
    %174 = arith.addf %171, %173 : vector<16x32xf32>
    %c1_77 = arith.constant 1 : index
    %c0_78 = arith.constant 0 : index
    %c0_79 = arith.constant 0 : index
    %175 = vector.load %arg8[%c1_77, %c0_78, %c0_79] : memref<2x32x32xf32, #tpu.memory_space<vmem>>, vector<1x32x32xf32>
    %176 = vector.shape_cast %175 : vector<1x32x32xf32> to vector<32x32xf32>
    %cst_80 = arith.constant 0.000000e+00 : f32
    %177 = vector.broadcast %cst_80 : f32 to vector<16x32xf32>
    %178 = vector.extract_strided_slice %170 {offsets = [0, 0], sizes = [16, 8], strides = [1, 1]} : vector<16x32xf32> to vector<16x8xf32>
    %179 = vector.extract_strided_slice %174 {offsets = [0, 0], sizes = [16, 8], strides = [1, 1]} : vector<16x32xf32> to vector<16x8xf32>
    %cst_81 = arith.constant dense<0.000000e+00> : vector<16x16xf32>
    %180 = tpu.matmul %178, %179, %cst_81 {dimension_numbers = #tpu.dot_dimension_numbers<[1], [1], [0], [0], [0, 0, 1, 0], [], []>} : vector<16x8xf32>, vector<16x8xf32>, vector<16x16xf32> -> vector<16x16xf32>
    %181 = arith.addf %180, %11 : vector<16x16xf32>
    %cst_82 = arith.constant dense<0xFF800000> : vector<16xf32>
    %182 = vector.multi_reduction <maximumf>, %181, %cst_82 [1] : vector<16x16xf32> to vector<16xf32>
    %183 = vector.shape_cast %182 : vector<16xf32> to vector<16x1xf32>
    %184 = vector.broadcast %183 : vector<16x1xf32> to vector<16x16xf32>
    %185 = arith.subf %181, %184 : vector<16x16xf32>
    %186 = math.exp %185 : vector<16x16xf32>
    %cst_83 = arith.constant dense<0.000000e+00> : vector<16xf32>
    %187 = vector.multi_reduction <add>, %186, %cst_83 [1] : vector<16x16xf32> to vector<16xf32>
    %188 = vector.shape_cast %187 : vector<16xf32> to vector<16x1xf32>
    %189 = vector.broadcast %188 : vector<16x1xf32> to vector<16x16xf32>
    %190 = arith.divf %186, %189 : vector<16x16xf32>
    %191 = vector.extract_strided_slice %166 {offsets = [0, 0], sizes = [16, 8], strides = [1, 1]} : vector<16x32xf32> to vector<16x8xf32>
    %cst_84 = arith.constant dense<0.000000e+00> : vector<16x8xf32>
    %192 = tpu.matmul %190, %191, %cst_84 {dimension_numbers = #tpu.dot_dimension_numbers<[1], [0], [0], [1], [0, 0, 1, 1], [], []>} : vector<16x16xf32>, vector<16x8xf32>, vector<16x8xf32> -> vector<16x8xf32>
    %193 = vector.extract_strided_slice %176 {offsets = [0, 0], sizes = [8, 32], strides = [1, 1]} : vector<32x32xf32> to vector<8x32xf32>
    %cst_85 = arith.constant dense<0.000000e+00> : vector<16x32xf32>
    %194 = tpu.matmul %192, %193, %cst_85 {dimension_numbers = #tpu.dot_dimension_numbers<[1], [0], [0], [1], [0, 0, 1, 1], [], []>} : vector<16x8xf32>, vector<8x32xf32>, vector<16x32xf32> -> vector<16x32xf32>
    %195 = arith.addf %177, %194 : vector<16x32xf32>
    %196 = vector.extract_strided_slice %170 {offsets = [0, 8], sizes = [16, 8], strides = [1, 1]} : vector<16x32xf32> to vector<16x8xf32>
    %197 = vector.extract_strided_slice %174 {offsets = [0, 8], sizes = [16, 8], strides = [1, 1]} : vector<16x32xf32> to vector<16x8xf32>
    %cst_86 = arith.constant dense<0.000000e+00> : vector<16x16xf32>
    %198 = tpu.matmul %196, %197, %cst_86 {dimension_numbers = #tpu.dot_dimension_numbers<[1], [1], [0], [0], [0, 0, 1, 0], [], []>} : vector<16x8xf32>, vector<16x8xf32>, vector<16x16xf32> -> vector<16x16xf32>
    %199 = arith.addf %198, %11 : vector<16x16xf32>
    %cst_87 = arith.constant dense<0xFF800000> : vector<16xf32>
    %200 = vector.multi_reduction <maximumf>, %199, %cst_87 [1] : vector<16x16xf32> to vector<16xf32>
    %201 = vector.shape_cast %200 : vector<16xf32> to vector<16x1xf32>
    %202 = vector.broadcast %201 : vector<16x1xf32> to vector<16x16xf32>
    %203 = arith.subf %199, %202 : vector<16x16xf32>
    %204 = math.exp %203 : vector<16x16xf32>
    %cst_88 = arith.constant dense<0.000000e+00> : vector<16xf32>
    %205 = vector.multi_reduction <add>, %204, %cst_88 [1] : vector<16x16xf32> to vector<16xf32>
    %206 = vector.shape_cast %205 : vector<16xf32> to vector<16x1xf32>
    %207 = vector.broadcast %206 : vector<16x1xf32> to vector<16x16xf32>
    %208 = arith.divf %204, %207 : vector<16x16xf32>
    %209 = vector.extract_strided_slice %166 {offsets = [0, 8], sizes = [16, 8], strides = [1, 1]} : vector<16x32xf32> to vector<16x8xf32>
    %cst_89 = arith.constant dense<0.000000e+00> : vector<16x8xf32>
    %210 = tpu.matmul %208, %209, %cst_89 {dimension_numbers = #tpu.dot_dimension_numbers<[1], [0], [0], [1], [0, 0, 1, 1], [], []>} : vector<16x16xf32>, vector<16x8xf32>, vector<16x8xf32> -> vector<16x8xf32>
    %211 = vector.extract_strided_slice %176 {offsets = [8, 0], sizes = [8, 32], strides = [1, 1]} : vector<32x32xf32> to vector<8x32xf32>
    %cst_90 = arith.constant dense<0.000000e+00> : vector<16x32xf32>
    %212 = tpu.matmul %210, %211, %cst_90 {dimension_numbers = #tpu.dot_dimension_numbers<[1], [0], [0], [1], [0, 0, 1, 1], [], []>} : vector<16x8xf32>, vector<8x32xf32>, vector<16x32xf32> -> vector<16x32xf32>
    %213 = arith.addf %195, %212 : vector<16x32xf32>
    %214 = vector.extract_strided_slice %170 {offsets = [0, 16], sizes = [16, 8], strides = [1, 1]} : vector<16x32xf32> to vector<16x8xf32>
    %215 = vector.extract_strided_slice %174 {offsets = [0, 16], sizes = [16, 8], strides = [1, 1]} : vector<16x32xf32> to vector<16x8xf32>
    %cst_91 = arith.constant dense<0.000000e+00> : vector<16x16xf32>
    %216 = tpu.matmul %214, %215, %cst_91 {dimension_numbers = #tpu.dot_dimension_numbers<[1], [1], [0], [0], [0, 0, 1, 0], [], []>} : vector<16x8xf32>, vector<16x8xf32>, vector<16x16xf32> -> vector<16x16xf32>
    %217 = arith.addf %216, %11 : vector<16x16xf32>
    %cst_92 = arith.constant dense<0xFF800000> : vector<16xf32>
    %218 = vector.multi_reduction <maximumf>, %217, %cst_92 [1] : vector<16x16xf32> to vector<16xf32>
    %219 = vector.shape_cast %218 : vector<16xf32> to vector<16x1xf32>
    %220 = vector.broadcast %219 : vector<16x1xf32> to vector<16x16xf32>
    %221 = arith.subf %217, %220 : vector<16x16xf32>
    %222 = math.exp %221 : vector<16x16xf32>
    %cst_93 = arith.constant dense<0.000000e+00> : vector<16xf32>
    %223 = vector.multi_reduction <add>, %222, %cst_93 [1] : vector<16x16xf32> to vector<16xf32>
    %224 = vector.shape_cast %223 : vector<16xf32> to vector<16x1xf32>
    %225 = vector.broadcast %224 : vector<16x1xf32> to vector<16x16xf32>
    %226 = arith.divf %222, %225 : vector<16x16xf32>
    %227 = vector.extract_strided_slice %166 {offsets = [0, 16], sizes = [16, 8], strides = [1, 1]} : vector<16x32xf32> to vector<16x8xf32>
    %cst_94 = arith.constant dense<0.000000e+00> : vector<16x8xf32>
    %228 = tpu.matmul %226, %227, %cst_94 {dimension_numbers = #tpu.dot_dimension_numbers<[1], [0], [0], [1], [0, 0, 1, 1], [], []>} : vector<16x16xf32>, vector<16x8xf32>, vector<16x8xf32> -> vector<16x8xf32>
    %229 = vector.extract_strided_slice %176 {offsets = [16, 0], sizes = [8, 32], strides = [1, 1]} : vector<32x32xf32> to vector<8x32xf32>
    %cst_95 = arith.constant dense<0.000000e+00> : vector<16x32xf32>
    %230 = tpu.matmul %228, %229, %cst_95 {dimension_numbers = #tpu.dot_dimension_numbers<[1], [0], [0], [1], [0, 0, 1, 1], [], []>} : vector<16x8xf32>, vector<8x32xf32>, vector<16x32xf32> -> vector<16x32xf32>
    %231 = arith.addf %213, %230 : vector<16x32xf32>
    %232 = vector.extract_strided_slice %170 {offsets = [0, 24], sizes = [16, 8], strides = [1, 1]} : vector<16x32xf32> to vector<16x8xf32>
    %233 = vector.extract_strided_slice %174 {offsets = [0, 24], sizes = [16, 8], strides = [1, 1]} : vector<16x32xf32> to vector<16x8xf32>
    %cst_96 = arith.constant dense<0.000000e+00> : vector<16x16xf32>
    %234 = tpu.matmul %232, %233, %cst_96 {dimension_numbers = #tpu.dot_dimension_numbers<[1], [1], [0], [0], [0, 0, 1, 0], [], []>} : vector<16x8xf32>, vector<16x8xf32>, vector<16x16xf32> -> vector<16x16xf32>
    %235 = arith.addf %234, %11 : vector<16x16xf32>
    %cst_97 = arith.constant dense<0xFF800000> : vector<16xf32>
    %236 = vector.multi_reduction <maximumf>, %235, %cst_97 [1] : vector<16x16xf32> to vector<16xf32>
    %237 = vector.shape_cast %236 : vector<16xf32> to vector<16x1xf32>
    %238 = vector.broadcast %237 : vector<16x1xf32> to vector<16x16xf32>
    %239 = arith.subf %235, %238 : vector<16x16xf32>
    %240 = math.exp %239 : vector<16x16xf32>
    %cst_98 = arith.constant dense<0.000000e+00> : vector<16xf32>
    %241 = vector.multi_reduction <add>, %240, %cst_98 [1] : vector<16x16xf32> to vector<16xf32>
    %242 = vector.shape_cast %241 : vector<16xf32> to vector<16x1xf32>
    %243 = vector.broadcast %242 : vector<16x1xf32> to vector<16x16xf32>
    %244 = arith.divf %240, %243 : vector<16x16xf32>
    %245 = vector.extract_strided_slice %166 {offsets = [0, 24], sizes = [16, 8], strides = [1, 1]} : vector<16x32xf32> to vector<16x8xf32>
    %cst_99 = arith.constant dense<0.000000e+00> : vector<16x8xf32>
    %246 = tpu.matmul %244, %245, %cst_99 {dimension_numbers = #tpu.dot_dimension_numbers<[1], [0], [0], [1], [0, 0, 1, 1], [], []>} : vector<16x16xf32>, vector<16x8xf32>, vector<16x8xf32> -> vector<16x8xf32>
    %247 = vector.extract_strided_slice %176 {offsets = [24, 0], sizes = [8, 32], strides = [1, 1]} : vector<32x32xf32> to vector<8x32xf32>
    %cst_100 = arith.constant dense<0.000000e+00> : vector<16x32xf32>
    %248 = tpu.matmul %246, %247, %cst_100 {dimension_numbers = #tpu.dot_dimension_numbers<[1], [0], [0], [1], [0, 0, 1, 1], [], []>} : vector<16x8xf32>, vector<8x32xf32>, vector<16x32xf32> -> vector<16x32xf32>
    %249 = arith.addf %231, %248 : vector<16x32xf32>
    %250 = arith.addf %146, %249 : vector<16x32xf32>
    %c1_101 = arith.constant 1 : index
    %c0_102 = arith.constant 0 : index
    %c0_103 = arith.constant 0 : index
    %251 = vector.load %arg9[%c1_101, %c0_102, %c0_103] : memref<2x1x32xf32, #tpu.memory_space<vmem>>, vector<1x1x32xf32>
    %252 = vector.shape_cast %251 : vector<1x1x32xf32> to vector<1x32xf32>
    %253 = arith.mulf %250, %250 : vector<16x32xf32>
    %cst_104 = arith.constant dense<0.000000e+00> : vector<16xf32>
    %254 = vector.multi_reduction <add>, %253, %cst_104 [1] : vector<16x32xf32> to vector<16xf32>
    %255 = vector.shape_cast %254 : vector<16xf32> to vector<16x1xf32>
    %cst_105 = arith.constant 3.200000e+01 : f32
    %256 = vector.broadcast %cst_105 : f32 to vector<16x1xf32>
    %257 = arith.divf %255, %256 : vector<16x1xf32>
    %cst_106 = arith.constant 9.99999974E-6 : f32
    %258 = vector.broadcast %cst_106 : f32 to vector<16x1xf32>
    %259 = arith.addf %257, %258 : vector<16x1xf32>
    %260 = math.rsqrt %259 : vector<16x1xf32>
    %261 = vector.broadcast %260 : vector<16x1xf32> to vector<16x32xf32>
    %262 = arith.mulf %250, %261 : vector<16x32xf32>
    %263 = vector.broadcast %252 : vector<1x32xf32> to vector<16x32xf32>
    %264 = arith.mulf %262, %263 : vector<16x32xf32>
    %c1_107 = arith.constant 1 : index
    %c0_108 = arith.constant 0 : index
    %c0_109 = arith.constant 0 : index
    %265 = vector.load %arg10[%c1_107, %c0_108, %c0_109] : memref<2x32x96xf32, #tpu.memory_space<vmem>>, vector<1x32x96xf32>
    %266 = vector.shape_cast %265 : vector<1x32x96xf32> to vector<32x96xf32>
    %cst_110 = arith.constant dense<0.000000e+00> : vector<16x96xf32>
    %267 = tpu.matmul %264, %266, %cst_110 {dimension_numbers = #tpu.dot_dimension_numbers<[1], [0], [0], [1], [0, 0, 1, 1], [], []>} : vector<16x32xf32>, vector<32x96xf32>, vector<16x96xf32> -> vector<16x96xf32>
    %c1_111 = arith.constant 1 : index
    %c0_112 = arith.constant 0 : index
    %c0_113 = arith.constant 0 : index
    %268 = vector.load %arg11[%c1_111, %c0_112, %c0_113] : memref<2x32x96xf32, #tpu.memory_space<vmem>>, vector<1x32x96xf32>
    %269 = vector.shape_cast %268 : vector<1x32x96xf32> to vector<32x96xf32>
    %cst_114 = arith.constant dense<0.000000e+00> : vector<16x96xf32>
    %270 = tpu.matmul %264, %269, %cst_114 {dimension_numbers = #tpu.dot_dimension_numbers<[1], [0], [0], [1], [0, 0, 1, 1], [], []>} : vector<16x32xf32>, vector<32x96xf32>, vector<16x96xf32> -> vector<16x96xf32>
    %271 = arith.negf %267 : vector<16x96xf32>
    %272 = math.exp %271 : vector<16x96xf32>
    %cst_115 = arith.constant 1.000000e+00 : f32
    %273 = vector.broadcast %cst_115 : f32 to vector<16x96xf32>
    %274 = arith.addf %273, %272 : vector<16x96xf32>
    %275 = arith.divf %273, %274 : vector<16x96xf32>
    %276 = arith.mulf %267, %275 : vector<16x96xf32>
    %277 = arith.mulf %276, %270 : vector<16x96xf32>
    %c1_116 = arith.constant 1 : index
    %c0_117 = arith.constant 0 : index
    %c0_118 = arith.constant 0 : index
    %278 = vector.load %arg12[%c1_116, %c0_117, %c0_118] : memref<2x96x32xf32, #tpu.memory_space<vmem>>, vector<1x96x32xf32>
    %279 = vector.shape_cast %278 : vector<1x96x32xf32> to vector<96x32xf32>
    %cst_119 = arith.constant dense<0.000000e+00> : vector<16x32xf32>
    %280 = tpu.matmul %277, %279, %cst_119 {dimension_numbers = #tpu.dot_dimension_numbers<[1], [0], [0], [1], [0, 0, 1, 1], [], []>} : vector<16x96xf32>, vector<96x32xf32>, vector<16x32xf32> -> vector<16x32xf32>
    %281 = arith.addf %250, %280 : vector<16x32xf32>
    %c0_120 = arith.constant 0 : index
    %c0_121 = arith.constant 0 : index
    %282 = vector.load %arg13[%c0_120, %c0_121] : memref<1x32xf32, #tpu.memory_space<vmem>>, vector<1x32xf32>
    %283 = arith.mulf %281, %281 : vector<16x32xf32>
    %cst_122 = arith.constant dense<0.000000e+00> : vector<16xf32>
    %284 = vector.multi_reduction <add>, %283, %cst_122 [1] : vector<16x32xf32> to vector<16xf32>
    %285 = vector.shape_cast %284 : vector<16xf32> to vector<16x1xf32>
    %cst_123 = arith.constant 3.200000e+01 : f32
    %286 = vector.broadcast %cst_123 : f32 to vector<16x1xf32>
    %287 = arith.divf %285, %286 : vector<16x1xf32>
    %cst_124 = arith.constant 9.99999974E-6 : f32
    %288 = vector.broadcast %cst_124 : f32 to vector<16x1xf32>
    %289 = arith.addf %287, %288 : vector<16x1xf32>
    %290 = math.rsqrt %289 : vector<16x1xf32>
    %291 = vector.broadcast %290 : vector<16x1xf32> to vector<16x32xf32>
    %292 = arith.mulf %281, %291 : vector<16x32xf32>
    %293 = vector.broadcast %282 : vector<1x32xf32> to vector<16x32xf32>
    %294 = arith.mulf %292, %293 : vector<16x32xf32>
    %c0_125 = arith.constant 0 : index
    %c0_126 = arith.constant 0 : index
    %295 = vector.load %arg14[%c0_125, %c0_126] : memref<32x128xf32, #tpu.memory_space<vmem>>, vector<32x128xf32>
    %cst_127 = arith.constant dense<0.000000e+00> : vector<16x128xf32>
    %296 = tpu.matmul %294, %295, %cst_127 {dimension_numbers = #tpu.dot_dimension_numbers<[1], [0], [0], [1], [0, 0, 1, 1], [], []>} : vector<16x32xf32>, vector<32x128xf32>, vector<16x128xf32> -> vector<16x128xf32>
    %c0_128 = arith.constant 0 : index
    %c0_129 = arith.constant 0 : index
    %297 = vector.load %arg15[%c0_128, %c0_129] : memref<16x128xf32, #tpu.memory_space<vmem>>, vector<16x128xf32>
    tpu.vector_store %arg15[%c0_128, %c0_129], %296 {strides = array<i32>} : memref<16x128xf32, #tpu.memory_space<vmem>>, vector<16x128xf32>,
    return
  }
}

</mosaic_0001>

<llo_original>
// kernel: tile.13
$region0: #{tile.13}
  #allocation0 [shape = 's32[1]{0}', space=sflag, size = 0x4, scoped, tag = 'scoped memory for tile.13']
  %s0 = inlined_call_operand.vmem [shape: f32[8,8], index: 0, kind: input, shape index: {}]
  %s1 = inlined_call_operand.vmem [shape: f32[2,8,4,8], index: 1, kind: output, shape index: {}]
  // Predicated region
  $region2: #{tile.13} parent=0 // pred_check
    _
  $region3: #{tile.13} parent=0 // pred_check_branch
    %3 = sbr.rel (0) target = $region5
  $region4: #{tile.13} parent=0 // pred_region
    _
  $region5: #{tile.13} parent=0 // pred_fallthru
    _
  %v4 = vld [vmem:[%s0] ss:$0 sm:$0xff]
  %5 = vst [vmem:[%s1] sm:$0xf] %v4
  %s6 = scalar_lea.vmem %s1, 32
  %7 = vst [vmem:[%s6] sm:$0xf] %v4
  %s8 = scalar_lea.vmem %s0, 1
  %v9 = vld [vmem:[%s8] ss:$0 sm:$0xff]
  %s10 = scalar_lea.vmem %s1, 4
  %11 = vst [vmem:[%s10] sm:$0xf] %v9
  %s12 = scalar_lea.vmem %s1, 36
  %13 = vst [vmem:[%s12] sm:$0xf] %v9
  %s14 = scalar_lea.vmem %s0, 2
  %v15 = vld [vmem:[%s14] ss:$0 sm:$0xff]
  %s16 = scalar_lea.vmem %s1, 8
  %17 = vst [vmem:[%s16] sm:$0xf] %v15
  %s18 = scalar_lea.vmem %s1, 40
  %19 = vst [vmem:[%s18] sm:$0xf] %v15
  %s20 = scalar_lea.vmem %s0, 3
  %v21 = vld [vmem:[%s20] ss:$0 sm:$0xff]
  %s22 = scalar_lea.vmem %s1, 12
  %23 = vst [vmem:[%s22] sm:$0xf] %v21
  %s24 = scalar_lea.vmem %s1, 44
  %25 = vst [vmem:[%s24] sm:$0xf] %v21
  %s26 = scalar_lea.vmem %s0, 4
  %v27 = vld [vmem:[%s26] ss:$0 sm:$0xff]
  %s28 = scalar_lea.vmem %s1, 16
  %29 = vst [vmem:[%s28] sm:$0xf] %v27
  %s30 = scalar_lea.vmem %s1, 48
  %31 = vst [vmem:[%s30] sm:$0xf] %v27
  %s32 = scalar_lea.vmem %s0, 5
  %v33 = vld [vmem:[%s32] ss:$0 sm:$0xff]
  %s34 = scalar_lea.vmem %s1, 20
  %35 = vst [vmem:[%s34] sm:$0xf] %v33
  %s36 = scalar_lea.vmem %s1, 52
  %37 = vst [vmem:[%s36] sm:$0xf] %v33
  %s38 = scalar_lea.vmem %s0, 6
  %v39 = vld [vmem:[%s38] ss:$0 sm:$0xff]
  %s40 = scalar_lea.vmem %s1, 24
  %41 = vst [vmem:[%s40] sm:$0xf] %v39
  %s42 = scalar_lea.vmem %s1, 56
  %43 = vst [vmem:[%s42] sm:$0xf] %v39
  %s44 = scalar_lea.vmem %s0, 7
  %v45 = vld [vmem:[%s44] ss:$0 sm:$0xff]
  %s46 = scalar_lea.vmem %s1, 28
  %47 = vst [vmem:[%s46] sm:$0xf] %v45
  %s48 = scalar_lea.vmem %s1, 60
  %49 = vst [vmem:[%s48] sm:$0xf] %v45

// kernel: tile.14
$region0: #{tile.14}
  %s0 = inlined_call_operand.vmem [shape: f32[2,8,4,8], index: 0, kind: input, shape index: {}]
  %s1 = inlined_call_operand.vmem [shape: f32[16,32], index: 1, kind: output, shape index: {}]
  $region1: #{tile.14} parent=0
    #allocation0 [shape = 'u8[65536]{0}', space=vmem, size = 0x10000, scoped, tag = 'scoped mem for input reshape']
    %s3 = sshllo.u32 0, 4
    %s4 = smul.addr 4, 15
    %s5 = scalar_lea.vmem %s0, %s4
    %v6 = vld [vmem:[%s5] sm:%s3]
    %s7 = scalar_lea.vmem [#allocation0], 120
    %8 = vst [vmem:[%s7] sm:%s3] %v6
    %s9 = smul.addr 4, 14
    %s10 = scalar_lea.vmem %s0, %s9
    %v11 = vld [vmem:[%s10] sm:%s3]
    %s12 = scalar_lea.vmem [#allocation0], 112
    %13 = vst [vmem:[%s12] sm:%s3] %v11
    %s14 = smul.addr 4, 13
    %s15 = scalar_lea.vmem %s0, %s14
    %v16 = vld [vmem:[%s15] sm:%s3]
    %s17 = scalar_lea.vmem [#allocation0], 104
    %18 = vst [vmem:[%s17] sm:%s3] %v16
    %s19 = smul.addr 4, 12
    %s20 = scalar_lea.vmem %s0, %s19
    %v21 = vld [vmem:[%s20] sm:%s3]
    %s22 = scalar_lea.vmem [#allocation0], 96
    %23 = vst [vmem:[%s22] sm:%s3] %v21
    %s24 = smul.addr 4, 11
    %s25 = scalar_lea.vmem %s0, %s24
    %v26 = vld [vmem:[%s25] sm:%s3]
    %s27 = scalar_lea.vmem [#allocation0], 88
    %28 = vst [vmem:[%s27] sm:%s3] %v26
    %s29 = smul.addr 4, 10
    %s30 = scalar_lea.vmem %s0, %s29
    %v31 = vld [vmem:[%s30] sm:%s3]
    %s32 = scalar_lea.vmem [#allocation0], 80
    %33 = vst [vmem:[%s32] sm:%s3] %v31
    %s34 = smul.addr 4, 9
    %s35 = scalar_lea.vmem %s0, %s34
    %v36 = vld [vmem:[%s35] sm:%s3]
    %s37 = scalar_lea.vmem [#allocation0], 72
    %38 = vst [vmem:[%s37] sm:%s3] %v36
    %s39 = smul.addr 4, 8
    %s40 = scalar_lea.vmem %s0, %s39
    %v41 = vld [vmem:[%s40] sm:%s3]
    %s42 = scalar_lea.vmem [#allocation0], 64
    %43 = vst [vmem:[%s42] sm:%s3] %v41
    %s44 = smul.addr 4, 7
    %s45 = scalar_lea.vmem %s0, %s44
    %v46 = vld [vmem:[%s45] sm:%s3]
    %s47 = scalar_lea.vmem [#allocation0], 56
    %48 = vst [vmem:[%s47] sm:%s3] %v46
    %s49 = smul.addr 4, 6
    %s50 = scalar_lea.vmem %s0, %s49
    %v51 = vld [vmem:[%s50] sm:%s3]
    %s52 = scalar_lea.vmem [#allocation0], 48
    %53 = vst [vmem:[%s52] sm:%s3] %v51
    %s54 = smul.addr 4, 5
    %s55 = scalar_lea.vmem %s0, %s54
    %v56 = vld [vmem:[%s55] sm:%s3]
    %s57 = scalar_lea.vmem [#allocation0], 40
    %58 = vst [vmem:[%s57] sm:%s3] %v56
    %s59 = smul.addr 4, 4
    %s60 = scalar_lea.vmem %s0, %s59
    %v61 = vld [vmem:[%s60] sm:%s3]
    %s62 = scalar_lea.vmem [#allocation0], 32
    %63 = vst [vmem:[%s62] sm:%s3] %v61
    %s64 = smul.addr 4, 3
    %s65 = scalar_lea.vmem %s0, %s64
    %v66 = vld [vmem:[%s65] sm:%s3]
    %s67 = scalar_lea.vmem [#allocation0], 24
    %68 = vst [vmem:[%s67] sm:%s3] %v66
    %s69 = smul.addr 4, 2
    %s70 = scalar_lea.vmem %s0, %s69
    %v71 = vld [vmem:[%s70] sm:%s3]
    %s72 = scalar_lea.vmem [#allocation0], 16
    %73 = vst [vmem:[%s72] sm:%s3] %v71
    %s74 = scalar_lea.vmem %s0, 4
    %v75 = vld [vmem:[%s74] sm:%s3]
    %s76 = scalar_lea.vmem [#allocation0], 8
    %77 = vst [vmem:[%s76] sm:%s3] %v75
    %v78 = vld [vmem:[%s0] sm:%s3]
    %79 = vst [vmem:[#allocation0] sm:%s3] %v78
    %v80 = vld [vmem:[#allocation0] ss:$8 sm:$0xf]
    %v81 = vld [vmem:[#allocation0] ss:$8 sm:$0xf0]
    %vm82 = vcmask 1047556
    %v83 = vsel %vm82, %v81, %v80
    %vm84 = vcmask 64512
    %85 = vst.msk [vmem:[%s1] sm:$0xff] %vm84, %v83
    %s86 = scalar_lea.vmem [#allocation0], 64
    %v87 = vld [vmem:[%s86] ss:$8 sm:$0xf]
    %s88 = scalar_lea.vmem [#allocation0], 64
    %v89 = vld [vmem:[%s88] ss:$8 sm:$0xf0]
    %vm90 = vcmask 1047556
    %v91 = vsel %vm90, %v89, %v87
    %vm92 = vcmask 64512
    %s93 = scalar_lea.vmem %s1, 8
    %94 = vst.msk [vmem:[%s93] sm:$0xff] %vm92, %v91
    %s95 = scalar_lea.vmem [#allocation0], 3
    %v96 = vld [vmem:[%s95] ss:$8 sm:$0xf]
    %s97 = scalar_lea.vmem [#allocation0], 3
    %v98 = vld [vmem:[%s97] ss:$8 sm:$0xf0]
    %vm99 = vcmask 1047556
    %v100 = vsel %vm99, %v98, %v96
    %101 = vrot.lane.b32.xlu0 %v100, 24
    %v102 = vpop.permute.xlu0 %101
    %vm103 = vcmask 261312
    %104 = vst.msk [vmem:[%s1] sm:$0xff] %vm103, %v102
    %s105 = scalar_lea.vmem [#allocation0], 67
    %v106 = vld [vmem:[%s105] ss:$8 sm:$0xf]
    %s107 = scalar_lea.vmem [#allocation0], 67
    %v108 = vld [vmem:[%s107] ss:$8 sm:$0xf0]
    %vm109 = vcmask 1047556
    %v110 = vsel %vm109, %v108, %v106
    %111 = vrot.lane.b32.xlu0 %v110, 24
    %v112 = vpop.permute.xlu0 %111
    %vm113 = vcmask 261312
    %s114 = scalar_lea.vmem %s1, 8
    %115 = vst.msk [vmem:[%s114] sm:$0xff] %vm113, %v112
    %s116 = scalar_lea.vmem [#allocation0], 2
    %v117 = vld [vmem:[%s116] ss:$8 sm:$0xf]
    %s118 = scalar_lea.vmem [#allocation0], 2
    %v119 = vld [vmem:[%s118] ss:$8 sm:$0xf0]
    %vm120 = vcmask 1047556
    %v121 = vsel %vm120, %v119, %v117
    %122 = vrot.lane.b32.xlu0 %v121, 16
    %v123 = vpop.permute.xlu0 %122
    %vm124 = vcmask 195712
    %125 = vst.msk [vmem:[%s1] sm:$0xff] %vm124, %v123
    %s126 = scalar_lea.vmem [#allocation0], 66
    %v127 = vld [vmem:[%s126] ss:$8 sm:$0xf]
    %s128 = scalar_lea.vmem [#allocation0], 66
    %v129 = vld [vmem:[%s128] ss:$8 sm:$0xf0]
    %vm130 = vcmask 1047556
    %v131 = vsel %vm130, %v129, %v127
    %132 = vrot.lane.b32.xlu0 %v131, 16
    %v133 = vpop.permute.xlu0 %132
    %vm134 = vcmask 195712
    %s135 = scalar_lea.vmem %s1, 8
    %136 = vst.msk [vmem:[%s135] sm:$0xff] %vm134, %v133
    %s137 = scalar_lea.vmem [#allocation0], 1
    %v138 = vld [vmem:[%s137] ss:$8 sm:$0xf]
    %s139 = scalar_lea.vmem [#allocation0], 1
    %v140 = vld [vmem:[%s139] ss:$8 sm:$0xf0]
    %vm141 = vcmask 1047556
    %v142 = vsel %vm141, %v140, %v138
    %143 = vrot.lane.b32.xlu0 %v142, 8
    %v144 = vpop.permute.xlu0 %143
    %vm145 = vcmask 130112
    %146 = vst.msk [vmem:[%s1] sm:$0xff] %vm145, %v144
    %s147 = scalar_lea.vmem [#allocation0], 65
    %v148 = vld [vmem:[%s147] ss:$8 sm:$0xf]
    %s149 = scalar_lea.vmem [#allocation0], 65
    %v150 = vld [vmem:[%s149] ss:$8 sm:$0xf0]
    %vm151 = vcmask 1047556
    %v152 = vsel %vm151, %v150, %v148
    %153 = vrot.lane.b32.xlu0 %v152, 8
    %v154 = vpop.permute.xlu0 %153
    %vm155 = vcmask 130112
    %s156 = scalar_lea.vmem %s1, 8
    %157 = vst.msk [vmem:[%s156] sm:$0xff] %vm155, %v154

// kernel: gpt_forward.1
$region0: #{gpt_forward.1}
  #allocation0 [shape = 'u32[]', space=smem, size = 0x4, offset = 0x4, fixed_abs, tag = 'smem constant byte address 0x4 - core index']
  #allocation1 [shape = 'u32[144,128]{1,0:T(1,128)}', space=vmem, size = 0x12000, scoped, tag = 'internal scratch']
  %s0 = inlined_call_operand.vmem [shape: s32[16,1], index: 0, kind: input, shape index: {}]
  %s1 = inlined_call_operand.vmem [shape: f32[40,32], index: 1, kind: input, shape index: {}]
  %s2 = inlined_call_operand.vmem [shape: f32[16,32], index: 2, kind: input, shape index: {}]
  %s3 = inlined_call_operand.vmem [shape: f32[16,32], index: 3, kind: input, shape index: {}]
  %s4 = inlined_call_operand.vmem [shape: f32[32,32], index: 4, kind: input, shape index: {}]
  %s5 = inlined_call_operand.vmem [shape: f32[16,16], index: 5, kind: input, shape index: {}]
  %s6 = inlined_call_operand.vmem [shape: f32[2,1,32], index: 6, kind: input, shape index: {}]
  %s7 = inlined_call_operand.vmem [shape: f32[2,32,96], index: 7, kind: input, shape index: {}]
  %s8 = inlined_call_operand.vmem [shape: f32[2,32,32], index: 8, kind: input, shape index: {}]
  %s9 = inlined_call_operand.vmem [shape: f32[2,1,32], index: 9, kind: input, shape index: {}]
  %s10 = inlined_call_operand.vmem [shape: f32[2,32,96], index: 10, kind: input, shape index: {}]
  %s11 = inlined_call_operand.vmem [shape: f32[2,32,96], index: 11, kind: input, shape index: {}]
  %s12 = inlined_call_operand.vmem [shape: f32[2,96,32], index: 12, kind: input, shape index: {}]
  %s13 = inlined_call_operand.vmem [shape: f32[1,32], index: 13, kind: input, shape index: {}]
  %s14 = inlined_call_operand.vmem [shape: f32[32,128], index: 14, kind: input, shape index: {}]
  %s15 = inlined_call_operand.vmem [shape: f32[16,128], index: 15, kind: output, shape index: {}]
  %s16 = sld [smem:[#allocation0]]
  $region70: #{gpt_forward.1} parent=0
    _
  %s18 = ssub.s32 1, %s16
  %s19 = scalar_select 0, %s18, %s16
  // Predicated region
  $region2: #{gpt_forward.1} parent=0 // pred_check
    _
  $region3: #{gpt_forward.1} parent=0 // pred_check_branch
    %21 = sbr.rel (0) target = $region5
  $region4: #{gpt_forward.1} parent=0 // pred_region
    _
  $region5: #{gpt_forward.1} parent=0 // pred_fallthru
    _
  // Predicated region
  $region6: #{gpt_forward.1} parent=0 // pred_check
    _
  $region7: #{gpt_forward.1} parent=0 // pred_check_branch
    %23 = sbr.rel (0) target = $region9
  $region8: #{gpt_forward.1} parent=0 // pred_region
    _
  $region9: #{gpt_forward.1} parent=0 // pred_fallthru
    _
  // Predicated region
  $region10: #{gpt_forward.1} parent=0 // pred_check
    _
  $region11: #{gpt_forward.1} parent=0 // pred_check_branch
    %25 = sbr.rel (0) target = $region13
  $region12: #{gpt_forward.1} parent=0 // pred_region
    _
  $region13: #{gpt_forward.1} parent=0 // pred_fallthru
    _
  // Predicated region
  $region14: #{gpt_forward.1} parent=0 // pred_check
    _
  $region15: #{gpt_forward.1} parent=0 // pred_check_branch
    %27 = sbr.rel (0) target = $region17
  $region16: #{gpt_forward.1} parent=0 // pred_region
    _
  $region17: #{gpt_forward.1} parent=0 // pred_fallthru
    _
  // Predicated region
  $region18: #{gpt_forward.1} parent=0 // pred_check
    _
  $region19: #{gpt_forward.1} parent=0 // pred_check_branch
    %29 = sbr.rel (0) target = $region21
  $region20: #{gpt_forward.1} parent=0 // pred_region
    _
  $region21: #{gpt_forward.1} parent=0 // pred_fallthru
    _
  // Predicated region
  $region22: #{gpt_forward.1} parent=0 // pred_check
    _
  $region23: #{gpt_forward.1} parent=0 // pred_check_branch
    %31 = sbr.rel (0) target = $region25
  $region24: #{gpt_forward.1} parent=0 // pred_region
    _
  $region25: #{gpt_forward.1} parent=0 // pred_fallthru
    _
  // Predicated region
  $region26: #{gpt_forward.1} parent=0 // pred_check
    _
  $region27: #{gpt_forward.1} parent=0 // pred_check_branch
    %33 = sbr.rel (0) target = $region29
  $region28: #{gpt_forward.1} parent=0 // pred_region
    _
  $region29: #{gpt_forward.1} parent=0 // pred_fallthru
    _
  // Predicated region
  $region30: #{gpt_forward.1} parent=0 // pred_check
    _
  $region31: #{gpt_forward.1} parent=0 // pred_check_branch
    %35 = sbr.rel (0) target = $region33
  $region32: #{gpt_forward.1} parent=0 // pred_region
    _
  $region33: #{gpt_forward.1} parent=0 // pred_fallthru
    _
  // Predicated region
  $region34: #{gpt_forward.1} parent=0 // pred_check
    _
  $region35: #{gpt_forward.1} parent=0 // pred_check_branch
    %37 = sbr.rel (0) target = $region37
  $region36: #{gpt_forward.1} parent=0 // pred_region
    _
  $region37: #{gpt_forward.1} parent=0 // pred_fallthru
    _
  // Predicated region
  $region38: #{gpt_forward.1} parent=0 // pred_check
    _
  $region39: #{gpt_forward.1} parent=0 // pred_check_branch
    %39 = sbr.rel (0) target = $region41
  $region40: #{gpt_forward.1} parent=0 // pred_region
    _
  $region41: #{gpt_forward.1} parent=0 // pred_fallthru
    _
  // Predicated region
  $region42: #{gpt_forward.1} parent=0 // pred_check
    _
  $region43: #{gpt_forward.1} parent=0 // pred_check_branch
    %41 = sbr.rel (0) target = $region45
  $region44: #{gpt_forward.1} parent=0 // pred_region
    _
  $region45: #{gpt_forward.1} parent=0 // pred_fallthru
    _
  // Predicated region
  $region46: #{gpt_forward.1} parent=0 // pred_check
    _
  $region47: #{gpt_forward.1} parent=0 // pred_check_branch
    %43 = sbr.rel (0) target = $region49
  $region48: #{gpt_forward.1} parent=0 // pred_region
    _
  $region49: #{gpt_forward.1} parent=0 // pred_fallthru
    _
  // Predicated region
  $region50: #{gpt_forward.1} parent=0 // pred_check
    _
  $region51: #{gpt_forward.1} parent=0 // pred_check_branch
    %45 = sbr.rel (0) target = $region53
  $region52: #{gpt_forward.1} parent=0 // pred_region
    _
  $region53: #{gpt_forward.1} parent=0 // pred_fallthru
    _
  // Predicated region
  $region54: #{gpt_forward.1} parent=0 // pred_check
    _
  $region55: #{gpt_forward.1} parent=0 // pred_check_branch
    %47 = sbr.rel (0) target = $region57
  $region56: #{gpt_forward.1} parent=0 // pred_region
    _
  $region57: #{gpt_forward.1} parent=0 // pred_fallthru
    _
  // Predicated region
  $region58: #{gpt_forward.1} parent=0 // pred_check
    _
  $region59: #{gpt_forward.1} parent=0 // pred_check_branch
    %49 = sbr.rel (0) target = $region61
  $region60: #{gpt_forward.1} parent=0 // pred_region
    _
  $region61: #{gpt_forward.1} parent=0 // pred_fallthru
    _
  %v50 = vld [vmem:[%s0] sm:$0xff]
  %v51 = vld [vmem:[%s0 + $0x8] sm:$0xff]
  %v52 = vlaneseq
  %v53 = vand.u32 %v52, 127
  %54 = vset.pattern.permute.xlu0 0
  %55 = vperm.xlu0 %54, %v50
  %v56 = vpop.permute.xlu0 %55
  %57 = vset.pattern.permute.xlu0 0
  %58 = vperm.xlu0 %57, %v51
  %v59 = vpop.permute.xlu0 %58
  %vm60 = vcmp.eq.s32.totalorder %v53, %v56
  %vm61 = vcmp.eq.s32.totalorder %v53, %v59
  %v62 = vsel %vm60, 1, 0
  %v63 = vsel %vm61, 1, 0
  %v64 = vcvt.s32.f32 %v62
  %v65 = vcvt.s32.f32 %v63
  %v66 = vld [vmem:[%s1] sm:$0xff]
  %v67 = vld [vmem:[%s1 + $0x8] sm:$0xff]
  %v68 = vld [vmem:[%s1 + $0x10] sm:$0xff]
  %v69 = vld [vmem:[%s1 + $0x18] sm:$0xff]
  %v70 = vld [vmem:[%s1 + $0x20] sm:$0xff]
  %vm71 = vcmask 326656
  %v73 = vsel %vm71, %v64, 0
  %v76 = vsel %vm71, %v65, 0
  %78 = vmatprep.subr.mxu0 0.0
  %79 = vmatpush1.msra.mxu0 %v66
  %80 = vmatprep.subr.mxu0 0.0
  %81 = vmatpush1.msra.mxu0 %v67
  %82 = vmatprep.subr.mxu0 0.0
  %83 = vmatpush1.msra.mxu0 %v68
  %84 = vmatprep.subr.mxu0 0.0
  %85 = vmatpush1.msra.mxu0 %v69
  %86 = vmatprep.subr.mxu0 0.0
  %87 = vmatpush1.msra.mxu0 %v70
  %88 = vmatprep.subr.mxu0 0.0
  %89 = vmatpush1.msra.mxu0 0.0
  %90 = vmatprep.subr.mxu0 0.0
  %91 = vmatpush1.msra.mxu0 0.0
  %92 = vmatprep.subr.mxu0 0.0
  %93 = vmatpush1.msra.mxu0 0.0
  %94 = vmatprep.subr.mxu0 0.0
  %95 = vmatpush1.msra.mxu0 0.0
  %96 = vmatprep.subr.mxu0 0.0
  %97 = vmatpush1.msra.mxu0 0.0
  %98 = vmatprep.subr.mxu0 0.0
  %99 = vmatpush1.msra.mxu0 0.0
  %100 = vmatprep.subr.mxu0 0.0
  %101 = vmatpush1.msra.mxu0 0.0
  %102 = vmatprep.subr.mxu0 0.0
  %103 = vmatpush1.msra.mxu0 0.0
  %104 = vmatprep.subr.mxu0 0.0
  %105 = vmatpush1.msra.mxu0 0.0
  %106 = vmatprep.subr.mxu0 0.0
  %107 = vmatpush1.msra.mxu0 0.0
  %108 = vmatprep.subr.mxu0 0.0
  %109 = vmatpush1.msra.mxu0 0.0
  %110 = vmatprep.subr.mxu0 0.0
  %111 = vmatpush1.msra.mxu0 0.0
  %112 = vmatprep.subr.mxu0 0.0
  %113 = vmatpush1.msra.mxu0 0.0
  %114 = vmatprep.subr.mxu0 0.0
  %115 = vmatpush1.msra.mxu0 0.0
  %116 = vmatprep.subr.mxu0 0.0
  %117 = vmatpush1.msra.mxu0 0.0
  %118 = vmatprep.subr.mxu0 0.0
  %119 = vmatpush1.msra.mxu0 0.0
  %120 = vmatprep.subr.mxu0 0.0
  %121 = vmatpush1.msra.mxu0 0.0
  %122 = vmatprep.subr.mxu0 0.0
  %123 = vmatpush1.msra.mxu0 0.0
  %124 = vmatprep.subr.mxu0 0.0
  %125 = vmatpush1.msra.mxu0 0.0
  %126 = vmatprep.subr.mxu0 0.0
  %127 = vmatpush1.msra.mxu0 0.0
  %128 = vmatprep.subr.mxu0 0.0
  %129 = vmatpush1.msra.mxu0 0.0
  %130 = vmatprep.subr.mxu0 0.0
  %131 = vmatpush1.msra.mxu0 0.0
  %132 = vmatprep.subr.mxu0 0.0
  %133 = vmatpush1.msra.mxu0 0.0
  %134 = vmatprep.subr.mxu0 0.0
  %135 = vmatpush1.msra.mxu0 0.0
  %136 = vmatprep.subr.mxu0 0.0
  %137 = vmatpush1.msra.mxu0 0.0
  %138 = vmatprep.subr.mxu0 0.0
  %139 = vmatpush1.msra.mxu0 0.0
  %140 = vmatprep.subr.mxu0 0.0
  %141 = vmatpush1.msra.mxu0 0.0
  %142 = vmatprep.mubr.f32.mxu0 0.0
  %143 = vmatmul.mubr.f32.gmra.mrb[0].mxu0 %v73
  %v144 = vpop.f32.mrb[0].mxu0
  %v145 = vadd.f32 0.0, %v144
  %v146 = vpop.f32.mrb[0].mxu0
  %147 = vmatprep.mubr.f32.mxu0 0.0
  %148 = vmatmul.mubr.f32.gmra.mrb[0].mxu0 %v76
  %v149 = vpop.f32.mrb[0].mxu0
  %v150 = vadd.f32 0.0, %v149
  %v151 = vpop.f32.mrb[0].mxu0
  %152 = vdwg.mxu0
  %v153 = vld [vmem:[%s2] sm:$0xff]
  %v154 = vld [vmem:[%s2 + $0x8] sm:$0xff]
  %v155 = vld [vmem:[%s3] sm:$0xff]
  %v156 = vld [vmem:[%s3 + $0x8] sm:$0xff]
  %v157 = vld [vmem:[%s4] sm:$0xff]
  %v158 = vld [vmem:[%s4 + $0x8] sm:$0xff]
  %v159 = vld [vmem:[%s4 + $0x10] sm:$0xff]
  %v160 = vld [vmem:[%s4 + $0x18] sm:$0xff]
  %v161 = vld [vmem:[%s5] sm:$0xff]
  %v162 = vld [vmem:[%s5 + $0x8] sm:$0xff]
  %v163 = vld [vmem:[%s6] sm:$0x1]
  %v164 = vmul.f32 %v145, %v145
  %v165 = vmul.f32 %v150, %v150
  %vm166 = vcmask 261120
  %v167 = vsel %vm166, %v164, 0.0
  %168 = vadd.xlane.f32.xlu0 %v167
  %v169 = vpop.xlane.xlu0 %168
  %v170 = vsel %vm166, %v165, 0.0
  %171 = vadd.xlane.f32.xlu0 %v170
  %v172 = vpop.xlane.xlu0 %171
  %v173 = vrcp.pop 32.0
  %v174 = vmul.f32 %v169, %v173
  %v175 = vmul.f32 %v172, %v173
  %v176 = vadd.f32 %v174, 1e-05
  %v177 = vadd.f32 %v175, 1e-05
  %v178 = vrsqrt.pop %v176
  %v179 = vrsqrt.pop %v177
  %v180 = vmul.f32 %v145, %v178
  %v181 = vmul.f32 %v150, %v179
  %v183 = vlaneseq
  %v184 = vshrl.u32 %v183, 7
  %v185 = vsub.s32 0, %v184
  %v186 = vrot.slane %v163, %v185
  %v188 = vmul.f32 %v180, %v186
  %v189 = vmul.f32 %v181, %v186
  %v190 = vld [vmem:[%s7] sm:$0xff]
  %v191 = vld [vmem:[%s7 + $0x8] sm:$0xff]
  %v192 = vld [vmem:[%s7 + $0x10] sm:$0xff]
  %v193 = vld [vmem:[%s7 + $0x18] sm:$0xff]
  %v195 = vsel %vm166, %v188, 0
  %v198 = vsel %vm166, %v189, 0
  %200 = vmatprep.subr.mxu0 0.0
  %201 = vmatpush1.msra.mxu0 %v190
  %202 = vmatprep.subr.mxu0 0.0
  %203 = vmatpush1.msra.mxu0 %v191
  %204 = vmatprep.subr.mxu0 0.0
  %205 = vmatpush1.msra.mxu0 %v192
  %206 = vmatprep.subr.mxu0 0.0
  %207 = vmatpush1.msra.mxu0 %v193
  %208 = vmatprep.subr.mxu0 0.0
  %209 = vmatpush1.msra.mxu0 0.0
  %210 = vmatprep.subr.mxu0 0.0
  %211 = vmatpush1.msra.mxu0 0.0
  %212 = vmatprep.subr.mxu0 0.0
  %213 = vmatpush1.msra.mxu0 0.0
  %214 = vmatprep.subr.mxu0 0.0
  %215 = vmatpush1.msra.mxu0 0.0
  %216 = vmatprep.subr.mxu0 0.0
  %217 = vmatpush1.msra.mxu0 0.0
  %218 = vmatprep.subr.mxu0 0.0
  %219 = vmatpush1.msra.mxu0 0.0
  %220 = vmatprep.subr.mxu0 0.0
  %221 = vmatpush1.msra.mxu0 0.0
  %222 = vmatprep.subr.mxu0 0.0
  %223 = vmatpush1.msra.mxu0 0.0
  %224 = vmatprep.subr.mxu0 0.0
  %225 = vmatpush1.msra.mxu0 0.0
  %226 = vmatprep.subr.mxu0 0.0
  %227 = vmatpush1.msra.mxu0 0.0
  %228 = vmatprep.subr.mxu0 0.0
  %229 = vmatpush1.msra.mxu0 0.0
  %230 = vmatprep.subr.mxu0 0.0
  %231 = vmatpush1.msra.mxu0 0.0
  %232 = vmatprep.subr.mxu0 0.0
  %233 = vmatpush1.msra.mxu0 0.0
  %234 = vmatprep.subr.mxu0 0.0
  %235 = vmatpush1.msra.mxu0 0.0
  %236 = vmatprep.subr.mxu0 0.0
  %237 = vmatpush1.msra.mxu0 0.0
  %238 = vmatprep.subr.mxu0 0.0
  %239 = vmatpush1.msra.mxu0 0.0
  %240 = vmatprep.subr.mxu0 0.0
  %241 = vmatpush1.msra.mxu0 0.0
  %242 = vmatprep.subr.mxu0 0.0
  %243 = vmatpush1.msra.mxu0 0.0
  %244 = vmatprep.subr.mxu0 0.0
  %245 = vmatpush1.msra.mxu0 0.0
  %246 = vmatprep.subr.mxu0 0.0
  %247 = vmatpush1.msra.mxu0 0.0
  %248 = vmatprep.subr.mxu0 0.0
  %249 = vmatpush1.msra.mxu0 0.0
  %250 = vmatprep.subr.mxu0 0.0
  %251 = vmatpush1.msra.mxu0 0.0
  %252 = vmatprep.subr.mxu0 0.0
  %253 = vmatpush1.msra.mxu0 0.0
  %254 = vmatprep.subr.mxu0 0.0
  %255 = vmatpush1.msra.mxu0 0.0
  %256 = vmatprep.subr.mxu0 0.0
  %257 = vmatpush1.msra.mxu0 0.0
  %258 = vmatprep.subr.mxu0 0.0
  %259 = vmatpush1.msra.mxu0 0.0
  %260 = vmatprep.subr.mxu0 0.0
  %261 = vmatpush1.msra.mxu0 0.0
  %262 = vmatprep.subr.mxu0 0.0
  %263 = vmatpush1.msra.mxu0 0.0
  %264 = vmatprep.mubr.f32.mxu0 0.0
  %265 = vmatmul.mubr.f32.gmra.mrb[0].mxu0 %v195
  %v266 = vpop.f32.mrb[0].mxu0
  %v267 = vadd.f32 0.0, %v266
  %v268 = vpop.f32.mrb[0].mxu0
  %269 = vmatprep.mubr.f32.mxu0 0.0
  %270 = vmatmul.mubr.f32.gmra.mrb[0].mxu0 %v198
  %v271 = vpop.f32.mrb[0].mxu0
  %v272 = vadd.f32 0.0, %v271
  %v273 = vpop.f32.mrb[0].mxu0
  %274 = vdwg.mxu0
  %v275 = vmul.f32 %v267, %v153
  %v276 = vmul.f32 %v272, %v154
  %v278 = vsel %vm166, %v267, 0
  %v281 = vsel %vm166, %v272, 0
  %283 = vmatprep.subr.mxu0 0.0
  %284 = vmatpush1.msra.mxu0 %v157
  %285 = vmatprep.subr.mxu0 0.0
  %286 = vmatpush1.msra.mxu0 %v158
  %287 = vmatprep.subr.mxu0 0.0
  %288 = vmatpush1.msra.mxu0 %v159
  %289 = vmatprep.subr.mxu0 0.0
  %290 = vmatpush1.msra.mxu0 %v160
  %291 = vmatprep.subr.mxu0 0.0
  %292 = vmatpush1.msra.mxu0 0.0
  %293 = vmatprep.subr.mxu0 0.0
  %294 = vmatpush1.msra.mxu0 0.0
  %295 = vmatprep.subr.mxu0 0.0
  %296 = vmatpush1.msra.mxu0 0.0
  %297 = vmatprep.subr.mxu0 0.0
  %298 = vmatpush1.msra.mxu0 0.0
  %299 = vmatprep.subr.mxu0 0.0
  %300 = vmatpush1.msra.mxu0 0.0
  %301 = vmatprep.subr.mxu0 0.0
  %302 = vmatpush1.msra.mxu0 0.0
  %303 = vmatprep.subr.mxu0 0.0
  %304 = vmatpush1.msra.mxu0 0.0
  %305 = vmatprep.subr.mxu0 0.0
  %306 = vmatpush1.msra.mxu0 0.0
  %307 = vmatprep.subr.mxu0 0.0
  %308 = vmatpush1.msra.mxu0 0.0
  %309 = vmatprep.subr.mxu0 0.0
  %310 = vmatpush1.msra.mxu0 0.0
  %311 = vmatprep.subr.mxu0 0.0
  %312 = vmatpush1.msra.mxu0 0.0
  %313 = vmatprep.subr.mxu0 0.0
  %314 = vmatpush1.msra.mxu0 0.0
  %315 = vmatprep.subr.mxu0 0.0
  %316 = vmatpush1.msra.mxu0 0.0
  %317 = vmatprep.subr.mxu0 0.0
  %318 = vmatpush1.msra.mxu0 0.0
  %319 = vmatprep.subr.mxu0 0.0
  %320 = vmatpush1.msra.mxu0 0.0
  %321 = vmatprep.subr.mxu0 0.0
  %322 = vmatpush1.msra.mxu0 0.0
  %323 = vmatprep.subr.mxu0 0.0
  %324 = vmatpush1.msra.mxu0 0.0
  %325 = vmatprep.subr.mxu0 0.0
  %326 = vmatpush1.msra.mxu0 0.0
  %327 = vmatprep.subr.mxu0 0.0
  %328 = vmatpush1.msra.mxu0 0.0
  %329 = vmatprep.subr.mxu0 0.0
  %330 = vmatpush1.msra.mxu0 0.0
  %331 = vmatprep.subr.mxu0 0.0
  %332 = vmatpush1.msra.mxu0 0.0
  %333 = vmatprep.subr.mxu0 0.0
  %334 = vmatpush1.msra.mxu0 0.0
  %335 = vmatprep.subr.mxu0 0.0
  %336 = vmatpush1.msra.mxu0 0.0
  %337 = vmatprep.subr.mxu0 0.0
  %338 = vmatpush1.msra.mxu0 0.0
  %339 = vmatprep.subr.mxu0 0.0
  %340 = vmatpush1.msra.mxu0 0.0
  %341 = vmatprep.subr.mxu0 0.0
  %342 = vmatpush1.msra.mxu0 0.0
  %343 = vmatprep.subr.mxu0 0.0
  %344 = vmatpush1.msra.mxu0 0.0
  %345 = vmatprep.subr.mxu0 0.0
  %346 = vmatpush1.msra.mxu0 0.0
  %347 = vmatprep.mubr.f32.mxu0 0.0
  %348 = vmatmul.mubr.f32.gmra.mrb[0].mxu0 %v278
  %v349 = vpop.f32.mrb[0].mxu0
  %v350 = vadd.f32 0.0, %v349
  %v351 = vpop.f32.mrb[0].mxu0
  %352 = vmatprep.mubr.f32.mxu0 0.0
  %353 = vmatmul.mubr.f32.gmra.mrb[0].mxu0 %v281
  %v354 = vpop.f32.mrb[0].mxu0
  %v355 = vadd.f32 0.0, %v354
  %v356 = vpop.f32.mrb[0].mxu0
  %357 = vdwg.mxu0
  %v358 = vmul.f32 %v350, %v155
  %v359 = vmul.f32 %v355, %v156
  %v360 = vadd.f32 %v275, %v358
  %v361 = vadd.f32 %v276, %v359
  %364 = vrot.lane.b32.xlu0 %v153, 32
  %v365 = vpop.permute.xlu0 %364
  %366 = vrot.lane.b32.xlu0 %v154, 32
  %v367 = vpop.permute.xlu0 %366
  %v370 = vmul.f32 %v267, %v365
  %v371 = vmul.f32 %v272, %v367
  %372 = vrot.lane.b32.xlu0 %v267, 96
  %v373 = vpop.permute.xlu0 %372
  %374 = vrot.lane.b32.xlu0 %v272, 96
  %v375 = vpop.permute.xlu0 %374
  %v376 = vsel %vm166, %v373, 0
  %v378 = vsel %vm166, %v375, 0
  %380 = vmatprep.subr.mxu0 0.0
  %381 = vmatpush1.msra.mxu0 %v157
  %382 = vmatprep.subr.mxu0 0.0
  %383 = vmatpush1.msra.mxu0 %v158
  %384 = vmatprep.subr.mxu0 0.0
  %385 = vmatpush1.msra.mxu0 %v159
  %386 = vmatprep.subr.mxu0 0.0
  %387 = vmatpush1.msra.mxu0 %v160
  %388 = vmatprep.subr.mxu0 0.0
  %389 = vmatpush1.msra.mxu0 0.0
  %390 = vmatprep.subr.mxu0 0.0
  %391 = vmatpush1.msra.mxu0 0.0
  %392 = vmatprep.subr.mxu0 0.0
  %393 = vmatpush1.msra.mxu0 0.0
  %394 = vmatprep.subr.mxu0 0.0
  %395 = vmatpush1.msra.mxu0 0.0
  %396 = vmatprep.subr.mxu0 0.0
  %397 = vmatpush1.msra.mxu0 0.0
  %398 = vmatprep.subr.mxu0 0.0
  %399 = vmatpush1.msra.mxu0 0.0
  %400 = vmatprep.subr.mxu0 0.0
  %401 = vmatpush1.msra.mxu0 0.0
  %402 = vmatprep.subr.mxu0 0.0
  %403 = vmatpush1.msra.mxu0 0.0
  %404 = vmatprep.subr.mxu0 0.0
  %405 = vmatpush1.msra.mxu0 0.0
  %406 = vmatprep.subr.mxu0 0.0
  %407 = vmatpush1.msra.mxu0 0.0
  %408 = vmatprep.subr.mxu0 0.0
  %409 = vmatpush1.msra.mxu0 0.0
  %410 = vmatprep.subr.mxu0 0.0
  %411 = vmatpush1.msra.mxu0 0.0
  %412 = vmatprep.subr.mxu0 0.0
  %413 = vmatpush1.msra.mxu0 0.0
  %414 = vmatprep.subr.mxu0 0.0
  %415 = vmatpush1.msra.mxu0 0.0
  %416 = vmatprep.subr.mxu0 0.0
  %417 = vmatpush1.msra.mxu0 0.0
  %418 = vmatprep.subr.mxu0 0.0
  %419 = vmatpush1.msra.mxu0 0.0
  %420 = vmatprep.subr.mxu0 0.0
  %421 = vmatpush1.msra.mxu0 0.0
  %422 = vmatprep.subr.mxu0 0.0
  %423 = vmatpush1.msra.mxu0 0.0
  %424 = vmatprep.subr.mxu0 0.0
  %425 = vmatpush1.msra.mxu0 0.0
  %426 = vmatprep.subr.mxu0 0.0
  %427 = vmatpush1.msra.mxu0 0.0
  %428 = vmatprep.subr.mxu0 0.0
  %429 = vmatpush1.msra.mxu0 0.0
  %430 = vmatprep.subr.mxu0 0.0
  %431 = vmatpush1.msra.mxu0 0.0
  %432 = vmatprep.subr.mxu0 0.0
  %433 = vmatpush1.msra.mxu0 0.0
  %434 = vmatprep.subr.mxu0 0.0
  %435 = vmatpush1.msra.mxu0 0.0
  %436 = vmatprep.subr.mxu0 0.0
  %437 = vmatpush1.msra.mxu0 0.0
  %438 = vmatprep.subr.mxu0 0.0
  %439 = vmatpush1.msra.mxu0 0.0
  %440 = vmatprep.subr.mxu0 0.0
  %441 = vmatpush1.msra.mxu0 0.0
  %442 = vmatprep.subr.mxu0 0.0
  %443 = vmatpush1.msra.mxu0 0.0
  %444 = vmatprep.mubr.f32.mxu0 0.0
  %445 = vmatmul.mubr.f32.gmra.mrb[0].mxu0 %v376
  %v446 = vpop.f32.mrb[0].mxu0
  %v447 = vadd.f32 0.0, %v446
  %v448 = vpop.f32.mrb[0].mxu0
  %449 = vmatprep.mubr.f32.mxu0 0.0
  %450 = vmatmul.mubr.f32.gmra.mrb[0].mxu0 %v378
  %v451 = vpop.f32.mrb[0].mxu0
  %v452 = vadd.f32 0.0, %v451
  %v453 = vpop.f32.mrb[0].mxu0
  %454 = vdwg.mxu0
  %v455 = vmul.f32 %v447, %v155
  %v456 = vmul.f32 %v452, %v156
  %459 = vrot.lane.b32.xlu0 %v455, 32
  %v460 = vpop.permute.xlu0 %459
  %461 = vrot.lane.b32.xlu0 %v456, 32
  %v462 = vpop.permute.xlu0 %461
  %v465 = vadd.f32 %v370, %v460
  %v466 = vadd.f32 %v371, %v462
  %v467 = vld [vmem:[%s8] sm:$0xff]
  %v468 = vld [vmem:[%s8 + $0x8] sm:$0xff]
  %v469 = vld [vmem:[%s8 + $0x10] sm:$0xff]
  %v470 = vld [vmem:[%s8 + $0x18] sm:$0xff]
  %473 = vrot.lane.b32.xlu0 %v465, 96
  %v474 = vpop.permute.xlu0 %473
  %475 = vrot.lane.b32.xlu0 %v466, 96
  %v476 = vpop.permute.xlu0 %475
  %vm477 = vcmask 64512
  %v479 = vsel %vm477, %v360, 0
  %v482 = vsel %vm477, %v361, 0
  %v484 = vsel %vm477, %v474, 0
  %v486 = vsel %vm477, %v476, 0
  %488 = vmatprep.subr.mxu0 0.0
  %489 = vmatpush1.xpose.msra.mxu0 %v484
  %490 = vmatprep.subr.mxu0 0.0
  %491 = vmatpush1.xpose.msra.mxu0 %v486
  %492 = vmatprep.subr.mxu0 0.0
  %493 = vmatpush1.xpose.msra.mxu0 0.0
  %494 = vmatprep.subr.mxu0 0.0
  %495 = vmatpush1.xpose.msra.mxu0 0.0
  %496 = vmatprep.subr.mxu0 0.0
  %497 = vmatpush1.xpose.msra.mxu0 0.0
  %498 = vmatprep.subr.mxu0 0.0
  %499 = vmatpush1.xpose.msra.mxu0 0.0
  %500 = vmatprep.subr.mxu0 0.0
  %501 = vmatpush1.xpose.msra.mxu0 0.0
  %502 = vmatprep.subr.mxu0 0.0
  %503 = vmatpush1.xpose.msra.mxu0 0.0
  %504 = vmatprep.subr.mxu0 0.0
  %505 = vmatpush1.xpose.msra.mxu0 0.0
  %506 = vmatprep.subr.mxu0 0.0
  %507 = vmatpush1.xpose.msra.mxu0 0.0
  %508 = vmatprep.subr.mxu0 0.0
  %509 = vmatpush1.xpose.msra.mxu0 0.0
  %510 = vmatprep.subr.mxu0 0.0
  %511 = vmatpush1.xpose.msra.mxu0 0.0
  %512 = vmatprep.subr.mxu0 0.0
  %513 = vmatpush1.xpose.msra.mxu0 0.0
  %514 = vmatprep.subr.mxu0 0.0
  %515 = vmatpush1.xpose.msra.mxu0 0.0
  %516 = vmatprep.subr.mxu0 0.0
  %517 = vmatpush1.xpose.msra.mxu0 0.0
  %518 = vmatprep.subr.mxu0 0.0
  %519 = vmatpush1.xpose.msra.mxu0 0.0
  %520 = vmatprep.subr.mxu0 0.0
  %521 = vmatpush1.xpose.msra.mxu0 0.0
  %522 = vmatprep.subr.mxu0 0.0
  %523 = vmatpush1.xpose.msra.mxu0 0.0
  %524 = vmatprep.subr.mxu0 0.0
  %525 = vmatpush1.xpose.msra.mxu0 0.0
  %526 = vmatprep.subr.mxu0 0.0
  %527 = vmatpush1.xpose.msra.mxu0 0.0
  %528 = vmatprep.subr.mxu0 0.0
  %529 = vmatpush1.xpose.msra.mxu0 0.0
  %530 = vmatprep.subr.mxu0 0.0
  %531 = vmatpush1.xpose.msra.mxu0 0.0
  %532 = vmatprep.subr.mxu0 0.0
  %533 = vmatpush1.xpose.msra.mxu0 0.0
  %534 = vmatprep.subr.mxu0 0.0
  %535 = vmatpush1.xpose.msra.mxu0 0.0
  %536 = vmatprep.subr.mxu0 0.0
  %537 = vmatpush1.xpose.msra.mxu0 0.0
  %538 = vmatprep.subr.mxu0 0.0
  %539 = vmatpush1.xpose.msra.mxu0 0.0
  %540 = vmatprep.subr.mxu0 0.0
  %541 = vmatpush1.xpose.msra.mxu0 0.0
  %542 = vmatprep.subr.mxu0 0.0
  %543 = vmatpush1.xpose.msra.mxu0 0.0
  %544 = vmatprep.subr.mxu0 0.0
  %545 = vmatpush1.xpose.msra.mxu0 0.0
  %546 = vmatprep.subr.mxu0 0.0
  %547 = vmatpush1.xpose.msra.mxu0 0.0
  %548 = vmatprep.subr.mxu0 0.0
  %549 = vmatpush1.xpose.msra.mxu0 0.0
  %550 = vmatprep.subr.mxu0 0.0
  %551 = vmatpush1.xpose.msra.mxu0 0.0
  %552 = vmatprep.mubr.f32.mxu0 0.0
  %553 = vmatmul.mubr.f32.gmra.mrb[0].mxu0 %v479
  %v554 = vpop.f32.mrb[0].mxu0
  %v555 = vadd.f32 %v161, %v554
  %v556 = vpop.f32.mrb[0].mxu0
  %557 = vmatprep.mubr.f32.mxu0 0.0
  %558 = vmatmul.mubr.f32.gmra.mrb[0].mxu0 %v482
  %v559 = vpop.f32.mrb[0].mxu0
  %v560 = vadd.f32 %v162, %v559
  %v561 = vpop.f32.mrb[0].mxu0
  %562 = vdwg.mxu0
  %vm563 = vcmask 130048
  %v564 = vsel %vm563, %v555, -inf
  %565 = vmax.xlane.f32.xlu0 %v564
  %v566 = vpop.xlane.xlu0 %565
  %v567 = vsel %vm563, %v560, -inf
  %568 = vmax.xlane.f32.xlu0 %v567
  %v569 = vpop.xlane.xlu0 %568
  %v570 = vsub.f32 %v555, %v566
  %v571 = vsub.f32 %v560, %v569
  %v572 = vmul.f32 %v570, 1.442695
  %v573 = vpow.pop %v572
  %v574 = vmul.f32 %v571, 1.442695
  %v575 = vpow.pop %v574
  %v576 = vsel %vm563, %v573, 0.0
  %577 = vadd.xlane.f32.xlu0 %v576
  %v578 = vpop.xlane.xlu0 %577
  %v579 = vsel %vm563, %v575, 0.0
  %580 = vadd.xlane.f32.xlu0 %v579
  %v581 = vpop.xlane.xlu0 %580
  %v582 = vrcp.pop %v578
  %v583 = vmul.f32 %v573, %v582
  %v584 = vrcp.pop %v581
  %v585 = vmul.f32 %v575, %v584
  %586 = vrot.lane.b32.xlu0 %v267, 64
  %v587 = vpop.permute.xlu0 %586
  %588 = vrot.lane.b32.xlu0 %v272, 64
  %v589 = vpop.permute.xlu0 %588
  %v593 = vsel %vm563, %v583, 0
  %v596 = vsel %vm563, %v585, 0
  %598 = vmatprep.subr.mxu0 0.0
  %599 = vmatpush1.msra.mxu0 %v587
  %600 = vmatprep.subr.mxu0 0.0
  %601 = vmatpush1.msra.mxu0 %v589
  %602 = vmatprep.subr.mxu0 0.0
  %603 = vmatpush1.msra.mxu0 0.0
  %604 = vmatprep.subr.mxu0 0.0
  %605 = vmatpush1.msra.mxu0 0.0
  %606 = vmatprep.subr.mxu0 0.0
  %607 = vmatpush1.msra.mxu0 0.0
  %608 = vmatprep.subr.mxu0 0.0
  %609 = vmatpush1.msra.mxu0 0.0
  %610 = vmatprep.subr.mxu0 0.0
  %611 = vmatpush1.msra.mxu0 0.0
  %612 = vmatprep.subr.mxu0 0.0
  %613 = vmatpush1.msra.mxu0 0.0
  %614 = vmatprep.subr.mxu0 0.0
  %615 = vmatpush1.msra.mxu0 0.0
  %616 = vmatprep.subr.mxu0 0.0
  %617 = vmatpush1.msra.mxu0 0.0
  %618 = vmatprep.subr.mxu0 0.0
  %619 = vmatpush1.msra.mxu0 0.0
  %620 = vmatprep.subr.mxu0 0.0
  %621 = vmatpush1.msra.mxu0 0.0
  %622 = vmatprep.subr.mxu0 0.0
  %623 = vmatpush1.msra.mxu0 0.0
  %624 = vmatprep.subr.mxu0 0.0
  %625 = vmatpush1.msra.mxu0 0.0
  %626 = vmatprep.subr.mxu0 0.0
  %627 = vmatpush1.msra.mxu0 0.0
  %628 = vmatprep.subr.mxu0 0.0
  %629 = vmatpush1.msra.mxu0 0.0
  %630 = vmatprep.subr.mxu0 0.0
  %631 = vmatpush1.msra.mxu0 0.0
  %632 = vmatprep.subr.mxu0 0.0
  %633 = vmatpush1.msra.mxu0 0.0
  %634 = vmatprep.subr.mxu0 0.0
  %635 = vmatpush1.msra.mxu0 0.0
  %636 = vmatprep.subr.mxu0 0.0
  %637 = vmatpush1.msra.mxu0 0.0
  %638 = vmatprep.subr.mxu0 0.0
  %639 = vmatpush1.msra.mxu0 0.0
  %640 = vmatprep.subr.mxu0 0.0
  %641 = vmatpush1.msra.mxu0 0.0
  %642 = vmatprep.subr.mxu0 0.0
  %643 = vmatpush1.msra.mxu0 0.0
  %644 = vmatprep.subr.mxu0 0.0
  %645 = vmatpush1.msra.mxu0 0.0
  %646 = vmatprep.subr.mxu0 0.0
  %647 = vmatpush1.msra.mxu0 0.0
  %648 = vmatprep.subr.mxu0 0.0
  %649 = vmatpush1.msra.mxu0 0.0
  %650 = vmatprep.subr.mxu0 0.0
  %651 = vmatpush1.msra.mxu0 0.0
  %652 = vmatprep.subr.mxu0 0.0
  %653 = vmatpush1.msra.mxu0 0.0
  %654 = vmatprep.subr.mxu0 0.0
  %655 = vmatpush1.msra.mxu0 0.0
  %656 = vmatprep.subr.mxu0 0.0
  %657 = vmatpush1.msra.mxu0 0.0
  %658 = vmatprep.subr.mxu0 0.0
  %659 = vmatpush1.msra.mxu0 0.0
  %660 = vmatprep.subr.mxu0 0.0
  %661 = vmatpush1.msra.mxu0 0.0
  %662 = vmatprep.mubr.f32.mxu0 0.0
  %663 = vmatmul.mubr.f32.gmra.mrb[0].mxu0 %v593
  %v664 = vpop.f32.mrb[0].mxu0
  %v665 = vadd.f32 0.0, %v664
  %v666 = vpop.f32.mrb[0].mxu0
  %667 = vmatprep.mubr.f32.mxu0 0.0
  %668 = vmatmul.mubr.f32.gmra.mrb[0].mxu0 %v596
  %v669 = vpop.f32.mrb[0].mxu0
  %v670 = vadd.f32 0.0, %v669
  %v671 = vpop.f32.mrb[0].mxu0
  %672 = vdwg.mxu0
  %673 = vrot.lane.b32.xlu0 %v360, 120
  %v674 = vpop.permute.xlu0 %673
  %675 = vrot.lane.b32.xlu0 %v361, 120
  %v676 = vpop.permute.xlu0 %675
  %677 = vrot.lane.b32.xlu0 %v465, 88
  %v678 = vpop.permute.xlu0 %677
  %679 = vrot.lane.b32.xlu0 %v466, 88
  %v680 = vpop.permute.xlu0 %679
  %v681 = vsel %vm477, %v674, 0
  %v683 = vsel %vm477, %v676, 0
  %v685 = vsel %vm477, %v678, 0
  %v687 = vsel %vm477, %v680, 0
  %689 = vmatprep.subr.mxu0 0.0
  %690 = vmatpush1.xpose.msra.mxu0 %v685
  %691 = vmatprep.subr.mxu0 0.0
  %692 = vmatpush1.xpose.msra.mxu0 %v687
  %693 = vmatprep.subr.mxu0 0.0
  %694 = vmatpush1.xpose.msra.mxu0 0.0
  %695 = vmatprep.subr.mxu0 0.0
  %696 = vmatpush1.xpose.msra.mxu0 0.0
  %697 = vmatprep.subr.mxu0 0.0
  %698 = vmatpush1.xpose.msra.mxu0 0.0
  %699 = vmatprep.subr.mxu0 0.0
  %700 = vmatpush1.xpose.msra.mxu0 0.0
  %701 = vmatprep.subr.mxu0 0.0
  %702 = vmatpush1.xpose.msra.mxu0 0.0
  %703 = vmatprep.subr.mxu0 0.0
  %704 = vmatpush1.xpose.msra.mxu0 0.0
  %705 = vmatprep.subr.mxu0 0.0
  %706 = vmatpush1.xpose.msra.mxu0 0.0
  %707 = vmatprep.subr.mxu0 0.0
  %708 = vmatpush1.xpose.msra.mxu0 0.0
  %709 = vmatprep.subr.mxu0 0.0
  %710 = vmatpush1.xpose.msra.mxu0 0.0
  %711 = vmatprep.subr.mxu0 0.0
  %712 = vmatpush1.xpose.msra.mxu0 0.0
  %713 = vmatprep.subr.mxu0 0.0
  %714 = vmatpush1.xpose.msra.mxu0 0.0
  %715 = vmatprep.subr.mxu0 0.0
  %716 = vmatpush1.xpose.msra.mxu0 0.0
  %717 = vmatprep.subr.mxu0 0.0
  %718 = vmatpush1.xpose.msra.mxu0 0.0
  %719 = vmatprep.subr.mxu0 0.0
  %720 = vmatpush1.xpose.msra.mxu0 0.0
  %721 = vmatprep.subr.mxu0 0.0
  %722 = vmatpush1.xpose.msra.mxu0 0.0
  %723 = vmatprep.subr.mxu0 0.0
  %724 = vmatpush1.xpose.msra.mxu0 0.0
  %725 = vmatprep.subr.mxu0 0.0
  %726 = vmatpush1.xpose.msra.mxu0 0.0
  %727 = vmatprep.subr.mxu0 0.0
  %728 = vmatpush1.xpose.msra.mxu0 0.0
  %729 = vmatprep.subr.mxu0 0.0
  %730 = vmatpush1.xpose.msra.mxu0 0.0
  %731 = vmatprep.subr.mxu0 0.0
  %732 = vmatpush1.xpose.msra.mxu0 0.0
  %733 = vmatprep.subr.mxu0 0.0
  %734 = vmatpush1.xpose.msra.mxu0 0.0
  %735 = vmatprep.subr.mxu0 0.0
  %736 = vmatpush1.xpose.msra.mxu0 0.0
  %737 = vmatprep.subr.mxu0 0.0
  %738 = vmatpush1.xpose.msra.mxu0 0.0
  %739 = vmatprep.subr.mxu0 0.0
  %740 = vmatpush1.xpose.msra.mxu0 0.0
  %741 = vmatprep.subr.mxu0 0.0
  %742 = vmatpush1.xpose.msra.mxu0 0.0
  %743 = vmatprep.subr.mxu0 0.0
  %744 = vmatpush1.xpose.msra.mxu0 0.0
  %745 = vmatprep.subr.mxu0 0.0
  %746 = vmatpush1.xpose.msra.mxu0 0.0
  %747 = vmatprep.subr.mxu0 0.0
  %748 = vmatpush1.xpose.msra.mxu0 0.0
  %749 = vmatprep.subr.mxu0 0.0
  %750 = vmatpush1.xpose.msra.mxu0 0.0
  %751 = vmatprep.subr.mxu0 0.0
  %752 = vmatpush1.xpose.msra.mxu0 0.0
  %753 = vmatprep.mubr.f32.mxu0 0.0
  %754 = vmatmul.mubr.f32.gmra.mrb[0].mxu0 %v681
  %v755 = vpop.f32.mrb[0].mxu0
  %v756 = vadd.f32 %v161, %v755
  %v757 = vpop.f32.mrb[0].mxu0
  %758 = vmatprep.mubr.f32.mxu0 0.0
  %759 = vmatmul.mubr.f32.gmra.mrb[0].mxu0 %v683
  %v760 = vpop.f32.mrb[0].mxu0
  %v761 = vadd.f32 %v162, %v760
  %v762 = vpop.f32.mrb[0].mxu0
  %763 = vdwg.mxu0
  %v764 = vsel %vm563, %v756, -inf
  %765 = vmax.xlane.f32.xlu0 %v764
  %v766 = vpop.xlane.xlu0 %765
  %v767 = vsel %vm563, %v761, -inf
  %768 = vmax.xlane.f32.xlu0 %v767
  %v769 = vpop.xlane.xlu0 %768
  %v770 = vsub.f32 %v756, %v766
  %v771 = vsub.f32 %v761, %v769
  %v772 = vmul.f32 %v770, 1.442695
  %v773 = vpow.pop %v772
  %v774 = vmul.f32 %v771, 1.442695
  %v775 = vpow.pop %v774
  %v776 = vsel %vm563, %v773, 0.0
  %777 = vadd.xlane.f32.xlu0 %v776
  %v778 = vpop.xlane.xlu0 %777
  %v779 = vsel %vm563, %v775, 0.0
  %780 = vadd.xlane.f32.xlu0 %v779
  %v781 = vpop.xlane.xlu0 %780
  %v782 = vrcp.pop %v778
  %v783 = vmul.f32 %v773, %v782
  %v784 = vrcp.pop %v781
  %v785 = vmul.f32 %v775, %v784
  %786 = vrot.lane.b32.xlu0 %v267, 56
  %v787 = vpop.permute.xlu0 %786
  %788 = vrot.lane.b32.xlu0 %v272, 56
  %v789 = vpop.permute.xlu0 %788
  %v793 = vsel %vm563, %v783, 0
  %v796 = vsel %vm563, %v785, 0
  %798 = vmatprep.subr.mxu0 0.0
  %799 = vmatpush1.msra.mxu0 %v787
  %800 = vmatprep.subr.mxu0 0.0
  %801 = vmatpush1.msra.mxu0 %v789
  %802 = vmatprep.subr.mxu0 0.0
  %803 = vmatpush1.msra.mxu0 0.0
  %804 = vmatprep.subr.mxu0 0.0
  %805 = vmatpush1.msra.mxu0 0.0
  %806 = vmatprep.subr.mxu0 0.0
  %807 = vmatpush1.msra.mxu0 0.0
  %808 = vmatprep.subr.mxu0 0.0
  %809 = vmatpush1.msra.mxu0 0.0
  %810 = vmatprep.subr.mxu0 0.0
  %811 = vmatpush1.msra.mxu0 0.0
  %812 = vmatprep.subr.mxu0 0.0
  %813 = vmatpush1.msra.mxu0 0.0
  %814 = vmatprep.subr.mxu0 0.0
  %815 = vmatpush1.msra.mxu0 0.0
  %816 = vmatprep.subr.mxu0 0.0
  %817 = vmatpush1.msra.mxu0 0.0
  %818 = vmatprep.subr.mxu0 0.0
  %819 = vmatpush1.msra.mxu0 0.0
  %820 = vmatprep.subr.mxu0 0.0
  %821 = vmatpush1.msra.mxu0 0.0
  %822 = vmatprep.subr.mxu0 0.0
  %823 = vmatpush1.msra.mxu0 0.0
  %824 = vmatprep.subr.mxu0 0.0
  %825 = vmatpush1.msra.mxu0 0.0
  %826 = vmatprep.subr.mxu0 0.0
  %827 = vmatpush1.msra.mxu0 0.0
  %828 = vmatprep.subr.mxu0 0.0
  %829 = vmatpush1.msra.mxu0 0.0
  %830 = vmatprep.subr.mxu0 0.0
  %831 = vmatpush1.msra.mxu0 0.0
  %832 = vmatprep.subr.mxu0 0.0
  %833 = vmatpush1.msra.mxu0 0.0
  %834 = vmatprep.subr.mxu0 0.0
  %835 = vmatpush1.msra.mxu0 0.0
  %836 = vmatprep.subr.mxu0 0.0
  %837 = vmatpush1.msra.mxu0 0.0
  %838 = vmatprep.subr.mxu0 0.0
  %839 = vmatpush1.msra.mxu0 0.0
  %840 = vmatprep.subr.mxu0 0.0
  %841 = vmatpush1.msra.mxu0 0.0
  %842 = vmatprep.subr.mxu0 0.0
  %843 = vmatpush1.msra.mxu0 0.0
  %844 = vmatprep.subr.mxu0 0.0
  %845 = vmatpush1.msra.mxu0 0.0
  %846 = vmatprep.subr.mxu0 0.0
  %847 = vmatpush1.msra.mxu0 0.0
  %848 = vmatprep.subr.mxu0 0.0
  %849 = vmatpush1.msra.mxu0 0.0
  %850 = vmatprep.subr.mxu0 0.0
  %851 = vmatpush1.msra.mxu0 0.0
  %852 = vmatprep.subr.mxu0 0.0
  %853 = vmatpush1.msra.mxu0 0.0
  %854 = vmatprep.subr.mxu0 0.0
  %855 = vmatpush1.msra.mxu0 0.0
  %856 = vmatprep.subr.mxu0 0.0
  %857 = vmatpush1.msra.mxu0 0.0
  %858 = vmatprep.subr.mxu0 0.0
  %859 = vmatpush1.msra.mxu0 0.0
  %860 = vmatprep.subr.mxu0 0.0
  %861 = vmatpush1.msra.mxu0 0.0
  %862 = vmatprep.mubr.f32.mxu0 0.0
  %863 = vmatmul.mubr.f32.gmra.mrb[0].mxu0 %v793
  %v864 = vpop.f32.mrb[0].mxu0
  %v865 = vadd.f32 0.0, %v864
  %v866 = vpop.f32.mrb[0].mxu0
  %867 = vmatprep.mubr.f32.mxu0 0.0
  %868 = vmatmul.mubr.f32.gmra.mrb[0].mxu0 %v796
  %v869 = vpop.f32.mrb[0].mxu0
  %v870 = vadd.f32 0.0, %v869
  %v871 = vpop.f32.mrb[0].mxu0
  %872 = vdwg.mxu0
  %v874 = vsel %vm477, %v865, 0
  %v877 = vsel %vm477, %v870, 0
  %879 = vmatprep.subr.mxu0 0.0
  %880 = vmatpush1.msra.mxu0 %v468
  %881 = vmatprep.subr.mxu0 0.0
  %882 = vmatpush1.msra.mxu0 0.0
  %883 = vmatprep.subr.mxu0 0.0
  %884 = vmatpush1.msra.mxu0 0.0
  %885 = vmatprep.subr.mxu0 0.0
  %886 = vmatpush1.msra.mxu0 0.0
  %887 = vmatprep.subr.mxu0 0.0
  %888 = vmatpush1.msra.mxu0 0.0
  %889 = vmatprep.subr.mxu0 0.0
  %890 = vmatpush1.msra.mxu0 0.0
  %891 = vmatprep.subr.mxu0 0.0
  %892 = vmatpush1.msra.mxu0 0.0
  %893 = vmatprep.subr.mxu0 0.0
  %894 = vmatpush1.msra.mxu0 0.0
  %895 = vmatprep.subr.mxu0 0.0
  %896 = vmatpush1.msra.mxu0 0.0
  %897 = vmatprep.subr.mxu0 0.0
  %898 = vmatpush1.msra.mxu0 0.0
  %899 = vmatprep.subr.mxu0 0.0
  %900 = vmatpush1.msra.mxu0 0.0
  %901 = vmatprep.subr.mxu0 0.0
  %902 = vmatpush1.msra.mxu0 0.0
  %903 = vmatprep.subr.mxu0 0.0
  %904 = vmatpush1.msra.mxu0 0.0
  %905 = vmatprep.subr.mxu0 0.0
  %906 = vmatpush1.msra.mxu0 0.0
  %907 = vmatprep.subr.mxu0 0.0
  %908 = vmatpush1.msra.mxu0 0.0
  %909 = vmatprep.subr.mxu0 0.0
  %910 = vmatpush1.msra.mxu0 0.0
  %911 = vmatprep.subr.mxu0 0.0
  %912 = vmatpush1.msra.mxu0 0.0
  %913 = vmatprep.subr.mxu0 0.0
  %914 = vmatpush1.msra.mxu0 0.0
  %915 = vmatprep.subr.mxu0 0.0
  %916 = vmatpush1.msra.mxu0 0.0
  %917 = vmatprep.subr.mxu0 0.0
  %918 = vmatpush1.msra.mxu0 0.0
  %919 = vmatprep.subr.mxu0 0.0
  %920 = vmatpush1.msra.mxu0 0.0
  %921 = vmatprep.subr.mxu0 0.0
  %922 = vmatpush1.msra.mxu0 0.0
  %923 = vmatprep.subr.mxu0 0.0
  %924 = vmatpush1.msra.mxu0 0.0
  %925 = vmatprep.subr.mxu0 0.0
  %926 = vmatpush1.msra.mxu0 0.0
  %927 = vmatprep.subr.mxu0 0.0
  %928 = vmatpush1.msra.mxu0 0.0
  %929 = vmatprep.subr.mxu0 0.0
  %930 = vmatpush1.msra.mxu0 0.0
  %931 = vmatprep.subr.mxu0 0.0
  %932 = vmatpush1.msra.mxu0 0.0
  %933 = vmatprep.subr.mxu0 0.0
  %934 = vmatpush1.msra.mxu0 0.0
  %935 = vmatprep.subr.mxu0 0.0
  %936 = vmatpush1.msra.mxu0 0.0
  %937 = vmatprep.subr.mxu0 0.0
  %938 = vmatpush1.msra.mxu0 0.0
  %939 = vmatprep.subr.mxu0 0.0
  %940 = vmatpush1.msra.mxu0 0.0
  %941 = vmatprep.subr.mxu0 0.0
  %942 = vmatpush1.msra.mxu0 0.0
  %943 = vmatprep.mubr.f32.mxu0 0.0
  %944 = vmatmul.mubr.f32.gmra.mrb[0].mxu0 %v874
  %v945 = vpop.f32.mrb[0].mxu0
  %v946 = vadd.f32 0.0, %v945
  %v947 = vpop.f32.mrb[0].mxu0
  %948 = vmatprep.mubr.f32.mxu0 0.0
  %949 = vmatmul.mubr.f32.gmra.mrb[0].mxu0 %v877
  %v950 = vpop.f32.mrb[0].mxu0
  %v951 = vadd.f32 0.0, %v950
  %v952 = vpop.f32.mrb[0].mxu0
  %953 = vdwg.mxu0
  %v955 = vsel %vm477, %v665, 0
  %v958 = vsel %vm477, %v670, 0
  %960 = vmatprep.subr.mxu0 0.0
  %961 = vmatpush1.msra.mxu0 %v467
  %962 = vmatprep.subr.mxu0 0.0
  %963 = vmatpush1.msra.mxu0 0.0
  %964 = vmatprep.subr.mxu0 0.0
  %965 = vmatpush1.msra.mxu0 0.0
  %966 = vmatprep.subr.mxu0 0.0
  %967 = vmatpush1.msra.mxu0 0.0
  %968 = vmatprep.subr.mxu0 0.0
  %969 = vmatpush1.msra.mxu0 0.0
  %970 = vmatprep.subr.mxu0 0.0
  %971 = vmatpush1.msra.mxu0 0.0
  %972 = vmatprep.subr.mxu0 0.0
  %973 = vmatpush1.msra.mxu0 0.0
  %974 = vmatprep.subr.mxu0 0.0
  %975 = vmatpush1.msra.mxu0 0.0
  %976 = vmatprep.subr.mxu0 0.0
  %977 = vmatpush1.msra.mxu0 0.0
  %978 = vmatprep.subr.mxu0 0.0
  %979 = vmatpush1.msra.mxu0 0.0
  %980 = vmatprep.subr.mxu0 0.0
  %981 = vmatpush1.msra.mxu0 0.0
  %982 = vmatprep.subr.mxu0 0.0
  %983 = vmatpush1.msra.mxu0 0.0
  %984 = vmatprep.subr.mxu0 0.0
  %985 = vmatpush1.msra.mxu0 0.0
  %986 = vmatprep.subr.mxu0 0.0
  %987 = vmatpush1.msra.mxu0 0.0
  %988 = vmatprep.subr.mxu0 0.0
  %989 = vmatpush1.msra.mxu0 0.0
  %990 = vmatprep.subr.mxu0 0.0
  %991 = vmatpush1.msra.mxu0 0.0
  %992 = vmatprep.subr.mxu0 0.0
  %993 = vmatpush1.msra.mxu0 0.0
  %994 = vmatprep.subr.mxu0 0.0
  %995 = vmatpush1.msra.mxu0 0.0
  %996 = vmatprep.subr.mxu0 0.0
  %997 = vmatpush1.msra.mxu0 0.0
  %998 = vmatprep.subr.mxu0 0.0
  %999 = vmatpush1.msra.mxu0 0.0
  %1000 = vmatprep.subr.mxu0 0.0
  %1001 = vmatpush1.msra.mxu0 0.0
  %1002 = vmatprep.subr.mxu0 0.0
  %1003 = vmatpush1.msra.mxu0 0.0
  %1004 = vmatprep.subr.mxu0 0.0
  %1005 = vmatpush1.msra.mxu0 0.0
  %1006 = vmatprep.subr.mxu0 0.0
  %1007 = vmatpush1.msra.mxu0 0.0
  %1008 = vmatprep.subr.mxu0 0.0
  %1009 = vmatpush1.msra.mxu0 0.0
  %1010 = vmatprep.subr.mxu0 0.0
  %1011 = vmatpush1.msra.mxu0 0.0
  %1012 = vmatprep.subr.mxu0 0.0
  %1013 = vmatpush1.msra.mxu0 0.0
  %1014 = vmatprep.subr.mxu0 0.0
  %1015 = vmatpush1.msra.mxu0 0.0
  %1016 = vmatprep.subr.mxu0 0.0
  %1017 = vmatpush1.msra.mxu0 0.0
  %1018 = vmatprep.subr.mxu0 0.0
  %1019 = vmatpush1.msra.mxu0 0.0
  %1020 = vmatprep.subr.mxu0 0.0
  %1021 = vmatpush1.msra.mxu0 0.0
  %1022 = vmatprep.subr.mxu0 0.0
  %1023 = vmatpush1.msra.mxu0 0.0
  %1024 = vmatprep.mubr.f32.mxu0 0.0
  %1025 = vmatmul.mubr.f32.gmra.mrb[0].mxu0 %v955
  %v1026 = vpop.f32.mrb[0].mxu0
  %v1027 = vadd.f32 %v946, %v1026
  %v1028 = vpop.f32.mrb[0].mxu0
  %1029 = vmatprep.mubr.f32.mxu0 0.0
  %1030 = vmatmul.mubr.f32.gmra.mrb[0].mxu0 %v958
  %v1031 = vpop.f32.mrb[0].mxu0
  %v1032 = vadd.f32 %v951, %v1031
  %v1033 = vpop.f32.mrb[0].mxu0
  %1034 = vdwg.mxu0
  %1035 = vrot.lane.b32.xlu0 %v360, 112
  %v1036 = vpop.permute.xlu0 %1035
  %1037 = vrot.lane.b32.xlu0 %v361, 112
  %v1038 = vpop.permute.xlu0 %1037
  %1039 = vrot.lane.b32.xlu0 %v465, 80
  %v1040 = vpop.permute.xlu0 %1039
  %1041 = vrot.lane.b32.xlu0 %v466, 80
  %v1042 = vpop.permute.xlu0 %1041
  %v1043 = vsel %vm477, %v1036, 0
  %v1045 = vsel %vm477, %v1038, 0
  %v1047 = vsel %vm477, %v1040, 0
  %v1049 = vsel %vm477, %v1042, 0
  %1051 = vmatprep.subr.mxu0 0.0
  %1052 = vmatpush1.xpose.msra.mxu0 %v1047
  %1053 = vmatprep.subr.mxu0 0.0
  %1054 = vmatpush1.xpose.msra.mxu0 %v1049
  %1055 = vmatprep.subr.mxu0 0.0
  %1056 = vmatpush1.xpose.msra.mxu0 0.0
  %1057 = vmatprep.subr.mxu0 0.0
  %1058 = vmatpush1.xpose.msra.mxu0 0.0
  %1059 = vmatprep.subr.mxu0 0.0
  %1060 = vmatpush1.xpose.msra.mxu0 0.0
  %1061 = vmatprep.subr.mxu0 0.0
  %1062 = vmatpush1.xpose.msra.mxu0 0.0
  %1063 = vmatprep.subr.mxu0 0.0
  %1064 = vmatpush1.xpose.msra.mxu0 0.0
  %1065 = vmatprep.subr.mxu0 0.0
  %1066 = vmatpush1.xpose.msra.mxu0 0.0
  %1067 = vmatprep.subr.mxu0 0.0
  %1068 = vmatpush1.xpose.msra.mxu0 0.0
  %1069 = vmatprep.subr.mxu0 0.0
  %1070 = vmatpush1.xpose.msra.mxu0 0.0
  %1071 = vmatprep.subr.mxu0 0.0
  %1072 = vmatpush1.xpose.msra.mxu0 0.0
  %1073 = vmatprep.subr.mxu0 0.0
  %1074 = vmatpush1.xpose.msra.mxu0 0.0
  %1075 = vmatprep.subr.mxu0 0.0
  %1076 = vmatpush1.xpose.msra.mxu0 0.0
  %1077 = vmatprep.subr.mxu0 0.0
  %1078 = vmatpush1.xpose.msra.mxu0 0.0
  %1079 = vmatprep.subr.mxu0 0.0
  %1080 = vmatpush1.xpose.msra.mxu0 0.0
  %1081 = vmatprep.subr.mxu0 0.0
  %1082 = vmatpush1.xpose.msra.mxu0 0.0
  %1083 = vmatprep.subr.mxu0 0.0
  %1084 = vmatpush1.xpose.msra.mxu0 0.0
  %1085 = vmatprep.subr.mxu0 0.0
  %1086 = vmatpush1.xpose.msra.mxu0 0.0
  %1087 = vmatprep.subr.mxu0 0.0
  %1088 = vmatpush1.xpose.msra.mxu0 0.0
  %1089 = vmatprep.subr.mxu0 0.0
  %1090 = vmatpush1.xpose.msra.mxu0 0.0
  %1091 = vmatprep.subr.mxu0 0.0
  %1092 = vmatpush1.xpose.msra.mxu0 0.0
  %1093 = vmatprep.subr.mxu0 0.0
  %1094 = vmatpush1.xpose.msra.mxu0 0.0
  %1095 = vmatprep.subr.mxu0 0.0
  %1096 = vmatpush1.xpose.msra.mxu0 0.0
  %1097 = vmatprep.subr.mxu0 0.0
  %1098 = vmatpush1.xpose.msra.mxu0 0.0
  %1099 = vmatprep.subr.mxu0 0.0
  %1100 = vmatpush1.xpose.msra.mxu0 0.0
  %1101 = vmatprep.subr.mxu0 0.0
  %1102 = vmatpush1.xpose.msra.mxu0 0.0
  %1103 = vmatprep.subr.mxu0 0.0
  %1104 = vmatpush1.xpose.msra.mxu0 0.0
  %1105 = vmatprep.subr.mxu0 0.0
  %1106 = vmatpush1.xpose.msra.mxu0 0.0
  %1107 = vmatprep.subr.mxu0 0.0
  %1108 = vmatpush1.xpose.msra.mxu0 0.0
  %1109 = vmatprep.subr.mxu0 0.0
  %1110 = vmatpush1.xpose.msra.mxu0 0.0
  %1111 = vmatprep.subr.mxu0 0.0
  %1112 = vmatpush1.xpose.msra.mxu0 0.0
  %1113 = vmatprep.subr.mxu0 0.0
  %1114 = vmatpush1.xpose.msra.mxu0 0.0
  %1115 = vmatprep.mubr.f32.mxu0 0.0
  %1116 = vmatmul.mubr.f32.gmra.mrb[0].mxu0 %v1043
  %v1117 = vpop.f32.mrb[0].mxu0
  %v1118 = vadd.f32 %v161, %v1117
  %v1119 = vpop.f32.mrb[0].mxu0
  %1120 = vmatprep.mubr.f32.mxu0 0.0
  %1121 = vmatmul.mubr.f32.gmra.mrb[0].mxu0 %v1045
  %v1122 = vpop.f32.mrb[0].mxu0
  %v1123 = vadd.f32 %v162, %v1122
  %v1124 = vpop.f32.mrb[0].mxu0
  %1125 = vdwg.mxu0
  %v1126 = vsel %vm563, %v1118, -inf
  %1127 = vmax.xlane.f32.xlu0 %v1126
  %v1128 = vpop.xlane.xlu0 %1127
  %v1129 = vsel %vm563, %v1123, -inf
  %1130 = vmax.xlane.f32.xlu0 %v1129
  %v1131 = vpop.xlane.xlu0 %1130
  %v1132 = vsub.f32 %v1118, %v1128
  %v1133 = vsub.f32 %v1123, %v1131
  %v1134 = vmul.f32 %v1132, 1.442695
  %v1135 = vpow.pop %v1134
  %v1136 = vmul.f32 %v1133, 1.442695
  %v1137 = vpow.pop %v1136
  %v1138 = vsel %vm563, %v1135, 0.0
  %1139 = vadd.xlane.f32.xlu0 %v1138
  %v1140 = vpop.xlane.xlu0 %1139
  %v1141 = vsel %vm563, %v1137, 0.0
  %1142 = vadd.xlane.f32.xlu0 %v1141
  %v1143 = vpop.xlane.xlu0 %1142
  %v1144 = vrcp.pop %v1140
  %v1145 = vmul.f32 %v1135, %v1144
  %v1146 = vrcp.pop %v1143
  %v1147 = vmul.f32 %v1137, %v1146
  %1148 = vrot.lane.b32.xlu0 %v267, 48
  %v1149 = vpop.permute.xlu0 %1148
  %1150 = vrot.lane.b32.xlu0 %v272, 48
  %v1151 = vpop.permute.xlu0 %1150
  %v1155 = vsel %vm563, %v1145, 0
  %v1158 = vsel %vm563, %v1147, 0
  %1160 = vmatprep.subr.mxu0 0.0
  %1161 = vmatpush1.msra.mxu0 %v1149
  %1162 = vmatprep.subr.mxu0 0.0
  %1163 = vmatpush1.msra.mxu0 %v1151
  %1164 = vmatprep.subr.mxu0 0.0
  %1165 = vmatpush1.msra.mxu0 0.0
  %1166 = vmatprep.subr.mxu0 0.0
  %1167 = vmatpush1.msra.mxu0 0.0
  %1168 = vmatprep.subr.mxu0 0.0
  %1169 = vmatpush1.msra.mxu0 0.0
  %1170 = vmatprep.subr.mxu0 0.0
  %1171 = vmatpush1.msra.mxu0 0.0
  %1172 = vmatprep.subr.mxu0 0.0
  %1173 = vmatpush1.msra.mxu0 0.0
  %1174 = vmatprep.subr.mxu0 0.0
  %1175 = vmatpush1.msra.mxu0 0.0
  %1176 = vmatprep.subr.mxu0 0.0
  %1177 = vmatpush1.msra.mxu0 0.0
  %1178 = vmatprep.subr.mxu0 0.0
  %1179 = vmatpush1.msra.mxu0 0.0
  %1180 = vmatprep.subr.mxu0 0.0
  %1181 = vmatpush1.msra.mxu0 0.0
  %1182 = vmatprep.subr.mxu0 0.0
  %1183 = vmatpush1.msra.mxu0 0.0
  %1184 = vmatprep.subr.mxu0 0.0
  %1185 = vmatpush1.msra.mxu0 0.0
  %1186 = vmatprep.subr.mxu0 0.0
  %1187 = vmatpush1.msra.mxu0 0.0
  %1188 = vmatprep.subr.mxu0 0.0
  %1189 = vmatpush1.msra.mxu0 0.0
  %1190 = vmatprep.subr.mxu0 0.0
  %1191 = vmatpush1.msra.mxu0 0.0
  %1192 = vmatprep.subr.mxu0 0.0
  %1193 = vmatpush1.msra.mxu0 0.0
  %1194 = vmatprep.subr.mxu0 0.0
  %1195 = vmatpush1.msra.mxu0 0.0
  %1196 = vmatprep.subr.mxu0 0.0
  %1197 = vmatpush1.msra.mxu0 0.0
  %1198 = vmatprep.subr.mxu0 0.0
  %1199 = vmatpush1.msra.mxu0 0.0
  %1200 = vmatprep.subr.mxu0 0.0
  %1201 = vmatpush1.msra.mxu0 0.0
  %1202 = vmatprep.subr.mxu0 0.0
  %1203 = vmatpush1.msra.mxu0 0.0
  %1204 = vmatprep.subr.mxu0 0.0
  %1205 = vmatpush1.msra.mxu0 0.0
  %1206 = vmatprep.subr.mxu0 0.0
  %1207 = vmatpush1.msra.mxu0 0.0
  %1208 = vmatprep.subr.mxu0 0.0
  %1209 = vmatpush1.msra.mxu0 0.0
  %1210 = vmatprep.subr.mxu0 0.0
  %1211 = vmatpush1.msra.mxu0 0.0
  %1212 = vmatprep.subr.mxu0 0.0
  %1213 = vmatpush1.msra.mxu0 0.0
  %1214 = vmatprep.subr.mxu0 0.0
  %1215 = vmatpush1.msra.mxu0 0.0
  %1216 = vmatprep.subr.mxu0 0.0
  %1217 = vmatpush1.msra.mxu0 0.0
  %1218 = vmatprep.subr.mxu0 0.0
  %1219 = vmatpush1.msra.mxu0 0.0
  %1220 = vmatprep.subr.mxu0 0.0
  %1221 = vmatpush1.msra.mxu0 0.0
  %1222 = vmatprep.subr.mxu0 0.0
  %1223 = vmatpush1.msra.mxu0 0.0
  %1224 = vmatprep.mubr.f32.mxu0 0.0
  %1225 = vmatmul.mubr.f32.gmra.mrb[0].mxu0 %v1155
  %v1226 = vpop.f32.mrb[0].mxu0
  %v1227 = vadd.f32 0.0, %v1226
  %v1228 = vpop.f32.mrb[0].mxu0
  %1229 = vmatprep.mubr.f32.mxu0 0.0
  %1230 = vmatmul.mubr.f32.gmra.mrb[0].mxu0 %v1158
  %v1231 = vpop.f32.mrb[0].mxu0
  %v1232 = vadd.f32 0.0, %v1231
  %v1233 = vpop.f32.mrb[0].mxu0
  %1234 = vdwg.mxu0
  %v1236 = vsel %vm477, %v1227, 0
  %v1239 = vsel %vm477, %v1232, 0
  %1241 = vmatprep.subr.mxu0 0.0
  %1242 = vmatpush1.msra.mxu0 %v469
  %1243 = vmatprep.subr.mxu0 0.0
  %1244 = vmatpush1.msra.mxu0 0.0
  %1245 = vmatprep.subr.mxu0 0.0
  %1246 = vmatpush1.msra.mxu0 0.0
  %1247 = vmatprep.subr.mxu0 0.0
  %1248 = vmatpush1.msra.mxu0 0.0
  %1249 = vmatprep.subr.mxu0 0.0
  %1250 = vmatpush1.msra.mxu0 0.0
  %1251 = vmatprep.subr.mxu0 0.0
  %1252 = vmatpush1.msra.mxu0 0.0
  %1253 = vmatprep.subr.mxu0 0.0
  %1254 = vmatpush1.msra.mxu0 0.0
  %1255 = vmatprep.subr.mxu0 0.0
  %1256 = vmatpush1.msra.mxu0 0.0
  %1257 = vmatprep.subr.mxu0 0.0
  %1258 = vmatpush1.msra.mxu0 0.0
  %1259 = vmatprep.subr.mxu0 0.0
  %1260 = vmatpush1.msra.mxu0 0.0
  %1261 = vmatprep.subr.mxu0 0.0
  %1262 = vmatpush1.msra.mxu0 0.0
  %1263 = vmatprep.subr.mxu0 0.0
  %1264 = vmatpush1.msra.mxu0 0.0
  %1265 = vmatprep.subr.mxu0 0.0
  %1266 = vmatpush1.msra.mxu0 0.0
  %1267 = vmatprep.subr.mxu0 0.0
  %1268 = vmatpush1.msra.mxu0 0.0
  %1269 = vmatprep.subr.mxu0 0.0
  %1270 = vmatpush1.msra.mxu0 0.0
  %1271 = vmatprep.subr.mxu0 0.0
  %1272 = vmatpush1.msra.mxu0 0.0
  %1273 = vmatprep.subr.mxu0 0.0
  %1274 = vmatpush1.msra.mxu0 0.0
  %1275 = vmatprep.subr.mxu0 0.0
  %1276 = vmatpush1.msra.mxu0 0.0
  %1277 = vmatprep.subr.mxu0 0.0
  %1278 = vmatpush1.msra.mxu0 0.0
  %1279 = vmatprep.subr.mxu0 0.0
  %1280 = vmatpush1.msra.mxu0 0.0
  %1281 = vmatprep.subr.mxu0 0.0
  %1282 = vmatpush1.msra.mxu0 0.0
  %1283 = vmatprep.subr.mxu0 0.0
  %1284 = vmatpush1.msra.mxu0 0.0
  %1285 = vmatprep.subr.mxu0 0.0
  %1286 = vmatpush1.msra.mxu0 0.0
  %1287 = vmatprep.subr.mxu0 0.0
  %1288 = vmatpush1.msra.mxu0 0.0
  %1289 = vmatprep.subr.mxu0 0.0
  %1290 = vmatpush1.msra.mxu0 0.0
  %1291 = vmatprep.subr.mxu0 0.0
  %1292 = vmatpush1.msra.mxu0 0.0
  %1293 = vmatprep.subr.mxu0 0.0
  %1294 = vmatpush1.msra.mxu0 0.0
  %1295 = vmatprep.subr.mxu0 0.0
  %1296 = vmatpush1.msra.mxu0 0.0
  %1297 = vmatprep.subr.mxu0 0.0
  %1298 = vmatpush1.msra.mxu0 0.0
  %1299 = vmatprep.subr.mxu0 0.0
  %1300 = vmatpush1.msra.mxu0 0.0
  %1301 = vmatprep.subr.mxu0 0.0
  %1302 = vmatpush1.msra.mxu0 0.0
  %1303 = vmatprep.subr.mxu0 0.0
  %1304 = vmatpush1.msra.mxu0 0.0
  %1305 = vmatprep.mubr.f32.mxu0 0.0
  %1306 = vmatmul.mubr.f32.gmra.mrb[0].mxu0 %v1236
  %v1307 = vpop.f32.mrb[0].mxu0
  %v1308 = vadd.f32 0.0, %v1307
  %v1309 = vpop.f32.mrb[0].mxu0
  %1310 = vmatprep.mubr.f32.mxu0 0.0
  %1311 = vmatmul.mubr.f32.gmra.mrb[0].mxu0 %v1239
  %v1312 = vpop.f32.mrb[0].mxu0
  %v1313 = vadd.f32 0.0, %v1312
  %v1314 = vpop.f32.mrb[0].mxu0
  %1315 = vdwg.mxu0
  %v1316 = vadd.f32 %v1027, %v1308
  %v1317 = vadd.f32 %v1032, %v1313
  %1318 = vrot.lane.b32.xlu0 %v360, 104
  %v1319 = vpop.permute.xlu0 %1318
  %1320 = vrot.lane.b32.xlu0 %v361, 104
  %v1321 = vpop.permute.xlu0 %1320
  %1322 = vrot.lane.b32.xlu0 %v465, 72
  %v1323 = vpop.permute.xlu0 %1322
  %1324 = vrot.lane.b32.xlu0 %v466, 72
  %v1325 = vpop.permute.xlu0 %1324
  %v1326 = vsel %vm477, %v1319, 0
  %v1328 = vsel %vm477, %v1321, 0
  %v1330 = vsel %vm477, %v1323, 0
  %v1332 = vsel %vm477, %v1325, 0
  %1334 = vmatprep.subr.mxu0 0.0
  %1335 = vmatpush1.xpose.msra.mxu0 %v1330
  %1336 = vmatprep.subr.mxu0 0.0
  %1337 = vmatpush1.xpose.msra.mxu0 %v1332
  %1338 = vmatprep.subr.mxu0 0.0
  %1339 = vmatpush1.xpose.msra.mxu0 0.0
  %1340 = vmatprep.subr.mxu0 0.0
  %1341 = vmatpush1.xpose.msra.mxu0 0.0
  %1342 = vmatprep.subr.mxu0 0.0
  %1343 = vmatpush1.xpose.msra.mxu0 0.0
  %1344 = vmatprep.subr.mxu0 0.0
  %1345 = vmatpush1.xpose.msra.mxu0 0.0
  %1346 = vmatprep.subr.mxu0 0.0
  %1347 = vmatpush1.xpose.msra.mxu0 0.0
  %1348 = vmatprep.subr.mxu0 0.0
  %1349 = vmatpush1.xpose.msra.mxu0 0.0
  %1350 = vmatprep.subr.mxu0 0.0
  %1351 = vmatpush1.xpose.msra.mxu0 0.0
  %1352 = vmatprep.subr.mxu0 0.0
  %1353 = vmatpush1.xpose.msra.mxu0 0.0
  %1354 = vmatprep.subr.mxu0 0.0
  %1355 = vmatpush1.xpose.msra.mxu0 0.0
  %1356 = vmatprep.subr.mxu0 0.0
  %1357 = vmatpush1.xpose.msra.mxu0 0.0
  %1358 = vmatprep.subr.mxu0 0.0
  %1359 = vmatpush1.xpose.msra.mxu0 0.0
  %1360 = vmatprep.subr.mxu0 0.0
  %1361 = vmatpush1.xpose.msra.mxu0 0.0
  %1362 = vmatprep.subr.mxu0 0.0
  %1363 = vmatpush1.xpose.msra.mxu0 0.0
  %1364 = vmatprep.subr.mxu0 0.0
  %1365 = vmatpush1.xpose.msra.mxu0 0.0
  %1366 = vmatprep.subr.mxu0 0.0
  %1367 = vmatpush1.xpose.msra.mxu0 0.0
  %1368 = vmatprep.subr.mxu0 0.0
  %1369 = vmatpush1.xpose.msra.mxu0 0.0
  %1370 = vmatprep.subr.mxu0 0.0
  %1371 = vmatpush1.xpose.msra.mxu0 0.0
  %1372 = vmatprep.subr.mxu0 0.0
  %1373 = vmatpush1.xpose.msra.mxu0 0.0
  %1374 = vmatprep.subr.mxu0 0.0
  %1375 = vmatpush1.xpose.msra.mxu0 0.0
  %1376 = vmatprep.subr.mxu0 0.0
  %1377 = vmatpush1.xpose.msra.mxu0 0.0
  %1378 = vmatprep.subr.mxu0 0.0
  %1379 = vmatpush1.xpose.msra.mxu0 0.0
  %1380 = vmatprep.subr.mxu0 0.0
  %1381 = vmatpush1.xpose.msra.mxu0 0.0
  %1382 = vmatprep.subr.mxu0 0.0
  %1383 = vmatpush1.xpose.msra.mxu0 0.0
  %1384 = vmatprep.subr.mxu0 0.0
  %1385 = vmatpush1.xpose.msra.mxu0 0.0
  %1386 = vmatprep.subr.mxu0 0.0
  %1387 = vmatpush1.xpose.msra.mxu0 0.0
  %1388 = vmatprep.subr.mxu0 0.0
  %1389 = vmatpush1.xpose.msra.mxu0 0.0
  %1390 = vmatprep.subr.mxu0 0.0
  %1391 = vmatpush1.xpose.msra.mxu0 0.0
  %1392 = vmatprep.subr.mxu0 0.0
  %1393 = vmatpush1.xpose.msra.mxu0 0.0
  %1394 = vmatprep.subr.mxu0 0.0
  %1395 = vmatpush1.xpose.msra.mxu0 0.0
  %1396 = vmatprep.subr.mxu0 0.0
  %1397 = vmatpush1.xpose.msra.mxu0 0.0
  %1398 = vmatprep.mubr.f32.mxu0 0.0
  %1399 = vmatmul.mubr.f32.gmra.mrb[0].mxu0 %v1326
  %v1400 = vpop.f32.mrb[0].mxu0
  %v1401 = vadd.f32 %v161, %v1400
  %v1402 = vpop.f32.mrb[0].mxu0
  %1403 = vmatprep.mubr.f32.mxu0 0.0
  %1404 = vmatmul.mubr.f32.gmra.mrb[0].mxu0 %v1328
  %v1405 = vpop.f32.mrb[0].mxu0
  %v1406 = vadd.f32 %v162, %v1405
  %v1407 = vpop.f32.mrb[0].mxu0
  %1408 = vdwg.mxu0
  %v1409 = vsel %vm563, %v1401, -inf
  %1410 = vmax.xlane.f32.xlu0 %v1409
  %v1411 = vpop.xlane.xlu0 %1410
  %v1412 = vsel %vm563, %v1406, -inf
  %1413 = vmax.xlane.f32.xlu0 %v1412
  %v1414 = vpop.xlane.xlu0 %1413
  %v1415 = vsub.f32 %v1401, %v1411
  %v1416 = vsub.f32 %v1406, %v1414
  %v1417 = vmul.f32 %v1415, 1.442695
  %v1418 = vpow.pop %v1417
  %v1419 = vmul.f32 %v1416, 1.442695
  %v1420 = vpow.pop %v1419
  %v1421 = vsel %vm563, %v1418, 0.0
  %1422 = vadd.xlane.f32.xlu0 %v1421
  %v1423 = vpop.xlane.xlu0 %1422
  %v1424 = vsel %vm563, %v1420, 0.0
  %1425 = vadd.xlane.f32.xlu0 %v1424
  %v1426 = vpop.xlane.xlu0 %1425
  %v1427 = vrcp.pop %v1423
  %v1428 = vmul.f32 %v1418, %v1427
  %v1429 = vrcp.pop %v1426
  %v1430 = vmul.f32 %v1420, %v1429
  %1431 = vrot.lane.b32.xlu0 %v267, 40
  %v1432 = vpop.permute.xlu0 %1431
  %1433 = vrot.lane.b32.xlu0 %v272, 40
  %v1434 = vpop.permute.xlu0 %1433
  %v1438 = vsel %vm563, %v1428, 0
  %v1441 = vsel %vm563, %v1430, 0
  %1443 = vmatprep.subr.mxu0 0.0
  %1444 = vmatpush1.msra.mxu0 %v1432
  %1445 = vmatprep.subr.mxu0 0.0
  %1446 = vmatpush1.msra.mxu0 %v1434
  %1447 = vmatprep.subr.mxu0 0.0
  %1448 = vmatpush1.msra.mxu0 0.0
  %1449 = vmatprep.subr.mxu0 0.0
  %1450 = vmatpush1.msra.mxu0 0.0
  %1451 = vmatprep.subr.mxu0 0.0
  %1452 = vmatpush1.msra.mxu0 0.0
  %1453 = vmatprep.subr.mxu0 0.0
  %1454 = vmatpush1.msra.mxu0 0.0
  %1455 = vmatprep.subr.mxu0 0.0
  %1456 = vmatpush1.msra.mxu0 0.0
  %1457 = vmatprep.subr.mxu0 0.0
  %1458 = vmatpush1.msra.mxu0 0.0
  %1459 = vmatprep.subr.mxu0 0.0
  %1460 = vmatpush1.msra.mxu0 0.0
  %1461 = vmatprep.subr.mxu0 0.0
  %1462 = vmatpush1.msra.mxu0 0.0
  %1463 = vmatprep.subr.mxu0 0.0
  %1464 = vmatpush1.msra.mxu0 0.0
  %1465 = vmatprep.subr.mxu0 0.0
  %1466 = vmatpush1.msra.mxu0 0.0
  %1467 = vmatprep.subr.mxu0 0.0
  %1468 = vmatpush1.msra.mxu0 0.0
  %1469 = vmatprep.subr.mxu0 0.0
  %1470 = vmatpush1.msra.mxu0 0.0
  %1471 = vmatprep.subr.mxu0 0.0
  %1472 = vmatpush1.msra.mxu0 0.0
  %1473 = vmatprep.subr.mxu0 0.0
  %1474 = vmatpush1.msra.mxu0 0.0
  %1475 = vmatprep.subr.mxu0 0.0
  %1476 = vmatpush1.msra.mxu0 0.0
  %1477 = vmatprep.subr.mxu0 0.0
  %1478 = vmatpush1.msra.mxu0 0.0
  %1479 = vmatprep.subr.mxu0 0.0
  %1480 = vmatpush1.msra.mxu0 0.0
  %1481 = vmatprep.subr.mxu0 0.0
  %1482 = vmatpush1.msra.mxu0 0.0
  %1483 = vmatprep.subr.mxu0 0.0
  %1484 = vmatpush1.msra.mxu0 0.0
  %1485 = vmatprep.subr.mxu0 0.0
  %1486 = vmatpush1.msra.mxu0 0.0
  %1487 = vmatprep.subr.mxu0 0.0
  %1488 = vmatpush1.msra.mxu0 0.0
  %1489 = vmatprep.subr.mxu0 0.0
  %1490 = vmatpush1.msra.mxu0 0.0
  %1491 = vmatprep.subr.mxu0 0.0
  %1492 = vmatpush1.msra.mxu0 0.0
  %1493 = vmatprep.subr.mxu0 0.0
  %1494 = vmatpush1.msra.mxu0 0.0
  %1495 = vmatprep.subr.mxu0 0.0
  %1496 = vmatpush1.msra.mxu0 0.0
  %1497 = vmatprep.subr.mxu0 0.0
  %1498 = vmatpush1.msra.mxu0 0.0
  %1499 = vmatprep.subr.mxu0 0.0
  %1500 = vmatpush1.msra.mxu0 0.0
  %1501 = vmatprep.subr.mxu0 0.0
  %1502 = vmatpush1.msra.mxu0 0.0
  %1503 = vmatprep.subr.mxu0 0.0
  %1504 = vmatpush1.msra.mxu0 0.0
  %1505 = vmatprep.subr.mxu0 0.0
  %1506 = vmatpush1.msra.mxu0 0.0
  %1507 = vmatprep.mubr.f32.mxu0 0.0
  %1508 = vmatmul.mubr.f32.gmra.mrb[0].mxu0 %v1438
  %v1509 = vpop.f32.mrb[0].mxu0
  %v1510 = vadd.f32 0.0, %v1509
  %v1511 = vpop.f32.mrb[0].mxu0
  %1512 = vmatprep.mubr.f32.mxu0 0.0
  %1513 = vmatmul.mubr.f32.gmra.mrb[0].mxu0 %v1441
  %v1514 = vpop.f32.mrb[0].mxu0
  %v1515 = vadd.f32 0.0, %v1514
  %v1516 = vpop.f32.mrb[0].mxu0
  %1517 = vdwg.mxu0
  %v1519 = vsel %vm477, %v1510, 0
  %v1522 = vsel %vm477, %v1515, 0
  %1524 = vmatprep.subr.mxu0 0.0
  %1525 = vmatpush1.msra.mxu0 %v470
  %1526 = vmatprep.subr.mxu0 0.0
  %1527 = vmatpush1.msra.mxu0 0.0
  %1528 = vmatprep.subr.mxu0 0.0
  %1529 = vmatpush1.msra.mxu0 0.0
  %1530 = vmatprep.subr.mxu0 0.0
  %1531 = vmatpush1.msra.mxu0 0.0
  %1532 = vmatprep.subr.mxu0 0.0
  %1533 = vmatpush1.msra.mxu0 0.0
  %1534 = vmatprep.subr.mxu0 0.0
  %1535 = vmatpush1.msra.mxu0 0.0
  %1536 = vmatprep.subr.mxu0 0.0
  %1537 = vmatpush1.msra.mxu0 0.0
  %1538 = vmatprep.subr.mxu0 0.0
  %1539 = vmatpush1.msra.mxu0 0.0
  %1540 = vmatprep.subr.mxu0 0.0
  %1541 = vmatpush1.msra.mxu0 0.0
  %1542 = vmatprep.subr.mxu0 0.0
  %1543 = vmatpush1.msra.mxu0 0.0
  %1544 = vmatprep.subr.mxu0 0.0
  %1545 = vmatpush1.msra.mxu0 0.0
  %1546 = vmatprep.subr.mxu0 0.0
  %1547 = vmatpush1.msra.mxu0 0.0
  %1548 = vmatprep.subr.mxu0 0.0
  %1549 = vmatpush1.msra.mxu0 0.0
  %1550 = vmatprep.subr.mxu0 0.0
  %1551 = vmatpush1.msra.mxu0 0.0
  %1552 = vmatprep.subr.mxu0 0.0
  %1553 = vmatpush1.msra.mxu0 0.0
  %1554 = vmatprep.subr.mxu0 0.0
  %1555 = vmatpush1.msra.mxu0 0.0
  %1556 = vmatprep.subr.mxu0 0.0
  %1557 = vmatpush1.msra.mxu0 0.0
  %1558 = vmatprep.subr.mxu0 0.0
  %1559 = vmatpush1.msra.mxu0 0.0
  %1560 = vmatprep.subr.mxu0 0.0
  %1561 = vmatpush1.msra.mxu0 0.0
  %1562 = vmatprep.subr.mxu0 0.0
  %1563 = vmatpush1.msra.mxu0 0.0
  %1564 = vmatprep.subr.mxu0 0.0
  %1565 = vmatpush1.msra.mxu0 0.0
  %1566 = vmatprep.subr.mxu0 0.0
  %1567 = vmatpush1.msra.mxu0 0.0
  %1568 = vmatprep.subr.mxu0 0.0
  %1569 = vmatpush1.msra.mxu0 0.0
  %1570 = vmatprep.subr.mxu0 0.0
  %1571 = vmatpush1.msra.mxu0 0.0
  %1572 = vmatprep.subr.mxu0 0.0
  %1573 = vmatpush1.msra.mxu0 0.0
  %1574 = vmatprep.subr.mxu0 0.0
  %1575 = vmatpush1.msra.mxu0 0.0
  %1576 = vmatprep.subr.mxu0 0.0
  %1577 = vmatpush1.msra.mxu0 0.0
  %1578 = vmatprep.subr.mxu0 0.0
  %1579 = vmatpush1.msra.mxu0 0.0
  %1580 = vmatprep.subr.mxu0 0.0
  %1581 = vmatpush1.msra.mxu0 0.0
  %1582 = vmatprep.subr.mxu0 0.0
  %1583 = vmatpush1.msra.mxu0 0.0
  %1584 = vmatprep.subr.mxu0 0.0
  %1585 = vmatpush1.msra.mxu0 0.0
  %1586 = vmatprep.subr.mxu0 0.0
  %1587 = vmatpush1.msra.mxu0 0.0
  %1588 = vmatprep.mubr.f32.mxu0 0.0
  %1589 = vmatmul.mubr.f32.gmra.mrb[0].mxu0 %v1519
  %v1590 = vpop.f32.mrb[0].mxu0
  %v1591 = vadd.f32 0.0, %v1590
  %v1592 = vpop.f32.mrb[0].mxu0
  %1593 = vmatprep.mubr.f32.mxu0 0.0
  %1594 = vmatmul.mubr.f32.gmra.mrb[0].mxu0 %v1522
  %v1595 = vpop.f32.mrb[0].mxu0
  %v1596 = vadd.f32 0.0, %v1595
  %v1597 = vpop.f32.mrb[0].mxu0
  %1598 = vdwg.mxu0
  %v1599 = vadd.f32 %v1316, %v1591
  %v1600 = vadd.f32 %v1317, %v1596
  %v1601 = vadd.f32 %v145, %v1599
  %v1602 = vadd.f32 %v150, %v1600
  %v1603 = vld [vmem:[%s9] sm:$0x1]
  %v1604 = vmul.f32 %v1601, %v1601
  %v1605 = vmul.f32 %v1602, %v1602
  %v1606 = vsel %vm166, %v1604, 0.0
  %1607 = vadd.xlane.f32.xlu0 %v1606
  %v1608 = vpop.xlane.xlu0 %1607
  %v1609 = vsel %vm166, %v1605, 0.0
  %1610 = vadd.xlane.f32.xlu0 %v1609
  %v1611 = vpop.xlane.xlu0 %1610
  %v1612 = vmul.f32 %v1608, %v173
  %v1613 = vmul.f32 %v1611, %v173
  %v1614 = vadd.f32 %v1612, 1e-05
  %v1615 = vadd.f32 %v1613, 1e-05
  %v1616 = vrsqrt.pop %v1614
  %v1617 = vrsqrt.pop %v1615
  %v1618 = vmul.f32 %v1601, %v1616
  %v1619 = vmul.f32 %v1602, %v1617
  %v1621 = vlaneseq
  %v1622 = vshrl.u32 %v1621, 7
  %v1623 = vsub.s32 0, %v1622
  %v1624 = vrot.slane %v1603, %v1623
  %v1626 = vmul.f32 %v1618, %v1624
  %v1627 = vmul.f32 %v1619, %v1624
  %v1628 = vld [vmem:[%s10] sm:$0xff]
  %v1629 = vld [vmem:[%s10 + $0x8] sm:$0xff]
  %v1630 = vld [vmem:[%s10 + $0x10] sm:$0xff]
  %v1631 = vld [vmem:[%s10 + $0x18] sm:$0xff]
  %v1633 = vsel %vm166, %v1626, 0
  %v1636 = vsel %vm166, %v1627, 0
  %1638 = vmatprep.subr.mxu0 0.0
  %1639 = vmatpush1.msra.mxu0 %v1628
  %1640 = vmatprep.subr.mxu0 0.0
  %1641 = vmatpush1.msra.mxu0 %v1629
  %1642 = vmatprep.subr.mxu0 0.0
  %1643 = vmatpush1.msra.mxu0 %v1630
  %1644 = vmatprep.subr.mxu0 0.0
  %1645 = vmatpush1.msra.mxu0 %v1631
  %1646 = vmatprep.subr.mxu0 0.0
  %1647 = vmatpush1.msra.mxu0 0.0
  %1648 = vmatprep.subr.mxu0 0.0
  %1649 = vmatpush1.msra.mxu0 0.0
  %1650 = vmatprep.subr.mxu0 0.0
  %1651 = vmatpush1.msra.mxu0 0.0
  %1652 = vmatprep.subr.mxu0 0.0
  %1653 = vmatpush1.msra.mxu0 0.0
  %1654 = vmatprep.subr.mxu0 0.0
  %1655 = vmatpush1.msra.mxu0 0.0
  %1656 = vmatprep.subr.mxu0 0.0
  %1657 = vmatpush1.msra.mxu0 0.0
  %1658 = vmatprep.subr.mxu0 0.0
  %1659 = vmatpush1.msra.mxu0 0.0
  %1660 = vmatprep.subr.mxu0 0.0
  %1661 = vmatpush1.msra.mxu0 0.0
  %1662 = vmatprep.subr.mxu0 0.0
  %1663 = vmatpush1.msra.mxu0 0.0
  %1664 = vmatprep.subr.mxu0 0.0
  %1665 = vmatpush1.msra.mxu0 0.0
  %1666 = vmatprep.subr.mxu0 0.0
  %1667 = vmatpush1.msra.mxu0 0.0
  %1668 = vmatprep.subr.mxu0 0.0
  %1669 = vmatpush1.msra.mxu0 0.0
  %1670 = vmatprep.subr.mxu0 0.0
  %1671 = vmatpush1.msra.mxu0 0.0
  %1672 = vmatprep.subr.mxu0 0.0
  %1673 = vmatpush1.msra.mxu0 0.0
  %1674 = vmatprep.subr.mxu0 0.0
  %1675 = vmatpush1.msra.mxu0 0.0
  %1676 = vmatprep.subr.mxu0 0.0
  %1677 = vmatpush1.msra.mxu0 0.0
  %1678 = vmatprep.subr.mxu0 0.0
  %1679 = vmatpush1.msra.mxu0 0.0
  %1680 = vmatprep.subr.mxu0 0.0
  %1681 = vmatpush1.msra.mxu0 0.0
  %1682 = vmatprep.subr.mxu0 0.0
  %1683 = vmatpush1.msra.mxu0 0.0
  %1684 = vmatprep.subr.mxu0 0.0
  %1685 = vmatpush1.msra.mxu0 0.0
  %1686 = vmatprep.subr.mxu0 0.0
  %1687 = vmatpush1.msra.mxu0 0.0
  %1688 = vmatprep.subr.mxu0 0.0
  %1689 = vmatpush1.msra.mxu0 0.0
  %1690 = vmatprep.subr.mxu0 0.0
  %1691 = vmatpush1.msra.mxu0 0.0
  %1692 = vmatprep.subr.mxu0 0.0
  %1693 = vmatpush1.msra.mxu0 0.0
  %1694 = vmatprep.subr.mxu0 0.0
  %1695 = vmatpush1.msra.mxu0 0.0
  %1696 = vmatprep.subr.mxu0 0.0
  %1697 = vmatpush1.msra.mxu0 0.0
  %1698 = vmatprep.subr.mxu0 0.0
  %1699 = vmatpush1.msra.mxu0 0.0
  %1700 = vmatprep.subr.mxu0 0.0
  %1701 = vmatpush1.msra.mxu0 0.0
  %1702 = vmatprep.mubr.f32.mxu0 0.0
  %1703 = vmatmul.mubr.f32.gmra.mrb[0].mxu0 %v1633
  %v1704 = vpop.f32.mrb[0].mxu0
  %v1705 = vadd.f32 0.0, %v1704
  %v1706 = vpop.f32.mrb[0].mxu0
  %1707 = vmatprep.mubr.f32.mxu0 0.0
  %1708 = vmatmul.mubr.f32.gmra.mrb[0].mxu0 %v1636
  %v1709 = vpop.f32.mrb[0].mxu0
  %v1710 = vadd.f32 0.0, %v1709
  %v1711 = vpop.f32.mrb[0].mxu0
  %1712 = vdwg.mxu0
  %v1713 = vld [vmem:[%s11] sm:$0xff]
  %v1714 = vld [vmem:[%s11 + $0x8] sm:$0xff]
  %v1715 = vld [vmem:[%s11 + $0x10] sm:$0xff]
  %v1716 = vld [vmem:[%s11 + $0x18] sm:$0xff]
  %1717 = vmatprep.subr.mxu0 0.0
  %1718 = vmatpush1.msra.mxu0 %v1713
  %1719 = vmatprep.subr.mxu0 0.0
  %1720 = vmatpush1.msra.mxu0 %v1714
  %1721 = vmatprep.subr.mxu0 0.0
  %1722 = vmatpush1.msra.mxu0 %v1715
  %1723 = vmatprep.subr.mxu0 0.0
  %1724 = vmatpush1.msra.mxu0 %v1716
  %1725 = vmatprep.subr.mxu0 0.0
  %1726 = vmatpush1.msra.mxu0 0.0
  %1727 = vmatprep.subr.mxu0 0.0
  %1728 = vmatpush1.msra.mxu0 0.0
  %1729 = vmatprep.subr.mxu0 0.0
  %1730 = vmatpush1.msra.mxu0 0.0
  %1731 = vmatprep.subr.mxu0 0.0
  %1732 = vmatpush1.msra.mxu0 0.0
  %1733 = vmatprep.subr.mxu0 0.0
  %1734 = vmatpush1.msra.mxu0 0.0
  %1735 = vmatprep.subr.mxu0 0.0
  %1736 = vmatpush1.msra.mxu0 0.0
  %1737 = vmatprep.subr.mxu0 0.0
  %1738 = vmatpush1.msra.mxu0 0.0
  %1739 = vmatprep.subr.mxu0 0.0
  %1740 = vmatpush1.msra.mxu0 0.0
  %1741 = vmatprep.subr.mxu0 0.0
  %1742 = vmatpush1.msra.mxu0 0.0
  %1743 = vmatprep.subr.mxu0 0.0
  %1744 = vmatpush1.msra.mxu0 0.0
  %1745 = vmatprep.subr.mxu0 0.0
  %1746 = vmatpush1.msra.mxu0 0.0
  %1747 = vmatprep.subr.mxu0 0.0
  %1748 = vmatpush1.msra.mxu0 0.0
  %1749 = vmatprep.subr.mxu0 0.0
  %1750 = vmatpush1.msra.mxu0 0.0
  %1751 = vmatprep.subr.mxu0 0.0
  %1752 = vmatpush1.msra.mxu0 0.0
  %1753 = vmatprep.subr.mxu0 0.0
  %1754 = vmatpush1.msra.mxu0 0.0
  %1755 = vmatprep.subr.mxu0 0.0
  %1756 = vmatpush1.msra.mxu0 0.0
  %1757 = vmatprep.subr.mxu0 0.0
  %1758 = vmatpush1.msra.mxu0 0.0
  %1759 = vmatprep.subr.mxu0 0.0
  %1760 = vmatpush1.msra.mxu0 0.0
  %1761 = vmatprep.subr.mxu0 0.0
  %1762 = vmatpush1.msra.mxu0 0.0
  %1763 = vmatprep.subr.mxu0 0.0
  %1764 = vmatpush1.msra.mxu0 0.0
  %1765 = vmatprep.subr.mxu0 0.0
  %1766 = vmatpush1.msra.mxu0 0.0
  %1767 = vmatprep.subr.mxu0 0.0
  %1768 = vmatpush1.msra.mxu0 0.0
  %1769 = vmatprep.subr.mxu0 0.0
  %1770 = vmatpush1.msra.mxu0 0.0
  %1771 = vmatprep.subr.mxu0 0.0
  %1772 = vmatpush1.msra.mxu0 0.0
  %1773 = vmatprep.subr.mxu0 0.0
  %1774 = vmatpush1.msra.mxu0 0.0
  %1775 = vmatprep.subr.mxu0 0.0
  %1776 = vmatpush1.msra.mxu0 0.0
  %1777 = vmatprep.subr.mxu0 0.0
  %1778 = vmatpush1.msra.mxu0 0.0
  %1779 = vmatprep.subr.mxu0 0.0
  %1780 = vmatpush1.msra.mxu0 0.0
  %1781 = vmatprep.mubr.f32.mxu0 0.0
  %1782 = vmatmul.mubr.f32.gmra.mrb[0].mxu0 %v1633
  %v1783 = vpop.f32.mrb[0].mxu0
  %v1784 = vadd.f32 0.0, %v1783
  %v1785 = vpop.f32.mrb[0].mxu0
  %1786 = vmatprep.mubr.f32.mxu0 0.0
  %1787 = vmatmul.mubr.f32.gmra.mrb[0].mxu0 %v1636
  %v1788 = vpop.f32.mrb[0].mxu0
  %v1789 = vadd.f32 0.0, %v1788
  %v1790 = vpop.f32.mrb[0].mxu0
  %1791 = vdwg.mxu0
  %v1792 = vxor.u32 %v1705, 2147483648
  %v1793 = vxor.u32 %v1710, 2147483648
  %v1794 = vmul.f32 %v1792, 1.442695
  %v1795 = vpow.pop %v1794
  %v1796 = vmul.f32 %v1793, 1.442695
  %v1797 = vpow.pop %v1796
  %v1798 = vadd.f32 %v1795, 1.0
  %v1799 = vadd.f32 %v1797, 1.0
  %v1800 = vrcp.pop %v1798
  %v1801 = vmul.f32 1.0, %v1800
  %v1802 = vrcp.pop %v1799
  %v1803 = vmul.f32 1.0, %v1802
  %v1804 = vmul.f32 %v1705, %v1801
  %v1805 = vmul.f32 %v1710, %v1803
  %v1806 = vmul.f32 %v1804, %v1784
  %v1807 = vmul.f32 %v1805, %v1789
  %v1808 = vld [vmem:[%s12] sm:$0xff]
  %v1809 = vld [vmem:[%s12 + $0x8] sm:$0xff]
  %v1810 = vld [vmem:[%s12 + $0x10] sm:$0xff]
  %v1811 = vld [vmem:[%s12 + $0x18] sm:$0xff]
  %v1812 = vld [vmem:[%s12 + $0x20] sm:$0xff]
  %v1813 = vld [vmem:[%s12 + $0x28] sm:$0xff]
  %v1814 = vld [vmem:[%s12 + $0x30] sm:$0xff]
  %v1815 = vld [vmem:[%s12 + $0x38] sm:$0xff]
  %v1816 = vld [vmem:[%s12 + $0x40] sm:$0xff]
  %v1817 = vld [vmem:[%s12 + $0x48] sm:$0xff]
  %v1818 = vld [vmem:[%s12 + $0x50] sm:$0xff]
  %v1819 = vld [vmem:[%s12 + $0x58] sm:$0xff]
  %vm1820 = vcmask 785408
  %v1822 = vsel %vm1820, %v1806, 0
  %v1825 = vsel %vm1820, %v1807, 0
  %1827 = vmatprep.subr.mxu0 0.0
  %1828 = vmatpush1.msra.mxu0 %v1808
  %1829 = vmatprep.subr.mxu0 0.0
  %1830 = vmatpush1.msra.mxu0 %v1809
  %1831 = vmatprep.subr.mxu0 0.0
  %1832 = vmatpush1.msra.mxu0 %v1810
  %1833 = vmatprep.subr.mxu0 0.0
  %1834 = vmatpush1.msra.mxu0 %v1811
  %1835 = vmatprep.subr.mxu0 0.0
  %1836 = vmatpush1.msra.mxu0 %v1812
  %1837 = vmatprep.subr.mxu0 0.0
  %1838 = vmatpush1.msra.mxu0 %v1813
  %1839 = vmatprep.subr.mxu0 0.0
  %1840 = vmatpush1.msra.mxu0 %v1814
  %1841 = vmatprep.subr.mxu0 0.0
  %1842 = vmatpush1.msra.mxu0 %v1815
  %1843 = vmatprep.subr.mxu0 0.0
  %1844 = vmatpush1.msra.mxu0 %v1816
  %1845 = vmatprep.subr.mxu0 0.0
  %1846 = vmatpush1.msra.mxu0 %v1817
  %1847 = vmatprep.subr.mxu0 0.0
  %1848 = vmatpush1.msra.mxu0 %v1818
  %1849 = vmatprep.subr.mxu0 0.0
  %1850 = vmatpush1.msra.mxu0 %v1819
  %1851 = vmatprep.subr.mxu0 0.0
  %1852 = vmatpush1.msra.mxu0 0.0
  %1853 = vmatprep.subr.mxu0 0.0
  %1854 = vmatpush1.msra.mxu0 0.0
  %1855 = vmatprep.subr.mxu0 0.0
  %1856 = vmatpush1.msra.mxu0 0.0
  %1857 = vmatprep.subr.mxu0 0.0
  %1858 = vmatpush1.msra.mxu0 0.0
  %1859 = vmatprep.subr.mxu0 0.0
  %1860 = vmatpush1.msra.mxu0 0.0
  %1861 = vmatprep.subr.mxu0 0.0
  %1862 = vmatpush1.msra.mxu0 0.0
  %1863 = vmatprep.subr.mxu0 0.0
  %1864 = vmatpush1.msra.mxu0 0.0
  %1865 = vmatprep.subr.mxu0 0.0
  %1866 = vmatpush1.msra.mxu0 0.0
  %1867 = vmatprep.subr.mxu0 0.0
  %1868 = vmatpush1.msra.mxu0 0.0
  %1869 = vmatprep.subr.mxu0 0.0
  %1870 = vmatpush1.msra.mxu0 0.0
  %1871 = vmatprep.subr.mxu0 0.0
  %1872 = vmatpush1.msra.mxu0 0.0
  %1873 = vmatprep.subr.mxu0 0.0
  %1874 = vmatpush1.msra.mxu0 0.0
  %1875 = vmatprep.subr.mxu0 0.0
  %1876 = vmatpush1.msra.mxu0 0.0
  %1877 = vmatprep.subr.mxu0 0.0
  %1878 = vmatpush1.msra.mxu0 0.0
  %1879 = vmatprep.subr.mxu0 0.0
  %1880 = vmatpush1.msra.mxu0 0.0
  %1881 = vmatprep.subr.mxu0 0.0
  %1882 = vmatpush1.msra.mxu0 0.0
  %1883 = vmatprep.subr.mxu0 0.0
  %1884 = vmatpush1.msra.mxu0 0.0
  %1885 = vmatprep.subr.mxu0 0.0
  %1886 = vmatpush1.msra.mxu0 0.0
  %1887 = vmatprep.subr.mxu0 0.0
  %1888 = vmatpush1.msra.mxu0 0.0
  %1889 = vmatprep.subr.mxu0 0.0
  %1890 = vmatpush1.msra.mxu0 0.0
  %1891 = vmatprep.mubr.f32.mxu0 0.0
  %1892 = vmatmul.mubr.f32.gmra.mrb[0].mxu0 %v1822
  %v1893 = vpop.f32.mrb[0].mxu0
  %v1894 = vadd.f32 0.0, %v1893
  %v1895 = vpop.f32.mrb[0].mxu0
  %1896 = vmatprep.mubr.f32.mxu0 0.0
  %1897 = vmatmul.mubr.f32.gmra.mrb[0].mxu0 %v1825
  %v1898 = vpop.f32.mrb[0].mxu0
  %v1899 = vadd.f32 0.0, %v1898
  %v1900 = vpop.f32.mrb[0].mxu0
  %1901 = vdwg.mxu0
  %v1902 = vadd.f32 %v1601, %v1894
  %v1903 = vadd.f32 %v1602, %v1899
  %s1904 = scalar_lea.vmem %s6, 1
  %v1905 = vld [vmem:[%s1904] sm:$0x1]
  %v1906 = vmul.f32 %v1902, %v1902
  %v1907 = vmul.f32 %v1903, %v1903
  %v1908 = vsel %vm166, %v1906, 0.0
  %1909 = vadd.xlane.f32.xlu0 %v1908
  %v1910 = vpop.xlane.xlu0 %1909
  %v1911 = vsel %vm166, %v1907, 0.0
  %1912 = vadd.xlane.f32.xlu0 %v1911
  %v1913 = vpop.xlane.xlu0 %1912
  %v1914 = vmul.f32 %v1910, %v173
  %v1915 = vmul.f32 %v1913, %v173
  %v1916 = vadd.f32 %v1914, 1e-05
  %v1917 = vadd.f32 %v1915, 1e-05
  %v1918 = vrsqrt.pop %v1916
  %v1919 = vrsqrt.pop %v1917
  %v1920 = vmul.f32 %v1902, %v1918
  %v1921 = vmul.f32 %v1903, %v1919
  %v1923 = vlaneseq
  %v1924 = vshrl.u32 %v1923, 7
  %v1925 = vsub.s32 0, %v1924
  %v1926 = vrot.slane %v1905, %v1925
  %v1928 = vmul.f32 %v1920, %v1926
  %v1929 = vmul.f32 %v1921, %v1926
  %s1930 = scalar_lea.vmem %s7, 32
  %v1931 = vld [vmem:[%s1930] sm:$0xff]
  %v1932 = vld [vmem:[%s1930 + $0x8] sm:$0xff]
  %v1933 = vld [vmem:[%s1930 + $0x10] sm:$0xff]
  %v1934 = vld [vmem:[%s1930 + $0x18] sm:$0xff]
  %v1936 = vsel %vm166, %v1928, 0
  %v1939 = vsel %vm166, %v1929, 0
  %1941 = vmatprep.subr.mxu0 0.0
  %1942 = vmatpush1.msra.mxu0 %v1931
  %1943 = vmatprep.subr.mxu0 0.0
  %1944 = vmatpush1.msra.mxu0 %v1932
  %1945 = vmatprep.subr.mxu0 0.0
  %1946 = vmatpush1.msra.mxu0 %v1933
  %1947 = vmatprep.subr.mxu0 0.0
  %1948 = vmatpush1.msra.mxu0 %v1934
  %1949 = vmatprep.subr.mxu0 0.0
  %1950 = vmatpush1.msra.mxu0 0.0
  %1951 = vmatprep.subr.mxu0 0.0
  %1952 = vmatpush1.msra.mxu0 0.0
  %1953 = vmatprep.subr.mxu0 0.0
  %1954 = vmatpush1.msra.mxu0 0.0
  %1955 = vmatprep.subr.mxu0 0.0
  %1956 = vmatpush1.msra.mxu0 0.0
  %1957 = vmatprep.subr.mxu0 0.0
  %1958 = vmatpush1.msra.mxu0 0.0
  %1959 = vmatprep.subr.mxu0 0.0
  %1960 = vmatpush1.msra.mxu0 0.0
  %1961 = vmatprep.subr.mxu0 0.0
  %1962 = vmatpush1.msra.mxu0 0.0
  %1963 = vmatprep.subr.mxu0 0.0
  %1964 = vmatpush1.msra.mxu0 0.0
  %1965 = vmatprep.subr.mxu0 0.0
  %1966 = vmatpush1.msra.mxu0 0.0
  %1967 = vmatprep.subr.mxu0 0.0
  %1968 = vmatpush1.msra.mxu0 0.0
  %1969 = vmatprep.subr.mxu0 0.0
  %1970 = vmatpush1.msra.mxu0 0.0
  %1971 = vmatprep.subr.mxu0 0.0
  %1972 = vmatpush1.msra.mxu0 0.0
  %1973 = vmatprep.subr.mxu0 0.0
  %1974 = vmatpush1.msra.mxu0 0.0
  %1975 = vmatprep.subr.mxu0 0.0
  %1976 = vmatpush1.msra.mxu0 0.0
  %1977 = vmatprep.subr.mxu0 0.0
  %1978 = vmatpush1.msra.mxu0 0.0
  %1979 = vmatprep.subr.mxu0 0.0
  %1980 = vmatpush1.msra.mxu0 0.0
  %1981 = vmatprep.subr.mxu0 0.0
  %1982 = vmatpush1.msra.mxu0 0.0
  %1983 = vmatprep.subr.mxu0 0.0
  %1984 = vmatpush1.msra.mxu0 0.0
  %1985 = vmatprep.subr.mxu0 0.0
  %1986 = vmatpush1.msra.mxu0 0.0
  %1987 = vmatprep.subr.mxu0 0.0
  %1988 = vmatpush1.msra.mxu0 0.0
  %1989 = vmatprep.subr.mxu0 0.0
  %1990 = vmatpush1.msra.mxu0 0.0
  %1991 = vmatprep.subr.mxu0 0.0
  %1992 = vmatpush1.msra.mxu0 0.0
  %1993 = vmatprep.subr.mxu0 0.0
  %1994 = vmatpush1.msra.mxu0 0.0
  %1995 = vmatprep.subr.mxu0 0.0
  %1996 = vmatpush1.msra.mxu0 0.0
  %1997 = vmatprep.subr.mxu0 0.0
  %1998 = vmatpush1.msra.mxu0 0.0
  %1999 = vmatprep.subr.mxu0 0.0
  %2000 = vmatpush1.msra.mxu0 0.0
  %2001 = vmatprep.subr.mxu0 0.0
  %2002 = vmatpush1.msra.mxu0 0.0
  %2003 = vmatprep.subr.mxu0 0.0
  %2004 = vmatpush1.msra.mxu0 0.0
  %2005 = vmatprep.mubr.f32.mxu0 0.0
  %2006 = vmatmul.mubr.f32.gmra.mrb[0].mxu0 %v1936
  %v2007 = vpop.f32.mrb[0].mxu0
  %v2008 = vadd.f32 0.0, %v2007
  %v2009 = vpop.f32.mrb[0].mxu0
  %2010 = vmatprep.mubr.f32.mxu0 0.0
  %2011 = vmatmul.mubr.f32.gmra.mrb[0].mxu0 %v1939
  %v2012 = vpop.f32.mrb[0].mxu0
  %v2013 = vadd.f32 0.0, %v2012
  %v2014 = vpop.f32.mrb[0].mxu0
  %2015 = vdwg.mxu0
  %v2016 = vmul.f32 %v2008, %v153
  %v2017 = vmul.f32 %v2013, %v154
  %v2019 = vsel %vm166, %v2008, 0
  %v2022 = vsel %vm166, %v2013, 0
  %2024 = vmatprep.subr.mxu0 0.0
  %2025 = vmatpush1.msra.mxu0 %v157
  %2026 = vmatprep.subr.mxu0 0.0
  %2027 = vmatpush1.msra.mxu0 %v158
  %2028 = vmatprep.subr.mxu0 0.0
  %2029 = vmatpush1.msra.mxu0 %v159
  %2030 = vmatprep.subr.mxu0 0.0
  %2031 = vmatpush1.msra.mxu0 %v160
  %2032 = vmatprep.subr.mxu0 0.0
  %2033 = vmatpush1.msra.mxu0 0.0
  %2034 = vmatprep.subr.mxu0 0.0
  %2035 = vmatpush1.msra.mxu0 0.0
  %2036 = vmatprep.subr.mxu0 0.0
  %2037 = vmatpush1.msra.mxu0 0.0
  %2038 = vmatprep.subr.mxu0 0.0
  %2039 = vmatpush1.msra.mxu0 0.0
  %2040 = vmatprep.subr.mxu0 0.0
  %2041 = vmatpush1.msra.mxu0 0.0
  %2042 = vmatprep.subr.mxu0 0.0
  %2043 = vmatpush1.msra.mxu0 0.0
  %2044 = vmatprep.subr.mxu0 0.0
  %2045 = vmatpush1.msra.mxu0 0.0
  %2046 = vmatprep.subr.mxu0 0.0
  %2047 = vmatpush1.msra.mxu0 0.0
  %2048 = vmatprep.subr.mxu0 0.0
  %2049 = vmatpush1.msra.mxu0 0.0
  %2050 = vmatprep.subr.mxu0 0.0
  %2051 = vmatpush1.msra.mxu0 0.0
  %2052 = vmatprep.subr.mxu0 0.0
  %2053 = vmatpush1.msra.mxu0 0.0
  %2054 = vmatprep.subr.mxu0 0.0
  %2055 = vmatpush1.msra.mxu0 0.0
  %2056 = vmatprep.subr.mxu0 0.0
  %2057 = vmatpush1.msra.mxu0 0.0
  %2058 = vmatprep.subr.mxu0 0.0
  %2059 = vmatpush1.msra.mxu0 0.0
  %2060 = vmatprep.subr.mxu0 0.0
  %2061 = vmatpush1.msra.mxu0 0.0
  %2062 = vmatprep.subr.mxu0 0.0
  %2063 = vmatpush1.msra.mxu0 0.0
  %2064 = vmatprep.subr.mxu0 0.0
  %2065 = vmatpush1.msra.mxu0 0.0
  %2066 = vmatprep.subr.mxu0 0.0
  %2067 = vmatpush1.msra.mxu0 0.0
  %2068 = vmatprep.subr.mxu0 0.0
  %2069 = vmatpush1.msra.mxu0 0.0
  %2070 = vmatprep.subr.mxu0 0.0
  %2071 = vmatpush1.msra.mxu0 0.0
  %2072 = vmatprep.subr.mxu0 0.0
  %2073 = vmatpush1.msra.mxu0 0.0
  %2074 = vmatprep.subr.mxu0 0.0
  %2075 = vmatpush1.msra.mxu0 0.0
  %2076 = vmatprep.subr.mxu0 0.0
  %2077 = vmatpush1.msra.mxu0 0.0
  %2078 = vmatprep.subr.mxu0 0.0
  %2079 = vmatpush1.msra.mxu0 0.0
  %2080 = vmatprep.subr.mxu0 0.0
  %2081 = vmatpush1.msra.mxu0 0.0
  %2082 = vmatprep.subr.mxu0 0.0
  %2083 = vmatpush1.msra.mxu0 0.0
  %2084 = vmatprep.subr.mxu0 0.0
  %2085 = vmatpush1.msra.mxu0 0.0
  %2086 = vmatprep.subr.mxu0 0.0
  %2087 = vmatpush1.msra.mxu0 0.0
  %2088 = vmatprep.mubr.f32.mxu0 0.0
  %2089 = vmatmul.mubr.f32.gmra.mrb[0].mxu0 %v2019
  %v2090 = vpop.f32.mrb[0].mxu0
  %v2091 = vadd.f32 0.0, %v2090
  %v2092 = vpop.f32.mrb[0].mxu0
  %2093 = vmatprep.mubr.f32.mxu0 0.0
  %2094 = vmatmul.mubr.f32.gmra.mrb[0].mxu0 %v2022
  %v2095 = vpop.f32.mrb[0].mxu0
  %v2096 = vadd.f32 0.0, %v2095
  %v2097 = vpop.f32.mrb[0].mxu0
  %2098 = vdwg.mxu0
  %v2099 = vmul.f32 %v2091, %v155
  %v2100 = vmul.f32 %v2096, %v156
  %v2101 = vadd.f32 %v2016, %v2099
  %v2102 = vadd.f32 %v2017, %v2100
  %v2103 = vmul.f32 %v2008, %v365
  %v2104 = vmul.f32 %v2013, %v367
  %2105 = vrot.lane.b32.xlu0 %v2008, 96
  %v2106 = vpop.permute.xlu0 %2105
  %2107 = vrot.lane.b32.xlu0 %v2013, 96
  %v2108 = vpop.permute.xlu0 %2107
  %v2109 = vsel %vm166, %v2106, 0
  %v2111 = vsel %vm166, %v2108, 0
  %2113 = vmatprep.subr.mxu0 0.0
  %2114 = vmatpush1.msra.mxu0 %v157
  %2115 = vmatprep.subr.mxu0 0.0
  %2116 = vmatpush1.msra.mxu0 %v158
  %2117 = vmatprep.subr.mxu0 0.0
  %2118 = vmatpush1.msra.mxu0 %v159
  %2119 = vmatprep.subr.mxu0 0.0
  %2120 = vmatpush1.msra.mxu0 %v160
  %2121 = vmatprep.subr.mxu0 0.0
  %2122 = vmatpush1.msra.mxu0 0.0
  %2123 = vmatprep.subr.mxu0 0.0
  %2124 = vmatpush1.msra.mxu0 0.0
  %2125 = vmatprep.subr.mxu0 0.0
  %2126 = vmatpush1.msra.mxu0 0.0
  %2127 = vmatprep.subr.mxu0 0.0
  %2128 = vmatpush1.msra.mxu0 0.0
  %2129 = vmatprep.subr.mxu0 0.0
  %2130 = vmatpush1.msra.mxu0 0.0
  %2131 = vmatprep.subr.mxu0 0.0
  %2132 = vmatpush1.msra.mxu0 0.0
  %2133 = vmatprep.subr.mxu0 0.0
  %2134 = vmatpush1.msra.mxu0 0.0
  %2135 = vmatprep.subr.mxu0 0.0
  %2136 = vmatpush1.msra.mxu0 0.0
  %2137 = vmatprep.subr.mxu0 0.0
  %2138 = vmatpush1.msra.mxu0 0.0
  %2139 = vmatprep.subr.mxu0 0.0
  %2140 = vmatpush1.msra.mxu0 0.0
  %2141 = vmatprep.subr.mxu0 0.0
  %2142 = vmatpush1.msra.mxu0 0.0
  %2143 = vmatprep.subr.mxu0 0.0
  %2144 = vmatpush1.msra.mxu0 0.0
  %2145 = vmatprep.subr.mxu0 0.0
  %2146 = vmatpush1.msra.mxu0 0.0
  %2147 = vmatprep.subr.mxu0 0.0
  %2148 = vmatpush1.msra.mxu0 0.0
  %2149 = vmatprep.subr.mxu0 0.0
  %2150 = vmatpush1.msra.mxu0 0.0
  %2151 = vmatprep.subr.mxu0 0.0
  %2152 = vmatpush1.msra.mxu0 0.0
  %2153 = vmatprep.subr.mxu0 0.0
  %2154 = vmatpush1.msra.mxu0 0.0
  %2155 = vmatprep.subr.mxu0 0.0
  %2156 = vmatpush1.msra.mxu0 0.0
  %2157 = vmatprep.subr.mxu0 0.0
  %2158 = vmatpush1.msra.mxu0 0.0
  %2159 = vmatprep.subr.mxu0 0.0
  %2160 = vmatpush1.msra.mxu0 0.0
  %2161 = vmatprep.subr.mxu0 0.0
  %2162 = vmatpush1.msra.mxu0 0.0
  %2163 = vmatprep.subr.mxu0 0.0
  %2164 = vmatpush1.msra.mxu0 0.0
  %2165 = vmatprep.subr.mxu0 0.0
  %2166 = vmatpush1.msra.mxu0 0.0
  %2167 = vmatprep.subr.mxu0 0.0
  %2168 = vmatpush1.msra.mxu0 0.0
  %2169 = vmatprep.subr.mxu0 0.0
  %2170 = vmatpush1.msra.mxu0 0.0
  %2171 = vmatprep.subr.mxu0 0.0
  %2172 = vmatpush1.msra.mxu0 0.0
  %2173 = vmatprep.subr.mxu0 0.0
  %2174 = vmatpush1.msra.mxu0 0.0
  %2175 = vmatprep.subr.mxu0 0.0
  %2176 = vmatpush1.msra.mxu0 0.0
  %2177 = vmatprep.mubr.f32.mxu0 0.0
  %2178 = vmatmul.mubr.f32.gmra.mrb[0].mxu0 %v2109
  %v2179 = vpop.f32.mrb[0].mxu0
  %v2180 = vadd.f32 0.0, %v2179
  %v2181 = vpop.f32.mrb[0].mxu0
  %2182 = vmatprep.mubr.f32.mxu0 0.0
  %2183 = vmatmul.mubr.f32.gmra.mrb[0].mxu0 %v2111
  %v2184 = vpop.f32.mrb[0].mxu0
  %v2185 = vadd.f32 0.0, %v2184
  %v2186 = vpop.f32.mrb[0].mxu0
  %2187 = vdwg.mxu0
  %v2188 = vmul.f32 %v2180, %v155
  %v2189 = vmul.f32 %v2185, %v156
  %2192 = vrot.lane.b32.xlu0 %v2188, 32
  %v2193 = vpop.permute.xlu0 %2192
  %2194 = vrot.lane.b32.xlu0 %v2189, 32
  %v2195 = vpop.permute.xlu0 %2194
  %v2198 = vadd.f32 %v2103, %v2193
  %v2199 = vadd.f32 %v2104, %v2195
  %s2200 = scalar_lea.vmem %s8, 32
  %v2201 = vld [vmem:[%s2200] sm:$0xff]
  %v2202 = vld [vmem:[%s2200 + $0x8] sm:$0xff]
  %v2203 = vld [vmem:[%s2200 + $0x10] sm:$0xff]
  %v2204 = vld [vmem:[%s2200 + $0x18] sm:$0xff]
  %2207 = vrot.lane.b32.xlu0 %v2198, 96
  %v2208 = vpop.permute.xlu0 %2207
  %2209 = vrot.lane.b32.xlu0 %v2199, 96
  %v2210 = vpop.permute.xlu0 %2209
  %v2212 = vsel %vm477, %v2101, 0
  %v2215 = vsel %vm477, %v2102, 0
  %v2217 = vsel %vm477, %v2208, 0
  %v2219 = vsel %vm477, %v2210, 0
  %2221 = vmatprep.subr.mxu0 0.0
  %2222 = vmatpush1.xpose.msra.mxu0 %v2217
  %2223 = vmatprep.subr.mxu0 0.0
  %2224 = vmatpush1.xpose.msra.mxu0 %v2219
  %2225 = vmatprep.subr.mxu0 0.0
  %2226 = vmatpush1.xpose.msra.mxu0 0.0
  %2227 = vmatprep.subr.mxu0 0.0
  %2228 = vmatpush1.xpose.msra.mxu0 0.0
  %2229 = vmatprep.subr.mxu0 0.0
  %2230 = vmatpush1.xpose.msra.mxu0 0.0
  %2231 = vmatprep.subr.mxu0 0.0
  %2232 = vmatpush1.xpose.msra.mxu0 0.0
  %2233 = vmatprep.subr.mxu0 0.0
  %2234 = vmatpush1.xpose.msra.mxu0 0.0
  %2235 = vmatprep.subr.mxu0 0.0
  %2236 = vmatpush1.xpose.msra.mxu0 0.0
  %2237 = vmatprep.subr.mxu0 0.0
  %2238 = vmatpush1.xpose.msra.mxu0 0.0
  %2239 = vmatprep.subr.mxu0 0.0
  %2240 = vmatpush1.xpose.msra.mxu0 0.0
  %2241 = vmatprep.subr.mxu0 0.0
  %2242 = vmatpush1.xpose.msra.mxu0 0.0
  %2243 = vmatprep.subr.mxu0 0.0
  %2244 = vmatpush1.xpose.msra.mxu0 0.0
  %2245 = vmatprep.subr.mxu0 0.0
  %2246 = vmatpush1.xpose.msra.mxu0 0.0
  %2247 = vmatprep.subr.mxu0 0.0
  %2248 = vmatpush1.xpose.msra.mxu0 0.0
  %2249 = vmatprep.subr.mxu0 0.0
  %2250 = vmatpush1.xpose.msra.mxu0 0.0
  %2251 = vmatprep.subr.mxu0 0.0
  %2252 = vmatpush1.xpose.msra.mxu0 0.0
  %2253 = vmatprep.subr.mxu0 0.0
  %2254 = vmatpush1.xpose.msra.mxu0 0.0
  %2255 = vmatprep.subr.mxu0 0.0
  %2256 = vmatpush1.xpose.msra.mxu0 0.0
  %2257 = vmatprep.subr.mxu0 0.0
  %2258 = vmatpush1.xpose.msra.mxu0 0.0
  %2259 = vmatprep.subr.mxu0 0.0
  %2260 = vmatpush1.xpose.msra.mxu0 0.0
  %2261 = vmatprep.subr.mxu0 0.0
  %2262 = vmatpush1.xpose.msra.mxu0 0.0
  %2263 = vmatprep.subr.mxu0 0.0
  %2264 = vmatpush1.xpose.msra.mxu0 0.0
  %2265 = vmatprep.subr.mxu0 0.0
  %2266 = vmatpush1.xpose.msra.mxu0 0.0
  %2267 = vmatprep.subr.mxu0 0.0
  %2268 = vmatpush1.xpose.msra.mxu0 0.0
  %2269 = vmatprep.subr.mxu0 0.0
  %2270 = vmatpush1.xpose.msra.mxu0 0.0
  %2271 = vmatprep.subr.mxu0 0.0
  %2272 = vmatpush1.xpose.msra.mxu0 0.0
  %2273 = vmatprep.subr.mxu0 0.0
  %2274 = vmatpush1.xpose.msra.mxu0 0.0
  %2275 = vmatprep.subr.mxu0 0.0
  %2276 = vmatpush1.xpose.msra.mxu0 0.0
  %2277 = vmatprep.subr.mxu0 0.0
  %2278 = vmatpush1.xpose.msra.mxu0 0.0
  %2279 = vmatprep.subr.mxu0 0.0
  %2280 = vmatpush1.xpose.msra.mxu0 0.0
  %2281 = vmatprep.subr.mxu0 0.0
  %2282 = vmatpush1.xpose.msra.mxu0 0.0
  %2283 = vmatprep.subr.mxu0 0.0
  %2284 = vmatpush1.xpose.msra.mxu0 0.0
  %2285 = vmatprep.mubr.f32.mxu0 0.0
  %2286 = vmatmul.mubr.f32.gmra.mrb[0].mxu0 %v2212
  %v2287 = vpop.f32.mrb[0].mxu0
  %v2288 = vadd.f32 %v161, %v2287
  %v2289 = vpop.f32.mrb[0].mxu0
  %2290 = vmatprep.mubr.f32.mxu0 0.0
  %2291 = vmatmul.mubr.f32.gmra.mrb[0].mxu0 %v2215
  %v2292 = vpop.f32.mrb[0].mxu0
  %v2293 = vadd.f32 %v162, %v2292
  %v2294 = vpop.f32.mrb[0].mxu0
  %2295 = vdwg.mxu0
  %v2296 = vsel %vm563, %v2288, -inf
  %2297 = vmax.xlane.f32.xlu0 %v2296
  %v2298 = vpop.xlane.xlu0 %2297
  %v2299 = vsel %vm563, %v2293, -inf
  %2300 = vmax.xlane.f32.xlu0 %v2299
  %v2301 = vpop.xlane.xlu0 %2300
  %v2302 = vsub.f32 %v2288, %v2298
  %v2303 = vsub.f32 %v2293, %v2301
  %v2304 = vmul.f32 %v2302, 1.442695
  %v2305 = vpow.pop %v2304
  %v2306 = vmul.f32 %v2303, 1.442695
  %v2307 = vpow.pop %v2306
  %v2308 = vsel %vm563, %v2305, 0.0
  %2309 = vadd.xlane.f32.xlu0 %v2308
  %v2310 = vpop.xlane.xlu0 %2309
  %v2311 = vsel %vm563, %v2307, 0.0
  %2312 = vadd.xlane.f32.xlu0 %v2311
  %v2313 = vpop.xlane.xlu0 %2312
  %v2314 = vrcp.pop %v2310
  %v2315 = vmul.f32 %v2305, %v2314
  %v2316 = vrcp.pop %v2313
  %v2317 = vmul.f32 %v2307, %v2316
  %2318 = vrot.lane.b32.xlu0 %v2008, 64
  %v2319 = vpop.permute.xlu0 %2318
  %2320 = vrot.lane.b32.xlu0 %v2013, 64
  %v2321 = vpop.permute.xlu0 %2320
  %v2325 = vsel %vm563, %v2315, 0
  %v2328 = vsel %vm563, %v2317, 0
  %2330 = vmatprep.subr.mxu0 0.0
  %2331 = vmatpush1.msra.mxu0 %v2319
  %2332 = vmatprep.subr.mxu0 0.0
  %2333 = vmatpush1.msra.mxu0 %v2321
  %2334 = vmatprep.subr.mxu0 0.0
  %2335 = vmatpush1.msra.mxu0 0.0
  %2336 = vmatprep.subr.mxu0 0.0
  %2337 = vmatpush1.msra.mxu0 0.0
  %2338 = vmatprep.subr.mxu0 0.0
  %2339 = vmatpush1.msra.mxu0 0.0
  %2340 = vmatprep.subr.mxu0 0.0
  %2341 = vmatpush1.msra.mxu0 0.0
  %2342 = vmatprep.subr.mxu0 0.0
  %2343 = vmatpush1.msra.mxu0 0.0
  %2344 = vmatprep.subr.mxu0 0.0
  %2345 = vmatpush1.msra.mxu0 0.0
  %2346 = vmatprep.subr.mxu0 0.0
  %2347 = vmatpush1.msra.mxu0 0.0
  %2348 = vmatprep.subr.mxu0 0.0
  %2349 = vmatpush1.msra.mxu0 0.0
  %2350 = vmatprep.subr.mxu0 0.0
  %2351 = vmatpush1.msra.mxu0 0.0
  %2352 = vmatprep.subr.mxu0 0.0
  %2353 = vmatpush1.msra.mxu0 0.0
  %2354 = vmatprep.subr.mxu0 0.0
  %2355 = vmatpush1.msra.mxu0 0.0
  %2356 = vmatprep.subr.mxu0 0.0
  %2357 = vmatpush1.msra.mxu0 0.0
  %2358 = vmatprep.subr.mxu0 0.0
  %2359 = vmatpush1.msra.mxu0 0.0
  %2360 = vmatprep.subr.mxu0 0.0
  %2361 = vmatpush1.msra.mxu0 0.0
  %2362 = vmatprep.subr.mxu0 0.0
  %2363 = vmatpush1.msra.mxu0 0.0
  %2364 = vmatprep.subr.mxu0 0.0
  %2365 = vmatpush1.msra.mxu0 0.0
  %2366 = vmatprep.subr.mxu0 0.0
  %2367 = vmatpush1.msra.mxu0 0.0
  %2368 = vmatprep.subr.mxu0 0.0
  %2369 = vmatpush1.msra.mxu0 0.0
  %2370 = vmatprep.subr.mxu0 0.0
  %2371 = vmatpush1.msra.mxu0 0.0
  %2372 = vmatprep.subr.mxu0 0.0
  %2373 = vmatpush1.msra.mxu0 0.0
  %2374 = vmatprep.subr.mxu0 0.0
  %2375 = vmatpush1.msra.mxu0 0.0
  %2376 = vmatprep.subr.mxu0 0.0
  %2377 = vmatpush1.msra.mxu0 0.0
  %2378 = vmatprep.subr.mxu0 0.0
  %2379 = vmatpush1.msra.mxu0 0.0
  %2380 = vmatprep.subr.mxu0 0.0
  %2381 = vmatpush1.msra.mxu0 0.0
  %2382 = vmatprep.subr.mxu0 0.0
  %2383 = vmatpush1.msra.mxu0 0.0
  %2384 = vmatprep.subr.mxu0 0.0
  %2385 = vmatpush1.msra.mxu0 0.0
  %2386 = vmatprep.subr.mxu0 0.0
  %2387 = vmatpush1.msra.mxu0 0.0
  %2388 = vmatprep.subr.mxu0 0.0
  %2389 = vmatpush1.msra.mxu0 0.0
  %2390 = vmatprep.subr.mxu0 0.0
  %2391 = vmatpush1.msra.mxu0 0.0
  %2392 = vmatprep.subr.mxu0 0.0
  %2393 = vmatpush1.msra.mxu0 0.0
  %2394 = vmatprep.mubr.f32.mxu0 0.0
  %2395 = vmatmul.mubr.f32.gmra.mrb[0].mxu0 %v2325
  %v2396 = vpop.f32.mrb[0].mxu0
  %v2397 = vadd.f32 0.0, %v2396
  %v2398 = vpop.f32.mrb[0].mxu0
  %2399 = vmatprep.mubr.f32.mxu0 0.0
  %2400 = vmatmul.mubr.f32.gmra.mrb[0].mxu0 %v2328
  %v2401 = vpop.f32.mrb[0].mxu0
  %v2402 = vadd.f32 0.0, %v2401
  %v2403 = vpop.f32.mrb[0].mxu0
  %2404 = vdwg.mxu0
  %2405 = vrot.lane.b32.xlu0 %v2101, 120
  %v2406 = vpop.permute.xlu0 %2405
  %2407 = vrot.lane.b32.xlu0 %v2102, 120
  %v2408 = vpop.permute.xlu0 %2407
  %2409 = vrot.lane.b32.xlu0 %v2198, 88
  %v2410 = vpop.permute.xlu0 %2409
  %2411 = vrot.lane.b32.xlu0 %v2199, 88
  %v2412 = vpop.permute.xlu0 %2411
  %v2413 = vsel %vm477, %v2406, 0
  %v2415 = vsel %vm477, %v2408, 0
  %v2417 = vsel %vm477, %v2410, 0
  %v2419 = vsel %vm477, %v2412, 0
  %2421 = vmatprep.subr.mxu0 0.0
  %2422 = vmatpush1.xpose.msra.mxu0 %v2417
  %2423 = vmatprep.subr.mxu0 0.0
  %2424 = vmatpush1.xpose.msra.mxu0 %v2419
  %2425 = vmatprep.subr.mxu0 0.0
  %2426 = vmatpush1.xpose.msra.mxu0 0.0
  %2427 = vmatprep.subr.mxu0 0.0
  %2428 = vmatpush1.xpose.msra.mxu0 0.0
  %2429 = vmatprep.subr.mxu0 0.0
  %2430 = vmatpush1.xpose.msra.mxu0 0.0
  %2431 = vmatprep.subr.mxu0 0.0
  %2432 = vmatpush1.xpose.msra.mxu0 0.0
  %2433 = vmatprep.subr.mxu0 0.0
  %2434 = vmatpush1.xpose.msra.mxu0 0.0
  %2435 = vmatprep.subr.mxu0 0.0
  %2436 = vmatpush1.xpose.msra.mxu0 0.0
  %2437 = vmatprep.subr.mxu0 0.0
  %2438 = vmatpush1.xpose.msra.mxu0 0.0
  %2439 = vmatprep.subr.mxu0 0.0
  %2440 = vmatpush1.xpose.msra.mxu0 0.0
  %2441 = vmatprep.subr.mxu0 0.0
  %2442 = vmatpush1.xpose.msra.mxu0 0.0
  %2443 = vmatprep.subr.mxu0 0.0
  %2444 = vmatpush1.xpose.msra.mxu0 0.0
  %2445 = vmatprep.subr.mxu0 0.0
  %2446 = vmatpush1.xpose.msra.mxu0 0.0
  %2447 = vmatprep.subr.mxu0 0.0
  %2448 = vmatpush1.xpose.msra.mxu0 0.0
  %2449 = vmatprep.subr.mxu0 0.0
  %2450 = vmatpush1.xpose.msra.mxu0 0.0
  %2451 = vmatprep.subr.mxu0 0.0
  %2452 = vmatpush1.xpose.msra.mxu0 0.0
  %2453 = vmatprep.subr.mxu0 0.0
  %2454 = vmatpush1.xpose.msra.mxu0 0.0
  %2455 = vmatprep.subr.mxu0 0.0
  %2456 = vmatpush1.xpose.msra.mxu0 0.0
  %2457 = vmatprep.subr.mxu0 0.0
  %2458 = vmatpush1.xpose.msra.mxu0 0.0
  %2459 = vmatprep.subr.mxu0 0.0
  %2460 = vmatpush1.xpose.msra.mxu0 0.0
  %2461 = vmatprep.subr.mxu0 0.0
  %2462 = vmatpush1.xpose.msra.mxu0 0.0
  %2463 = vmatprep.subr.mxu0 0.0
  %2464 = vmatpush1.xpose.msra.mxu0 0.0
  %2465 = vmatprep.subr.mxu0 0.0
  %2466 = vmatpush1.xpose.msra.mxu0 0.0
  %2467 = vmatprep.subr.mxu0 0.0
  %2468 = vmatpush1.xpose.msra.mxu0 0.0
  %2469 = vmatprep.subr.mxu0 0.0
  %2470 = vmatpush1.xpose.msra.mxu0 0.0
  %2471 = vmatprep.subr.mxu0 0.0
  %2472 = vmatpush1.xpose.msra.mxu0 0.0
  %2473 = vmatprep.subr.mxu0 0.0
  %2474 = vmatpush1.xpose.msra.mxu0 0.0
  %2475 = vmatprep.subr.mxu0 0.0
  %2476 = vmatpush1.xpose.msra.mxu0 0.0
  %2477 = vmatprep.subr.mxu0 0.0
  %2478 = vmatpush1.xpose.msra.mxu0 0.0
  %2479 = vmatprep.subr.mxu0 0.0
  %2480 = vmatpush1.xpose.msra.mxu0 0.0
  %2481 = vmatprep.subr.mxu0 0.0
  %2482 = vmatpush1.xpose.msra.mxu0 0.0
  %2483 = vmatprep.subr.mxu0 0.0
  %2484 = vmatpush1.xpose.msra.mxu0 0.0
  %2485 = vmatprep.mubr.f32.mxu0 0.0
  %2486 = vmatmul.mubr.f32.gmra.mrb[0].mxu0 %v2413
  %v2487 = vpop.f32.mrb[0].mxu0
  %v2488 = vadd.f32 %v161, %v2487
  %v2489 = vpop.f32.mrb[0].mxu0
  %2490 = vmatprep.mubr.f32.mxu0 0.0
  %2491 = vmatmul.mubr.f32.gmra.mrb[0].mxu0 %v2415
  %v2492 = vpop.f32.mrb[0].mxu0
  %v2493 = vadd.f32 %v162, %v2492
  %v2494 = vpop.f32.mrb[0].mxu0
  %2495 = vdwg.mxu0
  %v2496 = vsel %vm563, %v2488, -inf
  %2497 = vmax.xlane.f32.xlu0 %v2496
  %v2498 = vpop.xlane.xlu0 %2497
  %v2499 = vsel %vm563, %v2493, -inf
  %2500 = vmax.xlane.f32.xlu0 %v2499
  %v2501 = vpop.xlane.xlu0 %2500
  %v2502 = vsub.f32 %v2488, %v2498
  %v2503 = vsub.f32 %v2493, %v2501
  %v2504 = vmul.f32 %v2502, 1.442695
  %v2505 = vpow.pop %v2504
  %v2506 = vmul.f32 %v2503, 1.442695
  %v2507 = vpow.pop %v2506
  %v2508 = vsel %vm563, %v2505, 0.0
  %2509 = vadd.xlane.f32.xlu0 %v2508
  %v2510 = vpop.xlane.xlu0 %2509
  %v2511 = vsel %vm563, %v2507, 0.0
  %2512 = vadd.xlane.f32.xlu0 %v2511
  %v2513 = vpop.xlane.xlu0 %2512
  %v2514 = vrcp.pop %v2510
  %v2515 = vmul.f32 %v2505, %v2514
  %v2516 = vrcp.pop %v2513
  %v2517 = vmul.f32 %v2507, %v2516
  %2518 = vrot.lane.b32.xlu0 %v2008, 56
  %v2519 = vpop.permute.xlu0 %2518
  %2520 = vrot.lane.b32.xlu0 %v2013, 56
  %v2521 = vpop.permute.xlu0 %2520
  %v2525 = vsel %vm563, %v2515, 0
  %v2528 = vsel %vm563, %v2517, 0
  %2530 = vmatprep.subr.mxu0 0.0
  %2531 = vmatpush1.msra.mxu0 %v2519
  %2532 = vmatprep.subr.mxu0 0.0
  %2533 = vmatpush1.msra.mxu0 %v2521
  %2534 = vmatprep.subr.mxu0 0.0
  %2535 = vmatpush1.msra.mxu0 0.0
  %2536 = vmatprep.subr.mxu0 0.0
  %2537 = vmatpush1.msra.mxu0 0.0
  %2538 = vmatprep.subr.mxu0 0.0
  %2539 = vmatpush1.msra.mxu0 0.0
  %2540 = vmatprep.subr.mxu0 0.0
  %2541 = vmatpush1.msra.mxu0 0.0
  %2542 = vmatprep.subr.mxu0 0.0
  %2543 = vmatpush1.msra.mxu0 0.0
  %2544 = vmatprep.subr.mxu0 0.0
  %2545 = vmatpush1.msra.mxu0 0.0
  %2546 = vmatprep.subr.mxu0 0.0
  %2547 = vmatpush1.msra.mxu0 0.0
  %2548 = vmatprep.subr.mxu0 0.0
  %2549 = vmatpush1.msra.mxu0 0.0
  %2550 = vmatprep.subr.mxu0 0.0
  %2551 = vmatpush1.msra.mxu0 0.0
  %2552 = vmatprep.subr.mxu0 0.0
  %2553 = vmatpush1.msra.mxu0 0.0
  %2554 = vmatprep.subr.mxu0 0.0
  %2555 = vmatpush1.msra.mxu0 0.0
  %2556 = vmatprep.subr.mxu0 0.0
  %2557 = vmatpush1.msra.mxu0 0.0
  %2558 = vmatprep.subr.mxu0 0.0
  %2559 = vmatpush1.msra.mxu0 0.0
  %2560 = vmatprep.subr.mxu0 0.0
  %2561 = vmatpush1.msra.mxu0 0.0
  %2562 = vmatprep.subr.mxu0 0.0
  %2563 = vmatpush1.msra.mxu0 0.0
  %2564 = vmatprep.subr.mxu0 0.0
  %2565 = vmatpush1.msra.mxu0 0.0
  %2566 = vmatprep.subr.mxu0 0.0
  %2567 = vmatpush1.msra.mxu0 0.0
  %2568 = vmatprep.subr.mxu0 0.0
  %2569 = vmatpush1.msra.mxu0 0.0
  %2570 = vmatprep.subr.mxu0 0.0
  %2571 = vmatpush1.msra.mxu0 0.0
  %2572 = vmatprep.subr.mxu0 0.0
  %2573 = vmatpush1.msra.mxu0 0.0
  %2574 = vmatprep.subr.mxu0 0.0
  %2575 = vmatpush1.msra.mxu0 0.0
  %2576 = vmatprep.subr.mxu0 0.0
  %2577 = vmatpush1.msra.mxu0 0.0
  %2578 = vmatprep.subr.mxu0 0.0
  %2579 = vmatpush1.msra.mxu0 0.0
  %2580 = vmatprep.subr.mxu0 0.0
  %2581 = vmatpush1.msra.mxu0 0.0
  %2582 = vmatprep.subr.mxu0 0.0
  %2583 = vmatpush1.msra.mxu0 0.0
  %2584 = vmatprep.subr.mxu0 0.0
  %2585 = vmatpush1.msra.mxu0 0.0
  %2586 = vmatprep.subr.mxu0 0.0
  %2587 = vmatpush1.msra.mxu0 0.0
  %2588 = vmatprep.subr.mxu0 0.0
  %2589 = vmatpush1.msra.mxu0 0.0
  %2590 = vmatprep.subr.mxu0 0.0
  %2591 = vmatpush1.msra.mxu0 0.0
  %2592 = vmatprep.subr.mxu0 0.0
  %2593 = vmatpush1.msra.mxu0 0.0
  %2594 = vmatprep.mubr.f32.mxu0 0.0
  %2595 = vmatmul.mubr.f32.gmra.mrb[0].mxu0 %v2525
  %v2596 = vpop.f32.mrb[0].mxu0
  %v2597 = vadd.f32 0.0, %v2596
  %v2598 = vpop.f32.mrb[0].mxu0
  %2599 = vmatprep.mubr.f32.mxu0 0.0
  %2600 = vmatmul.mubr.f32.gmra.mrb[0].mxu0 %v2528
  %v2601 = vpop.f32.mrb[0].mxu0
  %v2602 = vadd.f32 0.0, %v2601
  %v2603 = vpop.f32.mrb[0].mxu0
  %2604 = vdwg.mxu0
  %v2606 = vsel %vm477, %v2597, 0
  %v2609 = vsel %vm477, %v2602, 0
  %2611 = vmatprep.subr.mxu0 0.0
  %2612 = vmatpush1.msra.mxu0 %v2202
  %2613 = vmatprep.subr.mxu0 0.0
  %2614 = vmatpush1.msra.mxu0 0.0
  %2615 = vmatprep.subr.mxu0 0.0
  %2616 = vmatpush1.msra.mxu0 0.0
  %2617 = vmatprep.subr.mxu0 0.0
  %2618 = vmatpush1.msra.mxu0 0.0
  %2619 = vmatprep.subr.mxu0 0.0
  %2620 = vmatpush1.msra.mxu0 0.0
  %2621 = vmatprep.subr.mxu0 0.0
  %2622 = vmatpush1.msra.mxu0 0.0
  %2623 = vmatprep.subr.mxu0 0.0
  %2624 = vmatpush1.msra.mxu0 0.0
  %2625 = vmatprep.subr.mxu0 0.0
  %2626 = vmatpush1.msra.mxu0 0.0
  %2627 = vmatprep.subr.mxu0 0.0
  %2628 = vmatpush1.msra.mxu0 0.0
  %2629 = vmatprep.subr.mxu0 0.0
  %2630 = vmatpush1.msra.mxu0 0.0
  %2631 = vmatprep.subr.mxu0 0.0
  %2632 = vmatpush1.msra.mxu0 0.0
  %2633 = vmatprep.subr.mxu0 0.0
  %2634 = vmatpush1.msra.mxu0 0.0
  %2635 = vmatprep.subr.mxu0 0.0
  %2636 = vmatpush1.msra.mxu0 0.0
  %2637 = vmatprep.subr.mxu0 0.0
  %2638 = vmatpush1.msra.mxu0 0.0
  %2639 = vmatprep.subr.mxu0 0.0
  %2640 = vmatpush1.msra.mxu0 0.0
  %2641 = vmatprep.subr.mxu0 0.0
  %2642 = vmatpush1.msra.mxu0 0.0
  %2643 = vmatprep.subr.mxu0 0.0
  %2644 = vmatpush1.msra.mxu0 0.0
  %2645 = vmatprep.subr.mxu0 0.0
  %2646 = vmatpush1.msra.mxu0 0.0
  %2647 = vmatprep.subr.mxu0 0.0
  %2648 = vmatpush1.msra.mxu0 0.0
  %2649 = vmatprep.subr.mxu0 0.0
  %2650 = vmatpush1.msra.mxu0 0.0
  %2651 = vmatprep.subr.mxu0 0.0
  %2652 = vmatpush1.msra.mxu0 0.0
  %2653 = vmatprep.subr.mxu0 0.0
  %2654 = vmatpush1.msra.mxu0 0.0
  %2655 = vmatprep.subr.mxu0 0.0
  %2656 = vmatpush1.msra.mxu0 0.0
  %2657 = vmatprep.subr.mxu0 0.0
  %2658 = vmatpush1.msra.mxu0 0.0
  %2659 = vmatprep.subr.mxu0 0.0
  %2660 = vmatpush1.msra.mxu0 0.0
  %2661 = vmatprep.subr.mxu0 0.0
  %2662 = vmatpush1.msra.mxu0 0.0
  %2663 = vmatprep.subr.mxu0 0.0
  %2664 = vmatpush1.msra.mxu0 0.0
  %2665 = vmatprep.subr.mxu0 0.0
  %2666 = vmatpush1.msra.mxu0 0.0
  %2667 = vmatprep.subr.mxu0 0.0
  %2668 = vmatpush1.msra.mxu0 0.0
  %2669 = vmatprep.subr.mxu0 0.0
  %2670 = vmatpush1.msra.mxu0 0.0
  %2671 = vmatprep.subr.mxu0 0.0
  %2672 = vmatpush1.msra.mxu0 0.0
  %2673 = vmatprep.subr.mxu0 0.0
  %2674 = vmatpush1.msra.mxu0 0.0
  %2675 = vmatprep.mubr.f32.mxu0 0.0
  %2676 = vmatmul.mubr.f32.gmra.mrb[0].mxu0 %v2606
  %v2677 = vpop.f32.mrb[0].mxu0
  %v2678 = vadd.f32 0.0, %v2677
  %v2679 = vpop.f32.mrb[0].mxu0
  %2680 = vmatprep.mubr.f32.mxu0 0.0
  %2681 = vmatmul.mubr.f32.gmra.mrb[0].mxu0 %v2609
  %v2682 = vpop.f32.mrb[0].mxu0
  %v2683 = vadd.f32 0.0, %v2682
  %v2684 = vpop.f32.mrb[0].mxu0
  %2685 = vdwg.mxu0
  %v2687 = vsel %vm477, %v2397, 0
  %v2690 = vsel %vm477, %v2402, 0
  %2692 = vmatprep.subr.mxu0 0.0
  %2693 = vmatpush1.msra.mxu0 %v2201
  %2694 = vmatprep.subr.mxu0 0.0
  %2695 = vmatpush1.msra.mxu0 0.0
  %2696 = vmatprep.subr.mxu0 0.0
  %2697 = vmatpush1.msra.mxu0 0.0
  %2698 = vmatprep.subr.mxu0 0.0
  %2699 = vmatpush1.msra.mxu0 0.0
  %2700 = vmatprep.subr.mxu0 0.0
  %2701 = vmatpush1.msra.mxu0 0.0
  %2702 = vmatprep.subr.mxu0 0.0
  %2703 = vmatpush1.msra.mxu0 0.0
  %2704 = vmatprep.subr.mxu0 0.0
  %2705 = vmatpush1.msra.mxu0 0.0
  %2706 = vmatprep.subr.mxu0 0.0
  %2707 = vmatpush1.msra.mxu0 0.0
  %2708 = vmatprep.subr.mxu0 0.0
  %2709 = vmatpush1.msra.mxu0 0.0
  %2710 = vmatprep.subr.mxu0 0.0
  %2711 = vmatpush1.msra.mxu0 0.0
  %2712 = vmatprep.subr.mxu0 0.0
  %2713 = vmatpush1.msra.mxu0 0.0
  %2714 = vmatprep.subr.mxu0 0.0
  %2715 = vmatpush1.msra.mxu0 0.0
  %2716 = vmatprep.subr.mxu0 0.0
  %2717 = vmatpush1.msra.mxu0 0.0
  %2718 = vmatprep.subr.mxu0 0.0
  %2719 = vmatpush1.msra.mxu0 0.0
  %2720 = vmatprep.subr.mxu0 0.0
  %2721 = vmatpush1.msra.mxu0 0.0
  %2722 = vmatprep.subr.mxu0 0.0
  %2723 = vmatpush1.msra.mxu0 0.0
  %2724 = vmatprep.subr.mxu0 0.0
  %2725 = vmatpush1.msra.mxu0 0.0
  %2726 = vmatprep.subr.mxu0 0.0
  %2727 = vmatpush1.msra.mxu0 0.0
  %2728 = vmatprep.subr.mxu0 0.0
  %2729 = vmatpush1.msra.mxu0 0.0
  %2730 = vmatprep.subr.mxu0 0.0
  %2731 = vmatpush1.msra.mxu0 0.0
  %2732 = vmatprep.subr.mxu0 0.0
  %2733 = vmatpush1.msra.mxu0 0.0
  %2734 = vmatprep.subr.mxu0 0.0
  %2735 = vmatpush1.msra.mxu0 0.0
  %2736 = vmatprep.subr.mxu0 0.0
  %2737 = vmatpush1.msra.mxu0 0.0
  %2738 = vmatprep.subr.mxu0 0.0
  %2739 = vmatpush1.msra.mxu0 0.0
  %2740 = vmatprep.subr.mxu0 0.0
  %2741 = vmatpush1.msra.mxu0 0.0
  %2742 = vmatprep.subr.mxu0 0.0
  %2743 = vmatpush1.msra.mxu0 0.0
  %2744 = vmatprep.subr.mxu0 0.0
  %2745 = vmatpush1.msra.mxu0 0.0
  %2746 = vmatprep.subr.mxu0 0.0
  %2747 = vmatpush1.msra.mxu0 0.0
  %2748 = vmatprep.subr.mxu0 0.0
  %2749 = vmatpush1.msra.mxu0 0.0
  %2750 = vmatprep.subr.mxu0 0.0
  %2751 = vmatpush1.msra.mxu0 0.0
  %2752 = vmatprep.subr.mxu0 0.0
  %2753 = vmatpush1.msra.mxu0 0.0
  %2754 = vmatprep.subr.mxu0 0.0
  %2755 = vmatpush1.msra.mxu0 0.0
  %2756 = vmatprep.mubr.f32.mxu0 0.0
  %2757 = vmatmul.mubr.f32.gmra.mrb[0].mxu0 %v2687
  %v2758 = vpop.f32.mrb[0].mxu0
  %v2759 = vadd.f32 %v2678, %v2758
  %v2760 = vpop.f32.mrb[0].mxu0
  %2761 = vmatprep.mubr.f32.mxu0 0.0
  %2762 = vmatmul.mubr.f32.gmra.mrb[0].mxu0 %v2690
  %v2763 = vpop.f32.mrb[0].mxu0
  %v2764 = vadd.f32 %v2683, %v2763
  %v2765 = vpop.f32.mrb[0].mxu0
  %2766 = vdwg.mxu0
  %2767 = vrot.lane.b32.xlu0 %v2101, 112
  %v2768 = vpop.permute.xlu0 %2767
  %2769 = vrot.lane.b32.xlu0 %v2102, 112
  %v2770 = vpop.permute.xlu0 %2769
  %2771 = vrot.lane.b32.xlu0 %v2198, 80
  %v2772 = vpop.permute.xlu0 %2771
  %2773 = vrot.lane.b32.xlu0 %v2199, 80
  %v2774 = vpop.permute.xlu0 %2773
  %v2775 = vsel %vm477, %v2768, 0
  %v2777 = vsel %vm477, %v2770, 0
  %v2779 = vsel %vm477, %v2772, 0
  %v2781 = vsel %vm477, %v2774, 0
  %2783 = vmatprep.subr.mxu0 0.0
  %2784 = vmatpush1.xpose.msra.mxu0 %v2779
  %2785 = vmatprep.subr.mxu0 0.0
  %2786 = vmatpush1.xpose.msra.mxu0 %v2781
  %2787 = vmatprep.subr.mxu0 0.0
  %2788 = vmatpush1.xpose.msra.mxu0 0.0
  %2789 = vmatprep.subr.mxu0 0.0
  %2790 = vmatpush1.xpose.msra.mxu0 0.0
  %2791 = vmatprep.subr.mxu0 0.0
  %2792 = vmatpush1.xpose.msra.mxu0 0.0
  %2793 = vmatprep.subr.mxu0 0.0
  %2794 = vmatpush1.xpose.msra.mxu0 0.0
  %2795 = vmatprep.subr.mxu0 0.0
  %2796 = vmatpush1.xpose.msra.mxu0 0.0
  %2797 = vmatprep.subr.mxu0 0.0
  %2798 = vmatpush1.xpose.msra.mxu0 0.0
  %2799 = vmatprep.subr.mxu0 0.0
  %2800 = vmatpush1.xpose.msra.mxu0 0.0
  %2801 = vmatprep.subr.mxu0 0.0
  %2802 = vmatpush1.xpose.msra.mxu0 0.0
  %2803 = vmatprep.subr.mxu0 0.0
  %2804 = vmatpush1.xpose.msra.mxu0 0.0
  %2805 = vmatprep.subr.mxu0 0.0
  %2806 = vmatpush1.xpose.msra.mxu0 0.0
  %2807 = vmatprep.subr.mxu0 0.0
  %2808 = vmatpush1.xpose.msra.mxu0 0.0
  %2809 = vmatprep.subr.mxu0 0.0
  %2810 = vmatpush1.xpose.msra.mxu0 0.0
  %2811 = vmatprep.subr.mxu0 0.0
  %2812 = vmatpush1.xpose.msra.mxu0 0.0
  %2813 = vmatprep.subr.mxu0 0.0
  %2814 = vmatpush1.xpose.msra.mxu0 0.0
  %2815 = vmatprep.subr.mxu0 0.0
  %2816 = vmatpush1.xpose.msra.mxu0 0.0
  %2817 = vmatprep.subr.mxu0 0.0
  %2818 = vmatpush1.xpose.msra.mxu0 0.0
  %2819 = vmatprep.subr.mxu0 0.0
  %2820 = vmatpush1.xpose.msra.mxu0 0.0
  %2821 = vmatprep.subr.mxu0 0.0
  %2822 = vmatpush1.xpose.msra.mxu0 0.0
  %2823 = vmatprep.subr.mxu0 0.0
  %2824 = vmatpush1.xpose.msra.mxu0 0.0
  %2825 = vmatprep.subr.mxu0 0.0
  %2826 = vmatpush1.xpose.msra.mxu0 0.0
  %2827 = vmatprep.subr.mxu0 0.0
  %2828 = vmatpush1.xpose.msra.mxu0 0.0
  %2829 = vmatprep.subr.mxu0 0.0
  %2830 = vmatpush1.xpose.msra.mxu0 0.0
  %2831 = vmatprep.subr.mxu0 0.0
  %2832 = vmatpush1.xpose.msra.mxu0 0.0
  %2833 = vmatprep.subr.mxu0 0.0
  %2834 = vmatpush1.xpose.msra.mxu0 0.0
  %2835 = vmatprep.subr.mxu0 0.0
  %2836 = vmatpush1.xpose.msra.mxu0 0.0
  %2837 = vmatprep.subr.mxu0 0.0
  %2838 = vmatpush1.xpose.msra.mxu0 0.0
  %2839 = vmatprep.subr.mxu0 0.0
  %2840 = vmatpush1.xpose.msra.mxu0 0.0
  %2841 = vmatprep.subr.mxu0 0.0
  %2842 = vmatpush1.xpose.msra.mxu0 0.0
  %2843 = vmatprep.subr.mxu0 0.0
  %2844 = vmatpush1.xpose.msra.mxu0 0.0
  %2845 = vmatprep.subr.mxu0 0.0
  %2846 = vmatpush1.xpose.msra.mxu0 0.0
  %2847 = vmatprep.mubr.f32.mxu0 0.0
  %2848 = vmatmul.mubr.f32.gmra.mrb[0].mxu0 %v2775
  %v2849 = vpop.f32.mrb[0].mxu0
  %v2850 = vadd.f32 %v161, %v2849
  %v2851 = vpop.f32.mrb[0].mxu0
  %2852 = vmatprep.mubr.f32.mxu0 0.0
  %2853 = vmatmul.mubr.f32.gmra.mrb[0].mxu0 %v2777
  %v2854 = vpop.f32.mrb[0].mxu0
  %v2855 = vadd.f32 %v162, %v2854
  %v2856 = vpop.f32.mrb[0].mxu0
  %2857 = vdwg.mxu0
  %v2858 = vsel %vm563, %v2850, -inf
  %2859 = vmax.xlane.f32.xlu0 %v2858
  %v2860 = vpop.xlane.xlu0 %2859
  %v2861 = vsel %vm563, %v2855, -inf
  %2862 = vmax.xlane.f32.xlu0 %v2861
  %v2863 = vpop.xlane.xlu0 %2862
  %v2864 = vsub.f32 %v2850, %v2860
  %v2865 = vsub.f32 %v2855, %v2863
  %v2866 = vmul.f32 %v2864, 1.442695
  %v2867 = vpow.pop %v2866
  %v2868 = vmul.f32 %v2865, 1.442695
  %v2869 = vpow.pop %v2868
  %v2870 = vsel %vm563, %v2867, 0.0
  %2871 = vadd.xlane.f32.xlu0 %v2870
  %v2872 = vpop.xlane.xlu0 %2871
  %v2873 = vsel %vm563, %v2869, 0.0
  %2874 = vadd.xlane.f32.xlu0 %v2873
  %v2875 = vpop.xlane.xlu0 %2874
  %v2876 = vrcp.pop %v2872
  %v2877 = vmul.f32 %v2867, %v2876
  %v2878 = vrcp.pop %v2875
  %v2879 = vmul.f32 %v2869, %v2878
  %2880 = vrot.lane.b32.xlu0 %v2008, 48
  %v2881 = vpop.permute.xlu0 %2880
  %2882 = vrot.lane.b32.xlu0 %v2013, 48
  %v2883 = vpop.permute.xlu0 %2882
  %v2887 = vsel %vm563, %v2877, 0
  %v2890 = vsel %vm563, %v2879, 0
  %2892 = vmatprep.subr.mxu0 0.0
  %2893 = vmatpush1.msra.mxu0 %v2881
  %2894 = vmatprep.subr.mxu0 0.0
  %2895 = vmatpush1.msra.mxu0 %v2883
  %2896 = vmatprep.subr.mxu0 0.0
  %2897 = vmatpush1.msra.mxu0 0.0
  %2898 = vmatprep.subr.mxu0 0.0
  %2899 = vmatpush1.msra.mxu0 0.0
  %2900 = vmatprep.subr.mxu0 0.0
  %2901 = vmatpush1.msra.mxu0 0.0
  %2902 = vmatprep.subr.mxu0 0.0
  %2903 = vmatpush1.msra.mxu0 0.0
  %2904 = vmatprep.subr.mxu0 0.0
  %2905 = vmatpush1.msra.mxu0 0.0
  %2906 = vmatprep.subr.mxu0 0.0
  %2907 = vmatpush1.msra.mxu0 0.0
  %2908 = vmatprep.subr.mxu0 0.0
  %2909 = vmatpush1.msra.mxu0 0.0
  %2910 = vmatprep.subr.mxu0 0.0
  %2911 = vmatpush1.msra.mxu0 0.0
  %2912 = vmatprep.subr.mxu0 0.0
  %2913 = vmatpush1.msra.mxu0 0.0
  %2914 = vmatprep.subr.mxu0 0.0
  %2915 = vmatpush1.msra.mxu0 0.0
  %2916 = vmatprep.subr.mxu0 0.0
  %2917 = vmatpush1.msra.mxu0 0.0
  %2918 = vmatprep.subr.mxu0 0.0
  %2919 = vmatpush1.msra.mxu0 0.0
  %2920 = vmatprep.subr.mxu0 0.0
  %2921 = vmatpush1.msra.mxu0 0.0
  %2922 = vmatprep.subr.mxu0 0.0
  %2923 = vmatpush1.msra.mxu0 0.0
  %2924 = vmatprep.subr.mxu0 0.0
  %2925 = vmatpush1.msra.mxu0 0.0
  %2926 = vmatprep.subr.mxu0 0.0
  %2927 = vmatpush1.msra.mxu0 0.0
  %2928 = vmatprep.subr.mxu0 0.0
  %2929 = vmatpush1.msra.mxu0 0.0
  %2930 = vmatprep.subr.mxu0 0.0
  %2931 = vmatpush1.msra.mxu0 0.0
  %2932 = vmatprep.subr.mxu0 0.0
  %2933 = vmatpush1.msra.mxu0 0.0
  %2934 = vmatprep.subr.mxu0 0.0
  %2935 = vmatpush1.msra.mxu0 0.0
  %2936 = vmatprep.subr.mxu0 0.0
  %2937 = vmatpush1.msra.mxu0 0.0
  %2938 = vmatprep.subr.mxu0 0.0
  %2939 = vmatpush1.msra.mxu0 0.0
  %2940 = vmatprep.subr.mxu0 0.0
  %2941 = vmatpush1.msra.mxu0 0.0
  %2942 = vmatprep.subr.mxu0 0.0
  %2943 = vmatpush1.msra.mxu0 0.0
  %2944 = vmatprep.subr.mxu0 0.0
  %2945 = vmatpush1.msra.mxu0 0.0
  %2946 = vmatprep.subr.mxu0 0.0
  %2947 = vmatpush1.msra.mxu0 0.0
  %2948 = vmatprep.subr.mxu0 0.0
  %2949 = vmatpush1.msra.mxu0 0.0
  %2950 = vmatprep.subr.mxu0 0.0
  %2951 = vmatpush1.msra.mxu0 0.0
  %2952 = vmatprep.subr.mxu0 0.0
  %2953 = vmatpush1.msra.mxu0 0.0
  %2954 = vmatprep.subr.mxu0 0.0
  %2955 = vmatpush1.msra.mxu0 0.0
  %2956 = vmatprep.mubr.f32.mxu0 0.0
  %2957 = vmatmul.mubr.f32.gmra.mrb[0].mxu0 %v2887
  %v2958 = vpop.f32.mrb[0].mxu0
  %v2959 = vadd.f32 0.0, %v2958
  %v2960 = vpop.f32.mrb[0].mxu0
  %2961 = vmatprep.mubr.f32.mxu0 0.0
  %2962 = vmatmul.mubr.f32.gmra.mrb[0].mxu0 %v2890
  %v2963 = vpop.f32.mrb[0].mxu0
  %v2964 = vadd.f32 0.0, %v2963
  %v2965 = vpop.f32.mrb[0].mxu0
  %2966 = vdwg.mxu0
  %v2968 = vsel %vm477, %v2959, 0
  %v2971 = vsel %vm477, %v2964, 0
  %2973 = vmatprep.subr.mxu0 0.0
  %2974 = vmatpush1.msra.mxu0 %v2203
  %2975 = vmatprep.subr.mxu0 0.0
  %2976 = vmatpush1.msra.mxu0 0.0
  %2977 = vmatprep.subr.mxu0 0.0
  %2978 = vmatpush1.msra.mxu0 0.0
  %2979 = vmatprep.subr.mxu0 0.0
  %2980 = vmatpush1.msra.mxu0 0.0
  %2981 = vmatprep.subr.mxu0 0.0
  %2982 = vmatpush1.msra.mxu0 0.0
  %2983 = vmatprep.subr.mxu0 0.0
  %2984 = vmatpush1.msra.mxu0 0.0
  %2985 = vmatprep.subr.mxu0 0.0
  %2986 = vmatpush1.msra.mxu0 0.0
  %2987 = vmatprep.subr.mxu0 0.0
  %2988 = vmatpush1.msra.mxu0 0.0
  %2989 = vmatprep.subr.mxu0 0.0
  %2990 = vmatpush1.msra.mxu0 0.0
  %2991 = vmatprep.subr.mxu0 0.0
  %2992 = vmatpush1.msra.mxu0 0.0
  %2993 = vmatprep.subr.mxu0 0.0
  %2994 = vmatpush1.msra.mxu0 0.0
  %2995 = vmatprep.subr.mxu0 0.0
  %2996 = vmatpush1.msra.mxu0 0.0
  %2997 = vmatprep.subr.mxu0 0.0
  %2998 = vmatpush1.msra.mxu0 0.0
  %2999 = vmatprep.subr.mxu0 0.0
  %3000 = vmatpush1.msra.mxu0 0.0
  %3001 = vmatprep.subr.mxu0 0.0
  %3002 = vmatpush1.msra.mxu0 0.0
  %3003 = vmatprep.subr.mxu0 0.0
  %3004 = vmatpush1.msra.mxu0 0.0
  %3005 = vmatprep.subr.mxu0 0.0
  %3006 = vmatpush1.msra.mxu0 0.0
  %3007 = vmatprep.subr.mxu0 0.0
  %3008 = vmatpush1.msra.mxu0 0.0
  %3009 = vmatprep.subr.mxu0 0.0
  %3010 = vmatpush1.msra.mxu0 0.0
  %3011 = vmatprep.subr.mxu0 0.0
  %3012 = vmatpush1.msra.mxu0 0.0
  %3013 = vmatprep.subr.mxu0 0.0
  %3014 = vmatpush1.msra.mxu0 0.0
  %3015 = vmatprep.subr.mxu0 0.0
  %3016 = vmatpush1.msra.mxu0 0.0
  %3017 = vmatprep.subr.mxu0 0.0
  %3018 = vmatpush1.msra.mxu0 0.0
  %3019 = vmatprep.subr.mxu0 0.0
  %3020 = vmatpush1.msra.mxu0 0.0
  %3021 = vmatprep.subr.mxu0 0.0
  %3022 = vmatpush1.msra.mxu0 0.0
  %3023 = vmatprep.subr.mxu0 0.0
  %3024 = vmatpush1.msra.mxu0 0.0
  %3025 = vmatprep.subr.mxu0 0.0
  %3026 = vmatpush1.msra.mxu0 0.0
  %3027 = vmatprep.subr.mxu0 0.0
  %3028 = vmatpush1.msra.mxu0 0.0
  %3029 = vmatprep.subr.mxu0 0.0
  %3030 = vmatpush1.msra.mxu0 0.0
  %3031 = vmatprep.subr.mxu0 0.0
  %3032 = vmatpush1.msra.mxu0 0.0
  %3033 = vmatprep.subr.mxu0 0.0
  %3034 = vmatpush1.msra.mxu0 0.0
  %3035 = vmatprep.subr.mxu0 0.0
  %3036 = vmatpush1.msra.mxu0 0.0
  %3037 = vmatprep.mubr.f32.mxu0 0.0
  %3038 = vmatmul.mubr.f32.gmra.mrb[0].mxu0 %v2968
  %v3039 = vpop.f32.mrb[0].mxu0
  %v3040 = vadd.f32 0.0, %v3039
  %v3041 = vpop.f32.mrb[0].mxu0
  %3042 = vmatprep.mubr.f32.mxu0 0.0
  %3043 = vmatmul.mubr.f32.gmra.mrb[0].mxu0 %v2971
  %v3044 = vpop.f32.mrb[0].mxu0
  %v3045 = vadd.f32 0.0, %v3044
  %v3046 = vpop.f32.mrb[0].mxu0
  %3047 = vdwg.mxu0
  %v3048 = vadd.f32 %v2759, %v3040
  %v3049 = vadd.f32 %v2764, %v3045
  %3050 = vrot.lane.b32.xlu0 %v2101, 104
  %v3051 = vpop.permute.xlu0 %3050
  %3052 = vrot.lane.b32.xlu0 %v2102, 104
  %v3053 = vpop.permute.xlu0 %3052
  %3054 = vrot.lane.b32.xlu0 %v2198, 72
  %v3055 = vpop.permute.xlu0 %3054
  %3056 = vrot.lane.b32.xlu0 %v2199, 72
  %v3057 = vpop.permute.xlu0 %3056
  %v3058 = vsel %vm477, %v3051, 0
  %v3060 = vsel %vm477, %v3053, 0
  %v3062 = vsel %vm477, %v3055, 0
  %v3064 = vsel %vm477, %v3057, 0
  %3066 = vmatprep.subr.mxu0 0.0
  %3067 = vmatpush1.xpose.msra.mxu0 %v3062
  %3068 = vmatprep.subr.mxu0 0.0
  %3069 = vmatpush1.xpose.msra.mxu0 %v3064
  %3070 = vmatprep.subr.mxu0 0.0
  %3071 = vmatpush1.xpose.msra.mxu0 0.0
  %3072 = vmatprep.subr.mxu0 0.0
  %3073 = vmatpush1.xpose.msra.mxu0 0.0
  %3074 = vmatprep.subr.mxu0 0.0
  %3075 = vmatpush1.xpose.msra.mxu0 0.0
  %3076 = vmatprep.subr.mxu0 0.0
  %3077 = vmatpush1.xpose.msra.mxu0 0.0
  %3078 = vmatprep.subr.mxu0 0.0
  %3079 = vmatpush1.xpose.msra.mxu0 0.0
  %3080 = vmatprep.subr.mxu0 0.0
  %3081 = vmatpush1.xpose.msra.mxu0 0.0
  %3082 = vmatprep.subr.mxu0 0.0
  %3083 = vmatpush1.xpose.msra.mxu0 0.0
  %3084 = vmatprep.subr.mxu0 0.0
  %3085 = vmatpush1.xpose.msra.mxu0 0.0
  %3086 = vmatprep.subr.mxu0 0.0
  %3087 = vmatpush1.xpose.msra.mxu0 0.0
  %3088 = vmatprep.subr.mxu0 0.0
  %3089 = vmatpush1.xpose.msra.mxu0 0.0
  %3090 = vmatprep.subr.mxu0 0.0
  %3091 = vmatpush1.xpose.msra.mxu0 0.0
  %3092 = vmatprep.subr.mxu0 0.0
  %3093 = vmatpush1.xpose.msra.mxu0 0.0
  %3094 = vmatprep.subr.mxu0 0.0
  %3095 = vmatpush1.xpose.msra.mxu0 0.0
  %3096 = vmatprep.subr.mxu0 0.0
  %3097 = vmatpush1.xpose.msra.mxu0 0.0
  %3098 = vmatprep.subr.mxu0 0.0
  %3099 = vmatpush1.xpose.msra.mxu0 0.0
  %3100 = vmatprep.subr.mxu0 0.0
  %3101 = vmatpush1.xpose.msra.mxu0 0.0
  %3102 = vmatprep.subr.mxu0 0.0
  %3103 = vmatpush1.xpose.msra.mxu0 0.0
  %3104 = vmatprep.subr.mxu0 0.0
  %3105 = vmatpush1.xpose.msra.mxu0 0.0
  %3106 = vmatprep.subr.mxu0 0.0
  %3107 = vmatpush1.xpose.msra.mxu0 0.0
  %3108 = vmatprep.subr.mxu0 0.0
  %3109 = vmatpush1.xpose.msra.mxu0 0.0
  %3110 = vmatprep.subr.mxu0 0.0
  %3111 = vmatpush1.xpose.msra.mxu0 0.0
  %3112 = vmatprep.subr.mxu0 0.0
  %3113 = vmatpush1.xpose.msra.mxu0 0.0
  %3114 = vmatprep.subr.mxu0 0.0
  %3115 = vmatpush1.xpose.msra.mxu0 0.0
  %3116 = vmatprep.subr.mxu0 0.0
  %3117 = vmatpush1.xpose.msra.mxu0 0.0
  %3118 = vmatprep.subr.mxu0 0.0
  %3119 = vmatpush1.xpose.msra.mxu0 0.0
  %3120 = vmatprep.subr.mxu0 0.0
  %3121 = vmatpush1.xpose.msra.mxu0 0.0
  %3122 = vmatprep.subr.mxu0 0.0
  %3123 = vmatpush1.xpose.msra.mxu0 0.0
  %3124 = vmatprep.subr.mxu0 0.0
  %3125 = vmatpush1.xpose.msra.mxu0 0.0
  %3126 = vmatprep.subr.mxu0 0.0
  %3127 = vmatpush1.xpose.msra.mxu0 0.0
  %3128 = vmatprep.subr.mxu0 0.0
  %3129 = vmatpush1.xpose.msra.mxu0 0.0
  %3130 = vmatprep.mubr.f32.mxu0 0.0
  %3131 = vmatmul.mubr.f32.gmra.mrb[0].mxu0 %v3058
  %v3132 = vpop.f32.mrb[0].mxu0
  %v3133 = vadd.f32 %v161, %v3132
  %v3134 = vpop.f32.mrb[0].mxu0
  %3135 = vmatprep.mubr.f32.mxu0 0.0
  %3136 = vmatmul.mubr.f32.gmra.mrb[0].mxu0 %v3060
  %v3137 = vpop.f32.mrb[0].mxu0
  %v3138 = vadd.f32 %v162, %v3137
  %v3139 = vpop.f32.mrb[0].mxu0
  %3140 = vdwg.mxu0
  %v3141 = vsel %vm563, %v3133, -inf
  %3142 = vmax.xlane.f32.xlu0 %v3141
  %v3143 = vpop.xlane.xlu0 %3142
  %v3144 = vsel %vm563, %v3138, -inf
  %3145 = vmax.xlane.f32.xlu0 %v3144
  %v3146 = vpop.xlane.xlu0 %3145
  %v3147 = vsub.f32 %v3133, %v3143
  %v3148 = vsub.f32 %v3138, %v3146
  %v3149 = vmul.f32 %v3147, 1.442695
  %v3150 = vpow.pop %v3149
  %v3151 = vmul.f32 %v3148, 1.442695
  %v3152 = vpow.pop %v3151
  %v3153 = vsel %vm563, %v3150, 0.0
  %3154 = vadd.xlane.f32.xlu0 %v3153
  %v3155 = vpop.xlane.xlu0 %3154
  %v3156 = vsel %vm563, %v3152, 0.0
  %3157 = vadd.xlane.f32.xlu0 %v3156
  %v3158 = vpop.xlane.xlu0 %3157
  %v3159 = vrcp.pop %v3155
  %v3160 = vmul.f32 %v3150, %v3159
  %v3161 = vrcp.pop %v3158
  %v3162 = vmul.f32 %v3152, %v3161
  %3163 = vrot.lane.b32.xlu0 %v2008, 40
  %v3164 = vpop.permute.xlu0 %3163
  %3165 = vrot.lane.b32.xlu0 %v2013, 40
  %v3166 = vpop.permute.xlu0 %3165
  %v3170 = vsel %vm563, %v3160, 0
  %v3173 = vsel %vm563, %v3162, 0
  %3175 = vmatprep.subr.mxu0 0.0
  %3176 = vmatpush1.msra.mxu0 %v3164
  %3177 = vmatprep.subr.mxu0 0.0
  %3178 = vmatpush1.msra.mxu0 %v3166
  %3179 = vmatprep.subr.mxu0 0.0
  %3180 = vmatpush1.msra.mxu0 0.0
  %3181 = vmatprep.subr.mxu0 0.0
  %3182 = vmatpush1.msra.mxu0 0.0
  %3183 = vmatprep.subr.mxu0 0.0
  %3184 = vmatpush1.msra.mxu0 0.0
  %3185 = vmatprep.subr.mxu0 0.0
  %3186 = vmatpush1.msra.mxu0 0.0
  %3187 = vmatprep.subr.mxu0 0.0
  %3188 = vmatpush1.msra.mxu0 0.0
  %3189 = vmatprep.subr.mxu0 0.0
  %3190 = vmatpush1.msra.mxu0 0.0
  %3191 = vmatprep.subr.mxu0 0.0
  %3192 = vmatpush1.msra.mxu0 0.0
  %3193 = vmatprep.subr.mxu0 0.0
  %3194 = vmatpush1.msra.mxu0 0.0
  %3195 = vmatprep.subr.mxu0 0.0
  %3196 = vmatpush1.msra.mxu0 0.0
  %3197 = vmatprep.subr.mxu0 0.0
  %3198 = vmatpush1.msra.mxu0 0.0
  %3199 = vmatprep.subr.mxu0 0.0
  %3200 = vmatpush1.msra.mxu0 0.0
  %3201 = vmatprep.subr.mxu0 0.0
  %3202 = vmatpush1.msra.mxu0 0.0
  %3203 = vmatprep.subr.mxu0 0.0
  %3204 = vmatpush1.msra.mxu0 0.0
  %3205 = vmatprep.subr.mxu0 0.0
  %3206 = vmatpush1.msra.mxu0 0.0
  %3207 = vmatprep.subr.mxu0 0.0
  %3208 = vmatpush1.msra.mxu0 0.0
  %3209 = vmatprep.subr.mxu0 0.0
  %3210 = vmatpush1.msra.mxu0 0.0
  %3211 = vmatprep.subr.mxu0 0.0
  %3212 = vmatpush1.msra.mxu0 0.0
  %3213 = vmatprep.subr.mxu0 0.0
  %3214 = vmatpush1.msra.mxu0 0.0
  %3215 = vmatprep.subr.mxu0 0.0
  %3216 = vmatpush1.msra.mxu0 0.0
  %3217 = vmatprep.subr.mxu0 0.0
  %3218 = vmatpush1.msra.mxu0 0.0
  %3219 = vmatprep.subr.mxu0 0.0
  %3220 = vmatpush1.msra.mxu0 0.0
  %3221 = vmatprep.subr.mxu0 0.0
  %3222 = vmatpush1.msra.mxu0 0.0
  %3223 = vmatprep.subr.mxu0 0.0
  %3224 = vmatpush1.msra.mxu0 0.0
  %3225 = vmatprep.subr.mxu0 0.0
  %3226 = vmatpush1.msra.mxu0 0.0
  %3227 = vmatprep.subr.mxu0 0.0
  %3228 = vmatpush1.msra.mxu0 0.0
  %3229 = vmatprep.subr.mxu0 0.0
  %3230 = vmatpush1.msra.mxu0 0.0
  %3231 = vmatprep.subr.mxu0 0.0
  %3232 = vmatpush1.msra.mxu0 0.0
  %3233 = vmatprep.subr.mxu0 0.0
  %3234 = vmatpush1.msra.mxu0 0.0
  %3235 = vmatprep.subr.mxu0 0.0
  %3236 = vmatpush1.msra.mxu0 0.0
  %3237 = vmatprep.subr.mxu0 0.0
  %3238 = vmatpush1.msra.mxu0 0.0
  %3239 = vmatprep.mubr.f32.mxu0 0.0
  %3240 = vmatmul.mubr.f32.gmra.mrb[0].mxu0 %v3170
  %v3241 = vpop.f32.mrb[0].mxu0
  %v3242 = vadd.f32 0.0, %v3241
  %v3243 = vpop.f32.mrb[0].mxu0
  %3244 = vmatprep.mubr.f32.mxu0 0.0
  %3245 = vmatmul.mubr.f32.gmra.mrb[0].mxu0 %v3173
  %v3246 = vpop.f32.mrb[0].mxu0
  %v3247 = vadd.f32 0.0, %v3246
  %v3248 = vpop.f32.mrb[0].mxu0
  %3249 = vdwg.mxu0
  %v3251 = vsel %vm477, %v3242, 0
  %v3254 = vsel %vm477, %v3247, 0
  %3256 = vmatprep.subr.mxu0 0.0
  %3257 = vmatpush1.msra.mxu0 %v2204
  %3258 = vmatprep.subr.mxu0 0.0
  %3259 = vmatpush1.msra.mxu0 0.0
  %3260 = vmatprep.subr.mxu0 0.0
  %3261 = vmatpush1.msra.mxu0 0.0
  %3262 = vmatprep.subr.mxu0 0.0
  %3263 = vmatpush1.msra.mxu0 0.0
  %3264 = vmatprep.subr.mxu0 0.0
  %3265 = vmatpush1.msra.mxu0 0.0
  %3266 = vmatprep.subr.mxu0 0.0
  %3267 = vmatpush1.msra.mxu0 0.0
  %3268 = vmatprep.subr.mxu0 0.0
  %3269 = vmatpush1.msra.mxu0 0.0
  %3270 = vmatprep.subr.mxu0 0.0
  %3271 = vmatpush1.msra.mxu0 0.0
  %3272 = vmatprep.subr.mxu0 0.0
  %3273 = vmatpush1.msra.mxu0 0.0
  %3274 = vmatprep.subr.mxu0 0.0
  %3275 = vmatpush1.msra.mxu0 0.0
  %3276 = vmatprep.subr.mxu0 0.0
  %3277 = vmatpush1.msra.mxu0 0.0
  %3278 = vmatprep.subr.mxu0 0.0
  %3279 = vmatpush1.msra.mxu0 0.0
  %3280 = vmatprep.subr.mxu0 0.0
  %3281 = vmatpush1.msra.mxu0 0.0
  %3282 = vmatprep.subr.mxu0 0.0
  %3283 = vmatpush1.msra.mxu0 0.0
  %3284 = vmatprep.subr.mxu0 0.0
  %3285 = vmatpush1.msra.mxu0 0.0
  %3286 = vmatprep.subr.mxu0 0.0
  %3287 = vmatpush1.msra.mxu0 0.0
  %3288 = vmatprep.subr.mxu0 0.0
  %3289 = vmatpush1.msra.mxu0 0.0
  %3290 = vmatprep.subr.mxu0 0.0
  %3291 = vmatpush1.msra.mxu0 0.0
  %3292 = vmatprep.subr.mxu0 0.0
  %3293 = vmatpush1.msra.mxu0 0.0
  %3294 = vmatprep.subr.mxu0 0.0
  %3295 = vmatpush1.msra.mxu0 0.0
  %3296 = vmatprep.subr.mxu0 0.0
  %3297 = vmatpush1.msra.mxu0 0.0
  %3298 = vmatprep.subr.mxu0 0.0
  %3299 = vmatpush1.msra.mxu0 0.0
  %3300 = vmatprep.subr.mxu0 0.0
  %3301 = vmatpush1.msra.mxu0 0.0
  %3302 = vmatprep.subr.mxu0 0.0
  %3303 = vmatpush1.msra.mxu0 0.0
  %3304 = vmatprep.subr.mxu0 0.0
  %3305 = vmatpush1.msra.mxu0 0.0
  %3306 = vmatprep.subr.mxu0 0.0
  %3307 = vmatpush1.msra.mxu0 0.0
  %3308 = vmatprep.subr.mxu0 0.0
  %3309 = vmatpush1.msra.mxu0 0.0
  %3310 = vmatprep.subr.mxu0 0.0
  %3311 = vmatpush1.msra.mxu0 0.0
  %3312 = vmatprep.subr.mxu0 0.0
  %3313 = vmatpush1.msra.mxu0 0.0
  %3314 = vmatprep.subr.mxu0 0.0
  %3315 = vmatpush1.msra.mxu0 0.0
  %3316 = vmatprep.subr.mxu0 0.0
  %3317 = vmatpush1.msra.mxu0 0.0
  %3318 = vmatprep.subr.mxu0 0.0
  %3319 = vmatpush1.msra.mxu0 0.0
  %3320 = vmatprep.mubr.f32.mxu0 0.0
  %3321 = vmatmul.mubr.f32.gmra.mrb[0].mxu0 %v3251
  %v3322 = vpop.f32.mrb[0].mxu0
  %v3323 = vadd.f32 0.0, %v3322
  %v3324 = vpop.f32.mrb[0].mxu0
  %3325 = vmatprep.mubr.f32.mxu0 0.0
  %3326 = vmatmul.mubr.f32.gmra.mrb[0].mxu0 %v3254
  %v3327 = vpop.f32.mrb[0].mxu0
  %v3328 = vadd.f32 0.0, %v3327
  %v3329 = vpop.f32.mrb[0].mxu0
  %3330 = vdwg.mxu0
  %v3331 = vadd.f32 %v3048, %v3323
  %v3332 = vadd.f32 %v3049, %v3328
  %v3333 = vadd.f32 %v1902, %v3331
  %v3334 = vadd.f32 %v1903, %v3332
  %s3335 = scalar_lea.vmem %s9, 1
  %v3336 = vld [vmem:[%s3335] sm:$0x1]
  %v3337 = vmul.f32 %v3333, %v3333
  %v3338 = vmul.f32 %v3334, %v3334
  %v3339 = vsel %vm166, %v3337, 0.0
  %3340 = vadd.xlane.f32.xlu0 %v3339
  %v3341 = vpop.xlane.xlu0 %3340
  %v3342 = vsel %vm166, %v3338, 0.0
  %3343 = vadd.xlane.f32.xlu0 %v3342
  %v3344 = vpop.xlane.xlu0 %3343
  %v3345 = vmul.f32 %v3341, %v173
  %v3346 = vmul.f32 %v3344, %v173
  %v3347 = vadd.f32 %v3345, 1e-05
  %v3348 = vadd.f32 %v3346, 1e-05
  %v3349 = vrsqrt.pop %v3347
  %v3350 = vrsqrt.pop %v3348
  %v3351 = vmul.f32 %v3333, %v3349
  %v3352 = vmul.f32 %v3334, %v3350
  %v3354 = vlaneseq
  %v3355 = vshrl.u32 %v3354, 7
  %v3356 = vsub.s32 0, %v3355
  %v3357 = vrot.slane %v3336, %v3356
  %v3359 = vmul.f32 %v3351, %v3357
  %v3360 = vmul.f32 %v3352, %v3357
  %s3361 = scalar_lea.vmem %s10, 32
  %v3362 = vld [vmem:[%s3361] sm:$0xff]
  %v3363 = vld [vmem:[%s3361 + $0x8] sm:$0xff]
  %v3364 = vld [vmem:[%s3361 + $0x10] sm:$0xff]
  %v3365 = vld [vmem:[%s3361 + $0x18] sm:$0xff]
  %v3367 = vsel %vm166, %v3359, 0
  %v3370 = vsel %vm166, %v3360, 0
  %3372 = vmatprep.subr.mxu0 0.0
  %3373 = vmatpush1.msra.mxu0 %v3362
  %3374 = vmatprep.subr.mxu0 0.0
  %3375 = vmatpush1.msra.mxu0 %v3363
  %3376 = vmatprep.subr.mxu0 0.0
  %3377 = vmatpush1.msra.mxu0 %v3364
  %3378 = vmatprep.subr.mxu0 0.0
  %3379 = vmatpush1.msra.mxu0 %v3365
  %3380 = vmatprep.subr.mxu0 0.0
  %3381 = vmatpush1.msra.mxu0 0.0
  %3382 = vmatprep.subr.mxu0 0.0
  %3383 = vmatpush1.msra.mxu0 0.0
  %3384 = vmatprep.subr.mxu0 0.0
  %3385 = vmatpush1.msra.mxu0 0.0
  %3386 = vmatprep.subr.mxu0 0.0
  %3387 = vmatpush1.msra.mxu0 0.0
  %3388 = vmatprep.subr.mxu0 0.0
  %3389 = vmatpush1.msra.mxu0 0.0
  %3390 = vmatprep.subr.mxu0 0.0
  %3391 = vmatpush1.msra.mxu0 0.0
  %3392 = vmatprep.subr.mxu0 0.0
  %3393 = vmatpush1.msra.mxu0 0.0
  %3394 = vmatprep.subr.mxu0 0.0
  %3395 = vmatpush1.msra.mxu0 0.0
  %3396 = vmatprep.subr.mxu0 0.0
  %3397 = vmatpush1.msra.mxu0 0.0
  %3398 = vmatprep.subr.mxu0 0.0
  %3399 = vmatpush1.msra.mxu0 0.0
  %3400 = vmatprep.subr.mxu0 0.0
  %3401 = vmatpush1.msra.mxu0 0.0
  %3402 = vmatprep.subr.mxu0 0.0
  %3403 = vmatpush1.msra.mxu0 0.0
  %3404 = vmatprep.subr.mxu0 0.0
  %3405 = vmatpush1.msra.mxu0 0.0
  %3406 = vmatprep.subr.mxu0 0.0
  %3407 = vmatpush1.msra.mxu0 0.0
  %3408 = vmatprep.subr.mxu0 0.0
  %3409 = vmatpush1.msra.mxu0 0.0
  %3410 = vmatprep.subr.mxu0 0.0
  %3411 = vmatpush1.msra.mxu0 0.0
  %3412 = vmatprep.subr.mxu0 0.0
  %3413 = vmatpush1.msra.mxu0 0.0
  %3414 = vmatprep.subr.mxu0 0.0
  %3415 = vmatpush1.msra.mxu0 0.0
  %3416 = vmatprep.subr.mxu0 0.0
  %3417 = vmatpush1.msra.mxu0 0.0
  %3418 = vmatprep.subr.mxu0 0.0
  %3419 = vmatpush1.msra.mxu0 0.0
  %3420 = vmatprep.subr.mxu0 0.0
  %3421 = vmatpush1.msra.mxu0 0.0
  %3422 = vmatprep.subr.mxu0 0.0
  %3423 = vmatpush1.msra.mxu0 0.0
  %3424 = vmatprep.subr.mxu0 0.0
  %3425 = vmatpush1.msra.mxu0 0.0
  %3426 = vmatprep.subr.mxu0 0.0
  %3427 = vmatpush1.msra.mxu0 0.0
  %3428 = vmatprep.subr.mxu0 0.0
  %3429 = vmatpush1.msra.mxu0 0.0
  %3430 = vmatprep.subr.mxu0 0.0
  %3431 = vmatpush1.msra.mxu0 0.0
  %3432 = vmatprep.subr.mxu0 0.0
  %3433 = vmatpush1.msra.mxu0 0.0
  %3434 = vmatprep.subr.mxu0 0.0
  %3435 = vmatpush1.msra.mxu0 0.0
  %3436 = vmatprep.mubr.f32.mxu0 0.0
  %3437 = vmatmul.mubr.f32.gmra.mrb[0].mxu0 %v3367
  %v3438 = vpop.f32.mrb[0].mxu0
  %v3439 = vadd.f32 0.0, %v3438
  %v3440 = vpop.f32.mrb[0].mxu0
  %3441 = vmatprep.mubr.f32.mxu0 0.0
  %3442 = vmatmul.mubr.f32.gmra.mrb[0].mxu0 %v3370
  %v3443 = vpop.f32.mrb[0].mxu0
  %v3444 = vadd.f32 0.0, %v3443
  %v3445 = vpop.f32.mrb[0].mxu0
  %3446 = vdwg.mxu0
  %s3447 = scalar_lea.vmem %s11, 32
  %v3448 = vld [vmem:[%s3447] sm:$0xff]
  %v3449 = vld [vmem:[%s3447 + $0x8] sm:$0xff]
  %v3450 = vld [vmem:[%s3447 + $0x10] sm:$0xff]
  %v3451 = vld [vmem:[%s3447 + $0x18] sm:$0xff]
  %3452 = vmatprep.subr.mxu0 0.0
  %3453 = vmatpush1.msra.mxu0 %v3448
  %3454 = vmatprep.subr.mxu0 0.0
  %3455 = vmatpush1.msra.mxu0 %v3449
  %3456 = vmatprep.subr.mxu0 0.0
  %3457 = vmatpush1.msra.mxu0 %v3450
  %3458 = vmatprep.subr.mxu0 0.0
  %3459 = vmatpush1.msra.mxu0 %v3451
  %3460 = vmatprep.subr.mxu0 0.0
  %3461 = vmatpush1.msra.mxu0 0.0
  %3462 = vmatprep.subr.mxu0 0.0
  %3463 = vmatpush1.msra.mxu0 0.0
  %3464 = vmatprep.subr.mxu0 0.0
  %3465 = vmatpush1.msra.mxu0 0.0
  %3466 = vmatprep.subr.mxu0 0.0
  %3467 = vmatpush1.msra.mxu0 0.0
  %3468 = vmatprep.subr.mxu0 0.0
  %3469 = vmatpush1.msra.mxu0 0.0
  %3470 = vmatprep.subr.mxu0 0.0
  %3471 = vmatpush1.msra.mxu0 0.0
  %3472 = vmatprep.subr.mxu0 0.0
  %3473 = vmatpush1.msra.mxu0 0.0
  %3474 = vmatprep.subr.mxu0 0.0
  %3475 = vmatpush1.msra.mxu0 0.0
  %3476 = vmatprep.subr.mxu0 0.0
  %3477 = vmatpush1.msra.mxu0 0.0
  %3478 = vmatprep.subr.mxu0 0.0
  %3479 = vmatpush1.msra.mxu0 0.0
  %3480 = vmatprep.subr.mxu0 0.0
  %3481 = vmatpush1.msra.mxu0 0.0
  %3482 = vmatprep.subr.mxu0 0.0
  %3483 = vmatpush1.msra.mxu0 0.0
  %3484 = vmatprep.subr.mxu0 0.0
  %3485 = vmatpush1.msra.mxu0 0.0
  %3486 = vmatprep.subr.mxu0 0.0
  %3487 = vmatpush1.msra.mxu0 0.0
  %3488 = vmatprep.subr.mxu0 0.0
  %3489 = vmatpush1.msra.mxu0 0.0
  %3490 = vmatprep.subr.mxu0 0.0
  %3491 = vmatpush1.msra.mxu0 0.0
  %3492 = vmatprep.subr.mxu0 0.0
  %3493 = vmatpush1.msra.mxu0 0.0
  %3494 = vmatprep.subr.mxu0 0.0
  %3495 = vmatpush1.msra.mxu0 0.0
  %3496 = vmatprep.subr.mxu0 0.0
  %3497 = vmatpush1.msra.mxu0 0.0
  %3498 = vmatprep.subr.mxu0 0.0
  %3499 = vmatpush1.msra.mxu0 0.0
  %3500 = vmatprep.subr.mxu0 0.0
  %3501 = vmatpush1.msra.mxu0 0.0
  %3502 = vmatprep.subr.mxu0 0.0
  %3503 = vmatpush1.msra.mxu0 0.0
  %3504 = vmatprep.subr.mxu0 0.0
  %3505 = vmatpush1.msra.mxu0 0.0
  %3506 = vmatprep.subr.mxu0 0.0
  %3507 = vmatpush1.msra.mxu0 0.0
  %3508 = vmatprep.subr.mxu0 0.0
  %3509 = vmatpush1.msra.mxu0 0.0
  %3510 = vmatprep.subr.mxu0 0.0
  %3511 = vmatpush1.msra.mxu0 0.0
  %3512 = vmatprep.subr.mxu0 0.0
  %3513 = vmatpush1.msra.mxu0 0.0
  %3514 = vmatprep.subr.mxu0 0.0
  %3515 = vmatpush1.msra.mxu0 0.0
  %3516 = vmatprep.mubr.f32.mxu0 0.0
  %3517 = vmatmul.mubr.f32.gmra.mrb[0].mxu0 %v3367
  %v3518 = vpop.f32.mrb[0].mxu0
  %v3519 = vadd.f32 0.0, %v3518
  %v3520 = vpop.f32.mrb[0].mxu0
  %3521 = vmatprep.mubr.f32.mxu0 0.0
  %3522 = vmatmul.mubr.f32.gmra.mrb[0].mxu0 %v3370
  %v3523 = vpop.f32.mrb[0].mxu0
  %v3524 = vadd.f32 0.0, %v3523
  %v3525 = vpop.f32.mrb[0].mxu0
  %3526 = vdwg.mxu0
  %v3527 = vxor.u32 %v3439, 2147483648
  %v3528 = vxor.u32 %v3444, 2147483648
  %v3529 = vmul.f32 %v3527, 1.442695
  %v3530 = vpow.pop %v3529
  %v3531 = vmul.f32 %v3528, 1.442695
  %v3532 = vpow.pop %v3531
  %v3533 = vadd.f32 %v3530, 1.0
  %v3534 = vadd.f32 %v3532, 1.0
  %v3535 = vrcp.pop %v3533
  %v3536 = vmul.f32 1.0, %v3535
  %v3537 = vrcp.pop %v3534
  %v3538 = vmul.f32 1.0, %v3537
  %v3539 = vmul.f32 %v3439, %v3536
  %v3540 = vmul.f32 %v3444, %v3538
  %v3541 = vmul.f32 %v3539, %v3519
  %v3542 = vmul.f32 %v3540, %v3524
  %s3543 = scalar_lea.vmem %s12, 96
  %v3544 = vld [vmem:[%s3543] sm:$0xff]
  %v3545 = vld [vmem:[%s3543 + $0x8] sm:$0xff]
  %v3546 = vld [vmem:[%s3543 + $0x10] sm:$0xff]
  %v3547 = vld [vmem:[%s3543 + $0x18] sm:$0xff]
  %v3548 = vld [vmem:[%s3543 + $0x20] sm:$0xff]
  %v3549 = vld [vmem:[%s3543 + $0x28] sm:$0xff]
  %v3550 = vld [vmem:[%s3543 + $0x30] sm:$0xff]
  %v3551 = vld [vmem:[%s3543 + $0x38] sm:$0xff]
  %v3552 = vld [vmem:[%s3543 + $0x40] sm:$0xff]
  %v3553 = vld [vmem:[%s3543 + $0x48] sm:$0xff]
  %v3554 = vld [vmem:[%s3543 + $0x50] sm:$0xff]
  %v3555 = vld [vmem:[%s3543 + $0x58] sm:$0xff]
  %v3557 = vsel %vm1820, %v3541, 0
  %v3560 = vsel %vm1820, %v3542, 0
  %3562 = vmatprep.subr.mxu0 0.0
  %3563 = vmatpush1.msra.mxu0 %v3544
  %3564 = vmatprep.subr.mxu0 0.0
  %3565 = vmatpush1.msra.mxu0 %v3545
  %3566 = vmatprep.subr.mxu0 0.0
  %3567 = vmatpush1.msra.mxu0 %v3546
  %3568 = vmatprep.subr.mxu0 0.0
  %3569 = vmatpush1.msra.mxu0 %v3547
  %3570 = vmatprep.subr.mxu0 0.0
  %3571 = vmatpush1.msra.mxu0 %v3548
  %3572 = vmatprep.subr.mxu0 0.0
  %3573 = vmatpush1.msra.mxu0 %v3549
  %3574 = vmatprep.subr.mxu0 0.0
  %3575 = vmatpush1.msra.mxu0 %v3550
  %3576 = vmatprep.subr.mxu0 0.0
  %3577 = vmatpush1.msra.mxu0 %v3551
  %3578 = vmatprep.subr.mxu0 0.0
  %3579 = vmatpush1.msra.mxu0 %v3552
  %3580 = vmatprep.subr.mxu0 0.0
  %3581 = vmatpush1.msra.mxu0 %v3553
  %3582 = vmatprep.subr.mxu0 0.0
  %3583 = vmatpush1.msra.mxu0 %v3554
  %3584 = vmatprep.subr.mxu0 0.0
  %3585 = vmatpush1.msra.mxu0 %v3555
  %3586 = vmatprep.subr.mxu0 0.0
  %3587 = vmatpush1.msra.mxu0 0.0
  %3588 = vmatprep.subr.mxu0 0.0
  %3589 = vmatpush1.msra.mxu0 0.0
  %3590 = vmatprep.subr.mxu0 0.0
  %3591 = vmatpush1.msra.mxu0 0.0
  %3592 = vmatprep.subr.mxu0 0.0
  %3593 = vmatpush1.msra.mxu0 0.0
  %3594 = vmatprep.subr.mxu0 0.0
  %3595 = vmatpush1.msra.mxu0 0.0
  %3596 = vmatprep.subr.mxu0 0.0
  %3597 = vmatpush1.msra.mxu0 0.0
  %3598 = vmatprep.subr.mxu0 0.0
  %3599 = vmatpush1.msra.mxu0 0.0
  %3600 = vmatprep.subr.mxu0 0.0
  %3601 = vmatpush1.msra.mxu0 0.0
  %3602 = vmatprep.subr.mxu0 0.0
  %3603 = vmatpush1.msra.mxu0 0.0
  %3604 = vmatprep.subr.mxu0 0.0
  %3605 = vmatpush1.msra.mxu0 0.0
  %3606 = vmatprep.subr.mxu0 0.0
  %3607 = vmatpush1.msra.mxu0 0.0
  %3608 = vmatprep.subr.mxu0 0.0
  %3609 = vmatpush1.msra.mxu0 0.0
  %3610 = vmatprep.subr.mxu0 0.0
  %3611 = vmatpush1.msra.mxu0 0.0
  %3612 = vmatprep.subr.mxu0 0.0
  %3613 = vmatpush1.msra.mxu0 0.0
  %3614 = vmatprep.subr.mxu0 0.0
  %3615 = vmatpush1.msra.mxu0 0.0
  %3616 = vmatprep.subr.mxu0 0.0
  %3617 = vmatpush1.msra.mxu0 0.0
  %3618 = vmatprep.subr.mxu0 0.0
  %3619 = vmatpush1.msra.mxu0 0.0
  %3620 = vmatprep.subr.mxu0 0.0
  %3621 = vmatpush1.msra.mxu0 0.0
  %3622 = vmatprep.subr.mxu0 0.0
  %3623 = vmatpush1.msra.mxu0 0.0
  %3624 = vmatprep.subr.mxu0 0.0
  %3625 = vmatpush1.msra.mxu0 0.0
  %3626 = vmatprep.mubr.f32.mxu0 0.0
  %3627 = vmatmul.mubr.f32.gmra.mrb[0].mxu0 %v3557
  %v3628 = vpop.f32.mrb[0].mxu0
  %v3629 = vadd.f32 0.0, %v3628
  %v3630 = vpop.f32.mrb[0].mxu0
  %3631 = vmatprep.mubr.f32.mxu0 0.0
  %3632 = vmatmul.mubr.f32.gmra.mrb[0].mxu0 %v3560
  %v3633 = vpop.f32.mrb[0].mxu0
  %v3634 = vadd.f32 0.0, %v3633
  %v3635 = vpop.f32.mrb[0].mxu0
  %3636 = vdwg.mxu0
  %v3637 = vadd.f32 %v3333, %v3629
  %v3638 = vadd.f32 %v3334, %v3634
  %v3639 = vld [vmem:[%s13] sm:$0x1]
  %v3640 = vmul.f32 %v3637, %v3637
  %v3641 = vmul.f32 %v3638, %v3638
  %v3642 = vsel %vm166, %v3640, 0.0
  %3643 = vadd.xlane.f32.xlu0 %v3642
  %v3644 = vpop.xlane.xlu0 %3643
  %v3645 = vsel %vm166, %v3641, 0.0
  %3646 = vadd.xlane.f32.xlu0 %v3645
  %v3647 = vpop.xlane.xlu0 %3646
  %v3648 = vmul.f32 %v3644, %v173
  %v3649 = vmul.f32 %v3647, %v173
  %v3650 = vadd.f32 %v3648, 1e-05
  %v3651 = vadd.f32 %v3649, 1e-05
  %v3652 = vrsqrt.pop %v3650
  %v3653 = vrsqrt.pop %v3651
  %v3654 = vmul.f32 %v3637, %v3652
  %v3655 = vmul.f32 %v3638, %v3653
  %v3657 = vlaneseq
  %v3658 = vshrl.u32 %v3657, 7
  %v3659 = vsub.s32 0, %v3658
  %v3660 = vrot.slane %v3639, %v3659
  %v3662 = vmul.f32 %v3654, %v3660
  %v3663 = vmul.f32 %v3655, %v3660
  %v3664 = vld [vmem:[%s14] sm:$0xff]
  %v3665 = vld [vmem:[%s14 + $0x8] sm:$0xff]
  %v3666 = vld [vmem:[%s14 + $0x10] sm:$0xff]
  %v3667 = vld [vmem:[%s14 + $0x18] sm:$0xff]
  %v3669 = vsel %vm166, %v3662, 0
  %v3672 = vsel %vm166, %v3663, 0
  %3674 = vmatprep.subr.mxu0 0.0
  %3675 = vmatpush1.msra.mxu0 %v3664
  %3676 = vmatprep.subr.mxu0 0.0
  %3677 = vmatpush1.msra.mxu0 %v3665
  %3678 = vmatprep.subr.mxu0 0.0
  %3679 = vmatpush1.msra.mxu0 %v3666
  %3680 = vmatprep.subr.mxu0 0.0
  %3681 = vmatpush1.msra.mxu0 %v3667
  %3682 = vmatprep.subr.mxu0 0.0
  %3683 = vmatpush1.msra.mxu0 0.0
  %3684 = vmatprep.subr.mxu0 0.0
  %3685 = vmatpush1.msra.mxu0 0.0
  %3686 = vmatprep.subr.mxu0 0.0
  %3687 = vmatpush1.msra.mxu0 0.0
  %3688 = vmatprep.subr.mxu0 0.0
  %3689 = vmatpush1.msra.mxu0 0.0
  %3690 = vmatprep.subr.mxu0 0.0
  %3691 = vmatpush1.msra.mxu0 0.0
  %3692 = vmatprep.subr.mxu0 0.0
  %3693 = vmatpush1.msra.mxu0 0.0
  %3694 = vmatprep.subr.mxu0 0.0
  %3695 = vmatpush1.msra.mxu0 0.0
  %3696 = vmatprep.subr.mxu0 0.0
  %3697 = vmatpush1.msra.mxu0 0.0
  %3698 = vmatprep.subr.mxu0 0.0
  %3699 = vmatpush1.msra.mxu0 0.0
  %3700 = vmatprep.subr.mxu0 0.0
  %3701 = vmatpush1.msra.mxu0 0.0
  %3702 = vmatprep.subr.mxu0 0.0
  %3703 = vmatpush1.msra.mxu0 0.0
  %3704 = vmatprep.subr.mxu0 0.0
  %3705 = vmatpush1.msra.mxu0 0.0
  %3706 = vmatprep.subr.mxu0 0.0
  %3707 = vmatpush1.msra.mxu0 0.0
  %3708 = vmatprep.subr.mxu0 0.0
  %3709 = vmatpush1.msra.mxu0 0.0
  %3710 = vmatprep.subr.mxu0 0.0
  %3711 = vmatpush1.msra.mxu0 0.0
  %3712 = vmatprep.subr.mxu0 0.0
  %3713 = vmatpush1.msra.mxu0 0.0
  %3714 = vmatprep.subr.mxu0 0.0
  %3715 = vmatpush1.msra.mxu0 0.0
  %3716 = vmatprep.subr.mxu0 0.0
  %3717 = vmatpush1.msra.mxu0 0.0
  %3718 = vmatprep.subr.mxu0 0.0
  %3719 = vmatpush1.msra.mxu0 0.0
  %3720 = vmatprep.subr.mxu0 0.0
  %3721 = vmatpush1.msra.mxu0 0.0
  %3722 = vmatprep.subr.mxu0 0.0
  %3723 = vmatpush1.msra.mxu0 0.0
  %3724 = vmatprep.subr.mxu0 0.0
  %3725 = vmatpush1.msra.mxu0 0.0
  %3726 = vmatprep.subr.mxu0 0.0
  %3727 = vmatpush1.msra.mxu0 0.0
  %3728 = vmatprep.subr.mxu0 0.0
  %3729 = vmatpush1.msra.mxu0 0.0
  %3730 = vmatprep.subr.mxu0 0.0
  %3731 = vmatpush1.msra.mxu0 0.0
  %3732 = vmatprep.subr.mxu0 0.0
  %3733 = vmatpush1.msra.mxu0 0.0
  %3734 = vmatprep.subr.mxu0 0.0
  %3735 = vmatpush1.msra.mxu0 0.0
  %3736 = vmatprep.subr.mxu0 0.0
  %3737 = vmatpush1.msra.mxu0 0.0
  %3738 = vmatprep.mubr.f32.mxu0 0.0
  %3739 = vmatmul.mubr.f32.gmra.mrb[0].mxu0 %v3669
  %v3740 = vpop.f32.mrb[0].mxu0
  %v3741 = vadd.f32 0.0, %v3740
  %v3742 = vpop.f32.mrb[0].mxu0
  %3743 = vmatprep.mubr.f32.mxu0 0.0
  %3744 = vmatmul.mubr.f32.gmra.mrb[0].mxu0 %v3672
  %v3745 = vpop.f32.mrb[0].mxu0
  %v3746 = vadd.f32 0.0, %v3745
  %v3747 = vpop.f32.mrb[0].mxu0
  %3748 = vdwg.mxu0
  %3749 = vst [vmem:[%s15] sm:$0xff] %v3741
  %3750 = vst [vmem:[%s15 + $0x8] sm:$0xff] %v3746
  // Predicated region
  $region62: #{gpt_forward.1} parent=0 // pred_check
    _
  $region63: #{gpt_forward.1} parent=0 // pred_check_branch
    %3752 = sbr.rel (0) target = $region65
  $region64: #{gpt_forward.1} parent=0 // pred_region
    _
  $region65: #{gpt_forward.1} parent=0 // pred_fallthru
    _
  // Predicated region
  $region66: #{gpt_forward.1} parent=0 // pred_check
    _
  $region67: #{gpt_forward.1} parent=0 // pred_check_branch
    %3754 = sbr.rel (0) target = $region69
  $region68: #{gpt_forward.1} parent=0 // pred_region
    _
  $region69: #{gpt_forward.1} parent=0 // pred_fallthru
    _

</llo_original>
